<compile_context>
chip_gen: v6e
topology: v6e:2x2x1
jax: 0.10.0
libtpu: 0.0.40
codegen_flags: <defaults>
</compile_context>

<pallas_src>
import functools

import jax
import jax.numpy as jnp
from jax import lax
from jax.experimental import pallas as pl
from jax.experimental.pallas import tpu as pltpu


# ----------------------------------------------------------------------------
# Hardware-aware helpers
# ----------------------------------------------------------------------------
@functools.lru_cache(maxsize=None)
def _vmem_capacity_bytes():
    """Physical VMEM of the current chip (128 MiB v5e/v6e, 64 MiB v7x); conservative fallback."""
    try:
        cap = int(pltpu.get_tpu_info().vmem_capacity_bytes)
        if cap > 0:
            return cap
    except Exception:
        pass
    return 64 << 20  # conservative (v7x-sized) fallback


def _vmem_budget_bytes():
    """Bytes we allow a single kernel's resident blocks to use (leaves compiler headroom)."""
    return int(_vmem_capacity_bytes() * 0.65)


@functools.lru_cache(maxsize=None)
def _num_tensorcores():
    """2 TensorCores per chip only on v7x; v5e/v6e are single-TC (a 'parallel' batch split there
    is just a serially longer grid with a smaller per-step MXU M)."""
    try:
        kind = jax.devices()[0].device_kind.lower()
    except Exception:
        return 1
    return 2 if "v7" in kind else 1


def _compiler_params(semantics, est_block_bytes):
    cap = _vmem_capacity_bytes()
    limit = int(min(int(cap * 0.8), max(32 << 20, int(est_block_bytes * 1.3))))
    limit = max(limit, 16 << 20)
    return pltpu.CompilerParams(dimension_semantics=semantics, vmem_limit_bytes=limit)


def _tile_and_pad(dim, target, align):
    """Pick a block size for one matmul dim.  Full dim when it fits the target (always legal),
    else an `align`-multiple tile with the dim padded up to a multiple of it (no silent
    full-dim fallback that could blow VMEM)."""
    if dim <= target:
        return dim, dim
    tile = max(align, (int(target) // align) * align)
    padded = ((dim + tile - 1) // tile) * tile
    return tile, padded


def _pick_chunk(T, cap, need_mult8):
    """Largest divisor of T that is <= cap.  When the hs output block puts the chunk on the
    sublane axis (need_mult8), the divisor must also be a multiple of 8 or be T itself."""
    divs = [c for c in range(1, T + 1) if T % c == 0]
    legal = [c for c in divs if (not need_mult8) or (c % 8 == 0) or (c == T)]
    fitting = [c for c in legal if c <= cap]
    return max(fitting) if fitting else min(legal)


def _const_weight_spec(shape, index_map):
    """Single-buffer a constant-indexed weight block (it is never re-DMA'd, so the second
    pipeline buffer is pure wasted VMEM).  Falls back to a default spec if this jax build
    lacks the pipeline_mode knob."""
    buffered = getattr(pl, "Buffered", None)
    if buffered is not None:
        try:
            return pl.BlockSpec(shape, index_map, pipeline_mode=buffered(1))
        except TypeError:
            pass
    return pl.BlockSpec(shape, index_map)


# ----------------------------------------------------------------------------
# Tiled matmul + bias kernel:  y = x @ w + b   (gate tables and vocab projection).
# ----------------------------------------------------------------------------
def _matmul_bias_kernel(x_ref, w_ref, b_ref, o_ref, acc_ref):
    @pl.when(pl.program_id(2) == 0)
    def _():
        acc_ref[...] = jnp.zeros_like(acc_ref)

    acc_ref[...] += jnp.dot(x_ref[...], w_ref[...],
                            preferred_element_type=jnp.float32)

    @pl.when(pl.program_id(2) == pl.num_programs(2) - 1)
    def _():
        o_ref[...] = (acc_ref[...] + b_ref[...]).astype(o_ref.dtype)


def matmul_bias_pallas(x, w, b, *, out_dtype=jnp.float32, tm=None, tn=512, tk=None):
    """x: (M, K); w: (K, N); b: (1, N) f32 -> (M, N) out_dtype.

    K is kept as a single block whenever it fits (kills the reduction grid axis and
    accumulator revisits); the M tile is grown until the VMEM budget is hit so the (K, N)
    weight is re-streamed from HBM as few times as possible.  Uneven dims are zero-padded
    and the result sliced back."""
    M, K = x.shape
    K2, N = w.shape
    assert K == K2 and b.shape == (1, N)
    out_itemsize = jnp.dtype(out_dtype).itemsize
    budget = _vmem_budget_bytes()

    if tk is None:
        tk = K if K <= 4096 else 2048            # strongly prefer a single K block
    bk, Kp = _tile_and_pad(K, tk, 128)
    bn, Np = _tile_and_pad(N, tn, 128)

    if tm is None:
        fixed = 2 * bk * bn * w.dtype.itemsize + 2 * bn * 4          # W blocks + bias
        per_row = (2 * bk * x.dtype.itemsize                         # x (double-buffered)
                   + bn * 4                                          # f32 accumulator
                   + 2 * bn * out_itemsize)                          # out (double-buffered)
        tm = max(16, (budget - fixed) // max(per_row, 1))
        tm = int(min(tm, 8192))
    align_m = 16 if x.dtype == jnp.bfloat16 else 8
    bm, Mp = _tile_and_pad(M, tm, align_m)

    if (Mp, Kp) != (M, K):
        x = jnp.pad(x, ((0, Mp - M), (0, Kp - K)))
    if (Kp, Np) != (K, N):
        w = jnp.pad(w, ((0, Kp - K), (0, Np - N)))
    if Np != N:
        b = jnp.pad(b, ((0, 0), (0, Np - N)))

    grid = (Mp // bm, Np // bn, Kp // bk)
    est = (2 * bm * bk * x.dtype.itemsize + 2 * bk * bn * w.dtype.itemsize
           + 2 * bn * 4 + bm * bn * 4 + 2 * bm * bn * out_itemsize)

    out = pl.pallas_call(
        _matmul_bias_kernel,
        out_shape=jax.ShapeDtypeStruct((Mp, Np), out_dtype),
        grid_spec=pltpu.PrefetchScalarGridSpec(
            num_scalar_prefetch=0,
            grid=grid,
            in_specs=[
                pl.BlockSpec((bm, bk), lambda i, j, k: (i, k)),
                pl.BlockSpec((bk, bn), lambda i, j, k: (k, j)),
                pl.BlockSpec((1, bn), lambda i, j, k: (0, j)),
            ],
            out_specs=pl.BlockSpec((bm, bn), lambda i, j, k: (i, j)),
            scratch_shapes=[pltpu.VMEM((bm, bn), jnp.float32)],
        ),
        compiler_params=_compiler_params(("parallel", "parallel", "arbitrary"), est),
    )(x, w, b)

    if (Mp, Np) != (M, N):
        out = out[:M, :N]
    return out


# ----------------------------------------------------------------------------
# LSTM recurrence kernel.  Inputs are PRE-PROJECTED gate activations
# X_gates = x @ W_ih^T + (b_ih + b_hh), time-major (T, B, 4H) bf16.  Per step the body
# only does h @ W_hh^T (bf16 MXU, f32 acc) + f32 gate math.  Gate order: i, f, g, o.
# Per-step hidden states (when requested) are written BATCH-MAJOR so the vocab projection
# consumes them without an XLA transpose.
# ----------------------------------------------------------------------------
def _lstm_body(xg_ref, h0_ref, c0_ref, whh_ref, hs_ref, hT_ref, cT_ref, h_sc, c_sc):
    # Grid is (batch_blocks, n_time_chunks).  Time MUST stay the innermost ("arbitrary")
    # axis: the carried h/c VMEM scratch is only valid across consecutive chunks of the
    # SAME batch block, and is re-initialised below at t_blk == 0.
    t_blk = pl.program_id(1)

    @pl.when(t_blk == 0)
    def _():
        h_sc[...] = h0_ref[...]
        c_sc[...] = c0_ref[...]

    chunk = xg_ref.shape[0]
    hidden = h_sc.shape[-1]
    whh = whh_ref[...]                    # (H, 4H) bf16, VMEM-resident (single-buffered)

    def step(s, carry):
        h = h_sc[...]
        c = c_sc[...]
        gates = xg_ref[s].astype(jnp.float32) + jnp.dot(
            h.astype(whh.dtype), whh, preferred_element_type=jnp.float32)  # (BB, 4H) f32
        i_g = jax.nn.sigmoid(gates[:, 0 * hidden:1 * hidden])
        f_g = jax.nn.sigmoid(gates[:, 1 * hidden:2 * hidden])
        g_g = jnp.tanh(gates[:, 2 * hidden:3 * hidden])
        o_g = jax.nn.sigmoid(gates[:, 3 * hidden:4 * hidden])
        c_new = f_g * c + i_g * g_g
        h_new = o_g * jnp.tanh(c_new)
        h_sc[...] = h_new
        c_sc[...] = c_new
        if hs_ref is not None:
            # Batch-major hs block (BB, chunk, H): one sublane row per time step.
            hs_ref[:, pl.ds(s, 1), :] = h_new[:, None, :].astype(hs_ref.dtype)
        return carry

    # Bounded unroll: the recurrence is a strict serial chain, full unroll only explodes
    # code size / vreg pressure at large chunks.
    lax.fori_loop(0, chunk, step, 0, unroll=min(8, chunk))

    # Resident outputs (constant block index over the time axis); refreshed each chunk.
    hT_ref[...] = h_sc[...]
    cT_ref[...] = c_sc[...]


def _lstm_kernel_with_hs(xg_ref, h0_ref, c0_ref, whh_ref,
                         hs_ref, hT_ref, cT_ref, h_sc, c_sc):
    _lstm_body(xg_ref, h0_ref, c0_ref, whh_ref, hs_ref, hT_ref, cT_ref, h_sc, c_sc)


def _lstm_kernel_no_hs(xg_ref, h0_ref, c0_ref, whh_ref,
                       hT_ref, cT_ref, h_sc, c_sc):
    _lstm_body(xg_ref, h0_ref, c0_ref, whh_ref, None, hT_ref, cT_ref, h_sc, c_sc)


def lstm_recurrence(x_gates_tm, h0, c0, w_hh_t, *, return_hs,
                    hs_dtype=jnp.bfloat16, max_chunk=128, batch_blocks=None):
    """x_gates_tm: (T, B, 4H) bf16 time-major pre-projected gates; w_hh_t: (H, 4H) bf16.

    Returns (hs, hT, cT); hs is (B, T, H) batch-major (or None when return_hs=False)."""
    T, B, G = x_gates_tm.shape
    H = h0.shape[-1]
    assert G == 4 * H

    # Batch split only shards work on 2-TensorCore parts (v7x); otherwise it just halves the
    # per-step MXU M and doubles the grid length.
    if batch_blocks is None:
        batch_blocks = 2 if (_num_tensorcores() >= 2 and B % 32 == 0) else 1
    BB = B // batch_blocks

    # VMEM-budget-aware time chunk: the (chunk, BB, 4H) gate slab (double-buffered) is the
    # dominant VMEM consumer; W_hh is single-buffered, state/scratch is small.
    xi = x_gates_tm.dtype.itemsize
    hsi = jnp.dtype(hs_dtype).itemsize
    budget = _vmem_budget_bytes()
    fixed = H * 4 * H * w_hh_t.dtype.itemsize + 8 * BB * H * 4
    per_step = 2 * BB * 4 * H * xi + (2 * BB * H * hsi if return_hs else 0)
    cap = max(1, (budget - fixed) // max(per_step, 1))
    chunk = _pick_chunk(T, min(max_chunk, cap), need_mult8=return_hs)
    n_chunks = T // chunk

    in_specs = [
        pl.BlockSpec((chunk, BB, 4 * H), lambda b, t: (t, b, 0)),     # gate slab (time-major)
        pl.BlockSpec((BB, H), lambda b, t: (b, 0)),                   # h0
        pl.BlockSpec((BB, H), lambda b, t: (b, 0)),                   # c0
        _const_weight_spec((H, 4 * H), lambda b, t: (0, 0)),          # W_hh^T (single-buffered)
    ]

    out_shapes = []
    out_specs = []
    if return_hs:
        # Batch-major hidden states straight from the kernel's output DMA (no XLA transpose).
        out_shapes.append(jax.ShapeDtypeStruct((B, T, H), hs_dtype))
        out_specs.append(pl.BlockSpec((BB, chunk, H), lambda b, t: (b, t, 0)))
    out_shapes += [jax.ShapeDtypeStruct((B, H), jnp.float32),
                   jax.ShapeDtypeStruct((B, H), jnp.float32)]
    out_specs += [pl.BlockSpec((BB, H), lambda b, t: (b, 0)),
                  pl.BlockSpec((BB, H), lambda b, t: (b, 0))]

    kernel = _lstm_kernel_with_hs if return_hs else _lstm_kernel_no_hs

    est = (2 * chunk * BB * 4 * H * xi                   # gate slab (double-buffered)
           + H * 4 * H * w_hh_t.dtype.itemsize           # W_hh (single-buffered)
           + 8 * BB * H * 4                              # h0/c0/hT/cT/scratch
           + (2 * BB * chunk * H * hsi if return_hs else 0))

    outs = pl.pallas_call(
        kernel,
        out_shape=tuple(out_shapes),
        grid_spec=pltpu.PrefetchScalarGridSpec(
            num_scalar_prefetch=0,
            grid=(batch_blocks, n_chunks),                # time innermost — required (see body)
            in_specs=in_specs,
            out_specs=out_specs,
            scratch_shapes=[pltpu.VMEM((BB, H), jnp.float32),
                            pltpu.VMEM((BB, H), jnp.float32)],
        ),
        compiler_params=_compiler_params(("parallel", "arbitrary"), est),
    )(x_gates_tm, h0, c0, w_hh_t)

    if return_hs:
        hs, hT, cT = outs
        return hs, hT, cT
    hT, cT = outs
    return None, hT, cT


# ----------------------------------------------------------------------------
# Full forward pass, mirroring BaselineSeq2Seq.forward.
# ----------------------------------------------------------------------------
def baseline_seq2seq_forward(params, src, tgt):
    emb = params["embedding"]                        # (src_vocab, H) bf16
    H = emb.shape[1]
    B = src.shape[0]

    # Fused embedding + input projection: one (vocab, 4H) gate table per LSTM.
    # (In deployment these would be cached per weight set; here they are recomputed inside
    # the jit, which still avoids the (T,B,H) activation HBM round trip entirely.)
    enc_tab = matmul_bias_pallas(emb, params["enc_w_ih_t"], params["enc_bias"],
                                 out_dtype=jnp.bfloat16)              # (V_src, 4H) bf16
    dec_tab = matmul_bias_pallas(emb, params["dec_w_ih_t"], params["dec_bias"],
                                 out_dtype=jnp.bfloat16)

    # TODO(synk): token-id row gather stays as plain JAX indexing; a Pallas version would
    # need scalar-prefetched ids + per-row Element/DMA gather.
    xg_enc = enc_tab[src.T]                           # (T_src, B, 4H) bf16, time-major
    xg_dec = dec_tab[tgt[:, :-1].T]                   # (T_dec, B, 4H) bf16

    h0 = jnp.zeros((B, H), jnp.float32)
    c0 = jnp.zeros((B, H), jnp.float32)

    # Encoder: only the final (h, c) are consumed -> no per-step hidden-state output.
    _, h_enc, c_enc = lstm_recurrence(xg_enc, h0, c0, params["enc_w_hh_t"],
                                      return_hs=False)

    # Decoder: hidden states come out batch-major (B, T_dec, H) directly.
    hs, _, _ = lstm_recurrence(xg_dec, h_enc, c_enc, params["dec_w_hh_t"],
                               return_hs=True)
    T_d = hs.shape[1]

    # Vocab projection: batch-major rows feed the FC kernel with zero layout plumbing.
    logits = matmul_bias_pallas(hs.reshape(B * T_d, H), params["fc_w_t"], params["fc_bias"])
    return logits.reshape(B, T_d, -1)


# ----------------------------------------------------------------------------
# Pure-JAX reference with the SAME precision strategy (bf16 MXU operands / gate tables,
# f32 accumulation, f32 gate math) so the tolerance can be tight.  NOTE: this validates
# internal consistency of the Pallas path, not fidelity to an all-f32 PyTorch baseline.
# ----------------------------------------------------------------------------
def forward_ref(params, src, tgt):
    emb = params["embedding"]
    H = emb.shape[1]
    B = src.shape[0]

    def gate_table(w_ih_t, bias):
        return (jnp.dot(emb, w_ih_t, preferred_element_type=jnp.float32)
                + bias).astype(jnp.bfloat16)

    def lstm(xg_tm, w_hh_t, h0, c0):
        def step(carry, xg_t):
            h, c = carry
            g = xg_t.astype(jnp.float32) + jnp.dot(h.astype(w_hh_t.dtype), w_hh_t,
                                                   preferred_element_type=jnp.float32)
            i_g = jax.nn.sigmoid(g[:, 0 * H:1 * H])
            f_g = jax.nn.sigmoid(g[:, 1 * H:2 * H])
            g_g = jnp.tanh(g[:, 2 * H:3 * H])
            o_g = jax.nn.sigmoid(g[:, 3 * H:4 * H])
            c_new = f_g * c + i_g * g_g
            h_new = o_g * jnp.tanh(c_new)
            return (h_new, c_new), h_new.astype(jnp.bfloat16)

        (hT, cT), hs = lax.scan(step, (h0, c0), xg_tm)
        return hs, hT, cT

    h0 = jnp.zeros((B, H), jnp.float32)
    c0 = jnp.zeros((B, H), jnp.float32)
    xg_enc = gate_table(params["enc_w_ih_t"], params["enc_bias"])[src.T]
    _, h_enc, c_enc = lstm(xg_enc, params["enc_w_hh_t"], h0, c0)
    xg_dec = gate_table(params["dec_w_ih_t"], params["dec_bias"])[tgt[:, :-1].T]
    hs, _, _ = lstm(xg_dec, params["dec_w_hh_t"], h_enc, c_enc)
    T_d = hs.shape[0]
    flat = jnp.transpose(hs, (1, 0, 2)).reshape(B * T_d, H)
    logits = (jnp.dot(flat, params["fc_w_t"], preferred_element_type=jnp.float32)
              + params["fc_bias"])
    return logits.reshape(B, T_d, -1)


# ----------------------------------------------------------------------------
# Deterministic parameter construction (shapes follow the PyTorch module).
# Weight matrices are pre-transposed and stored bf16 (MXU operand dtype);
# biases stay f32 (b_ih + b_hh fused).
# ----------------------------------------------------------------------------
def make_params(key, src_vocab, tgt_vocab, hidden, mxu_dtype=jnp.bfloat16):
    ks = jax.random.split(key, 10)
    scale = 0.1

    def rnd(k, shape):
        return scale * jax.random.normal(k, shape, jnp.float32)

    embedding = rnd(ks[0], (src_vocab, hidden))
    enc_w_ih = rnd(ks[1], (4 * hidden, hidden))
    enc_w_hh = rnd(ks[2], (4 * hidden, hidden))
    enc_b = rnd(ks[3], (4 * hidden,)) + rnd(ks[4], (4 * hidden,))
    dec_w_ih = rnd(ks[5], (4 * hidden, hidden))
    dec_w_hh = rnd(ks[6], (4 * hidden, hidden))
    dec_b = rnd(ks[7], (4 * hidden,)) + rnd(ks[8], (4 * hidden,))
    fc_w = rnd(ks[9], (tgt_vocab, hidden))
    fc_b = jnp.zeros((tgt_vocab,), jnp.float32)

    return {
        "embedding": embedding.astype(mxu_dtype),
        "enc_w_ih_t": enc_w_ih.T.astype(mxu_dtype),
        "enc_w_hh_t": enc_w_hh.T.astype(mxu_dtype),
        "enc_bias": enc_b[None, :],
        "dec_w_ih_t": dec_w_ih.T.astype(mxu_dtype),
        "dec_w_hh_t": dec_w_hh.T.astype(mxu_dtype),
        "dec_bias": dec_b[None, :],
        "fc_w_t": fc_w.T.astype(mxu_dtype),
        "fc_bias": fc_b[None, :],
    }


if __name__ == "__main__":
    SRC_VOCAB, TGT_VOCAB, HIDDEN = 50, 60, 32
    B, T_SRC, T_TGT = 2, 8, 8

    key = jax.random.PRNGKey(0)
    kp, ks, kt = jax.random.split(key, 3)
    params = make_params(kp, SRC_VOCAB, TGT_VOCAB, HIDDEN)

    src = jax.random.randint(ks, (B, T_SRC), 0, SRC_VOCAB, jnp.int32)
    # tgt tokens are looked up in the shared (src) embedding, exactly as in the module.
    tgt = jax.random.randint(kt, (B, T_TGT), 0, SRC_VOCAB, jnp.int32)

    fwd = jax.jit(baseline_seq2seq_forward)
    out = jax.block_until_ready(fwd(params, src, tgt))
    assert out.shape == (B, T_TGT - 1, TGT_VOCAB), out.shape

    ref = jax.block_until_ready(jax.jit(forward_ref)(params, src, tgt))
    max_err = float(jnp.max(jnp.abs(out - ref)))
    # Reference mirrors the kernel's bf16-operand / bf16-gate-table / f32-accumulate
    # strategy, so the tolerance stays tight.
    assert jnp.allclose(out, ref, atol=2e-3, rtol=2e-3), max_err

    print("KERNEL_OK")
</pallas_src>

<mosaic_0001>
module attributes {stable_mosaic.version = 11 : i64} {
  func.func @_matmul_bias_kernel(%arg0: i32, %arg1: i32, %arg2: i32, %arg3: memref<50x32xbf16, #tpu.memory_space<vmem>>, %arg4: memref<32x128xbf16, #tpu.memory_space<vmem>>, %arg5: memref<1x128xf32, #tpu.memory_space<vmem>>, %arg6: memref<50x128xbf16, #tpu.memory_space<vmem>>, %arg7: memref<50x128xf32, #tpu.memory_space<vmem>>) attributes {dimension_semantics = [#tpu.dimension_semantics<parallel>, #tpu.dimension_semantics<parallel>, #tpu.dimension_semantics<arbitrary>], iteration_bounds = array<i64: 1, 1, 1>, scalar_prefetch = 0 : i64, scratch_operands = 1 : i64, tpu.core_type = #tpu.core_type<tc>, window_params = [{transform_indices = @transform_0, window_bounds = array<i64: 50, 32>}, {transform_indices = @transform_1, window_bounds = array<i64: 32, 128>}, {transform_indices = @transform_2, window_bounds = array<i64: 1, 128>}, {transform_indices = @transform_3, window_bounds = array<i64: 50, 128>}]} {
    %c0_i32 = arith.constant 0 : i32
    %0 = arith.cmpi eq, %arg2, %c0_i32 : i32
    %1 = arith.extui %0 : i1 to i32
    %c0_i32_0 = arith.constant 0 : i32
    %2 = arith.cmpi ne, %1, %c0_i32_0 : i32
    scf.if %2 {
      %cst_10 = arith.constant 0.000000e+00 : f32
      %12 = vector.broadcast %cst_10 : f32 to vector<50x128xf32>
      %c0_11 = arith.constant 0 : index
      %c0_12 = arith.constant 0 : index
      %13 = vector.load %arg7[%c0_11, %c0_12] : memref<50x128xf32, #tpu.memory_space<vmem>>, vector<50x128xf32>
      tpu.vector_store %arg7[%c0_11, %c0_12], %12 {strides = array<i32>} : memref<50x128xf32, #tpu.memory_space<vmem>>, vector<50x128xf32>,
    } else {
    }
    %c0 = arith.constant 0 : index
    %c0_1 = arith.constant 0 : index
    %3 = vector.load %arg7[%c0, %c0_1] : memref<50x128xf32, #tpu.memory_space<vmem>>, vector<50x128xf32>
    %c0_2 = arith.constant 0 : index
    %c0_3 = arith.constant 0 : index
    %4 = vector.load %arg3[%c0_2, %c0_3] : memref<50x32xbf16, #tpu.memory_space<vmem>>, vector<50x32xbf16>
    %c0_4 = arith.constant 0 : index
    %c0_5 = arith.constant 0 : index
    %5 = vector.load %arg4[%c0_4, %c0_5] : memref<32x128xbf16, #tpu.memory_space<vmem>>, vector<32x128xbf16>
    %cst = arith.constant dense<0.000000e+00> : vector<50x128xf32>
    %6 = tpu.matmul %4, %5, %cst {dimension_numbers = #tpu.dot_dimension_numbers<[1], [0], [0], [1], [0, 0, 1, 1], [], []>} : vector<50x32xbf16>, vector<32x128xbf16>, vector<50x128xf32> -> vector<50x128xf32>
    %7 = arith.addf %3, %6 : vector<50x128xf32>
    %c0_6 = arith.constant 0 : index
    %c0_7 = arith.constant 0 : index
    %8 = vector.load %arg7[%c0_6, %c0_7] : memref<50x128xf32, #tpu.memory_space<vmem>>, vector<50x128xf32>
    tpu.vector_store %arg7[%c0_6, %c0_7], %7 {strides = array<i32>} : memref<50x128xf32, #tpu.memory_space<vmem>>, vector<50x128xf32>,
    %c0_i32_8 = arith.constant 0 : i32
    %9 = arith.cmpi eq, %arg2, %c0_i32_8 : i32
    %10 = arith.extui %9 : i1 to i32
    %c0_i32_9 = arith.constant 0 : i32
    %11 = arith.cmpi ne, %10, %c0_i32_9 : i32
    scf.if %11 {
      %c0_10 = arith.constant 0 : index
      %c0_11 = arith.constant 0 : index
      %12 = vector.load %arg7[%c0_10, %c0_11] : memref<50x128xf32, #tpu.memory_space<vmem>>, vector<50x128xf32>
      %c0_12 = arith.constant 0 : index
      %c0_13 = arith.constant 0 : index
      %13 = vector.load %arg5[%c0_12, %c0_13] : memref<1x128xf32, #tpu.memory_space<vmem>>, vector<1x128xf32>
      %14 = vector.broadcast %13 : vector<1x128xf32> to vector<50x128xf32>
      %15 = arith.addf %12, %14 : vector<50x128xf32>
      %16 = arith.truncf %15 : vector<50x128xf32> to vector<50x128xbf16>
      %c0_14 = arith.constant 0 : index
      %c0_15 = arith.constant 0 : index
      %17 = vector.load %arg6[%c0_14, %c0_15] : memref<50x128xbf16, #tpu.memory_space<vmem>>, vector<50x128xbf16>
      tpu.vector_store %arg6[%c0_14, %c0_15], %16 {strides = array<i32>} : memref<50x128xbf16, #tpu.memory_space<vmem>>, vector<50x128xbf16>,
    } else {
    }
    return
  }
  func.func @transform_0(%arg0: i32, %arg1: i32, %arg2: i32) -> (i32, i32) {
    %c0_i32 = arith.constant 0 : i32
    return %arg0, %arg2 : i32, i32
  }
  func.func @transform_1(%arg0: i32, %arg1: i32, %arg2: i32) -> (i32, i32) {
    %c0_i32 = arith.constant 0 : i32
    return %arg2, %arg1 : i32, i32
  }
  func.func @transform_2(%arg0: i32, %arg1: i32, %arg2: i32) -> (i32, i32) {
    %c0_i32 = arith.constant 0 : i32
    %c0_i32_0 = arith.constant 0 : i32
    return %c0_i32, %arg1 : i32, i32
  }
  func.func @transform_3(%arg0: i32, %arg1: i32, %arg2: i32) -> (i32, i32) {
    %c0_i32 = arith.constant 0 : i32
    return %arg0, %arg1 : i32, i32
  }
}

module attributes {stable_mosaic.version = 11 : i64} {
  func.func @_lstm_kernel_no_hs(%arg0: i32, %arg1: i32, %arg2: memref<8x2x128xbf16, #tpu.memory_space<vmem>>, %arg3: memref<2x32xf32, #tpu.memory_space<vmem>>, %arg4: memref<2x32xf32, #tpu.memory_space<vmem>>, %arg5: memref<32x128xbf16, #tpu.memory_space<vmem>>, %arg6: memref<2x32xf32, #tpu.memory_space<vmem>>, %arg7: memref<2x32xf32, #tpu.memory_space<vmem>>, %arg8: memref<2x32xf32, #tpu.memory_space<vmem>>, %arg9: memref<2x32xf32, #tpu.memory_space<vmem>>) attributes {dimension_semantics = [#tpu.dimension_semantics<parallel>, #tpu.dimension_semantics<arbitrary>], iteration_bounds = array<i64: 1, 1>, scalar_prefetch = 0 : i64, scratch_operands = 2 : i64, tpu.core_type = #tpu.core_type<tc>, window_params = [{transform_indices = @transform_0, window_bounds = array<i64: 8, 2, 128>}, {transform_indices = @transform_1, window_bounds = array<i64: 2, 32>}, {transform_indices = @transform_2, window_bounds = array<i64: 2, 32>}, {pipeline_mode = #tpu.pipeline_mode<synchronous>, transform_indices = @transform_3, window_bounds = array<i64: 32, 128>}, {transform_indices = @transform_4, window_bounds = array<i64: 2, 32>}, {transform_indices = @transform_5, window_bounds = array<i64: 2, 32>}]} {
    %c0_i32 = arith.constant 0 : i32
    %0 = arith.cmpi eq, %arg1, %c0_i32 : i32
    %1 = arith.extui %0 : i1 to i32
    %c0_i32_0 = arith.constant 0 : i32
    %2 = arith.cmpi ne, %1, %c0_i32_0 : i32
    scf.if %2 {
      %c0_122 = arith.constant 0 : index
      %c0_123 = arith.constant 0 : index
      %296 = vector.load %arg3[%c0_122, %c0_123] : memref<2x32xf32, #tpu.memory_space<vmem>>, vector<2x32xf32>
      %c0_124 = arith.constant 0 : index
      %c0_125 = arith.constant 0 : index
      %297 = vector.load %arg8[%c0_124, %c0_125] : memref<2x32xf32, #tpu.memory_space<vmem>>, vector<2x32xf32>
      tpu.vector_store %arg8[%c0_124, %c0_125], %296 {strides = array<i32>} : memref<2x32xf32, #tpu.memory_space<vmem>>, vector<2x32xf32>,
      %c0_126 = arith.constant 0 : index
      %c0_127 = arith.constant 0 : index
      %298 = vector.load %arg4[%c0_126, %c0_127] : memref<2x32xf32, #tpu.memory_space<vmem>>, vector<2x32xf32>
      %c0_128 = arith.constant 0 : index
      %c0_129 = arith.constant 0 : index
      %299 = vector.load %arg9[%c0_128, %c0_129] : memref<2x32xf32, #tpu.memory_space<vmem>>, vector<2x32xf32>
      tpu.vector_store %arg9[%c0_128, %c0_129], %298 {strides = array<i32>} : memref<2x32xf32, #tpu.memory_space<vmem>>, vector<2x32xf32>,
    } else {
    }
    %c0 = arith.constant 0 : index
    %c0_1 = arith.constant 0 : index
    %3 = vector.load %arg5[%c0, %c0_1] : memref<32x128xbf16, #tpu.memory_space<vmem>>, vector<32x128xbf16>
    %c0_i32_2 = arith.constant 0 : i32
    %c0_3 = arith.constant 0 : index
    %c0_4 = arith.constant 0 : index
    %4 = vector.load %arg8[%c0_3, %c0_4] : memref<2x32xf32, #tpu.memory_space<vmem>>, vector<2x32xf32>
    %c0_5 = arith.constant 0 : index
    %c0_6 = arith.constant 0 : index
    %5 = vector.load %arg9[%c0_5, %c0_6] : memref<2x32xf32, #tpu.memory_space<vmem>>, vector<2x32xf32>
    %6 = arith.index_cast %c0_i32_2 : i32 to index
    %c0_7 = arith.constant 0 : index
    %c0_8 = arith.constant 0 : index
    %7 = vector.load %arg2[%6, %c0_7, %c0_8] : memref<8x2x128xbf16, #tpu.memory_space<vmem>>, vector<1x2x128xbf16>
    %8 = vector.shape_cast %7 : vector<1x2x128xbf16> to vector<2x128xbf16>
    %9 = arith.extf %8 : vector<2x128xbf16> to vector<2x128xf32>
    %10 = arith.truncf %4 : vector<2x32xf32> to vector<2x32xbf16>
    %cst = arith.constant dense<0.000000e+00> : vector<2x128xf32>
    %11 = tpu.matmul %10, %3, %cst {dimension_numbers = #tpu.dot_dimension_numbers<[1], [0], [0], [1], [0, 0, 1, 1], [], []>} : vector<2x32xbf16>, vector<32x128xbf16>, vector<2x128xf32> -> vector<2x128xf32>
    %12 = arith.addf %9, %11 : vector<2x128xf32>
    %13 = vector.extract_strided_slice %12 {offsets = [0, 0], sizes = [2, 32], strides = [1, 1]} : vector<2x128xf32> to vector<2x32xf32>
    %14 = arith.negf %13 : vector<2x32xf32>
    %15 = math.exp %14 : vector<2x32xf32>
    %cst_9 = arith.constant 1.000000e+00 : f32
    %16 = vector.broadcast %cst_9 : f32 to vector<2x32xf32>
    %17 = arith.addf %16, %15 : vector<2x32xf32>
    %18 = arith.divf %16, %17 : vector<2x32xf32>
    %19 = vector.extract_strided_slice %12 {offsets = [0, 32], sizes = [2, 32], strides = [1, 1]} : vector<2x128xf32> to vector<2x32xf32>
    %20 = arith.negf %19 : vector<2x32xf32>
    %21 = math.exp %20 : vector<2x32xf32>
    %cst_10 = arith.constant 1.000000e+00 : f32
    %22 = vector.broadcast %cst_10 : f32 to vector<2x32xf32>
    %23 = arith.addf %22, %21 : vector<2x32xf32>
    %24 = arith.divf %22, %23 : vector<2x32xf32>
    %25 = vector.extract_strided_slice %12 {offsets = [0, 64], sizes = [2, 32], strides = [1, 1]} : vector<2x128xf32> to vector<2x32xf32>
    %26 = math.tanh %25 : vector<2x32xf32>
    %27 = vector.extract_strided_slice %12 {offsets = [0, 96], sizes = [2, 32], strides = [1, 1]} : vector<2x128xf32> to vector<2x32xf32>
    %28 = arith.negf %27 : vector<2x32xf32>
    %29 = math.exp %28 : vector<2x32xf32>
    %cst_11 = arith.constant 1.000000e+00 : f32
    %30 = vector.broadcast %cst_11 : f32 to vector<2x32xf32>
    %31 = arith.addf %30, %29 : vector<2x32xf32>
    %32 = arith.divf %30, %31 : vector<2x32xf32>
    %33 = arith.mulf %24, %5 : vector<2x32xf32>
    %34 = arith.mulf %18, %26 : vector<2x32xf32>
    %35 = arith.addf %33, %34 : vector<2x32xf32>
    %36 = math.tanh %35 : vector<2x32xf32>
    %37 = arith.mulf %32, %36 : vector<2x32xf32>
    %c0_12 = arith.constant 0 : index
    %c0_13 = arith.constant 0 : index
    %38 = vector.load %arg8[%c0_12, %c0_13] : memref<2x32xf32, #tpu.memory_space<vmem>>, vector<2x32xf32>
    tpu.vector_store %arg8[%c0_12, %c0_13], %37 {strides = array<i32>} : memref<2x32xf32, #tpu.memory_space<vmem>>, vector<2x32xf32>,
    %c0_14 = arith.constant 0 : index
    %c0_15 = arith.constant 0 : index
    %39 = vector.load %arg9[%c0_14, %c0_15] : memref<2x32xf32, #tpu.memory_space<vmem>>, vector<2x32xf32>
    tpu.vector_store %arg9[%c0_14, %c0_15], %35 {strides = array<i32>} : memref<2x32xf32, #tpu.memory_space<vmem>>, vector<2x32xf32>,
    %c1_i32 = arith.constant 1 : i32
    %c0_16 = arith.constant 0 : index
    %c0_17 = arith.constant 0 : index
    %40 = vector.load %arg8[%c0_16, %c0_17] : memref<2x32xf32, #tpu.memory_space<vmem>>, vector<2x32xf32>
    %c0_18 = arith.constant 0 : index
    %c0_19 = arith.constant 0 : index
    %41 = vector.load %arg9[%c0_18, %c0_19] : memref<2x32xf32, #tpu.memory_space<vmem>>, vector<2x32xf32>
    %42 = arith.index_cast %c1_i32 : i32 to index
    %c0_20 = arith.constant 0 : index
    %c0_21 = arith.constant 0 : index
    %43 = vector.load %arg2[%42, %c0_20, %c0_21] : memref<8x2x128xbf16, #tpu.memory_space<vmem>>, vector<1x2x128xbf16>
    %44 = vector.shape_cast %43 : vector<1x2x128xbf16> to vector<2x128xbf16>
    %45 = arith.extf %44 : vector<2x128xbf16> to vector<2x128xf32>
    %46 = arith.truncf %40 : vector<2x32xf32> to vector<2x32xbf16>
    %cst_22 = arith.constant dense<0.000000e+00> : vector<2x128xf32>
    %47 = tpu.matmul %46, %3, %cst_22 {dimension_numbers = #tpu.dot_dimension_numbers<[1], [0], [0], [1], [0, 0, 1, 1], [], []>} : vector<2x32xbf16>, vector<32x128xbf16>, vector<2x128xf32> -> vector<2x128xf32>
    %48 = arith.addf %45, %47 : vector<2x128xf32>
    %49 = vector.extract_strided_slice %48 {offsets = [0, 0], sizes = [2, 32], strides = [1, 1]} : vector<2x128xf32> to vector<2x32xf32>
    %50 = arith.negf %49 : vector<2x32xf32>
    %51 = math.exp %50 : vector<2x32xf32>
    %cst_23 = arith.constant 1.000000e+00 : f32
    %52 = vector.broadcast %cst_23 : f32 to vector<2x32xf32>
    %53 = arith.addf %52, %51 : vector<2x32xf32>
    %54 = arith.divf %52, %53 : vector<2x32xf32>
    %55 = vector.extract_strided_slice %48 {offsets = [0, 32], sizes = [2, 32], strides = [1, 1]} : vector<2x128xf32> to vector<2x32xf32>
    %56 = arith.negf %55 : vector<2x32xf32>
    %57 = math.exp %56 : vector<2x32xf32>
    %cst_24 = arith.constant 1.000000e+00 : f32
    %58 = vector.broadcast %cst_24 : f32 to vector<2x32xf32>
    %59 = arith.addf %58, %57 : vector<2x32xf32>
    %60 = arith.divf %58, %59 : vector<2x32xf32>
    %61 = vector.extract_strided_slice %48 {offsets = [0, 64], sizes = [2, 32], strides = [1, 1]} : vector<2x128xf32> to vector<2x32xf32>
    %62 = math.tanh %61 : vector<2x32xf32>
    %63 = vector.extract_strided_slice %48 {offsets = [0, 96], sizes = [2, 32], strides = [1, 1]} : vector<2x128xf32> to vector<2x32xf32>
    %64 = arith.negf %63 : vector<2x32xf32>
    %65 = math.exp %64 : vector<2x32xf32>
    %cst_25 = arith.constant 1.000000e+00 : f32
    %66 = vector.broadcast %cst_25 : f32 to vector<2x32xf32>
    %67 = arith.addf %66, %65 : vector<2x32xf32>
    %68 = arith.divf %66, %67 : vector<2x32xf32>
    %69 = arith.mulf %60, %41 : vector<2x32xf32>
    %70 = arith.mulf %54, %62 : vector<2x32xf32>
    %71 = arith.addf %69, %70 : vector<2x32xf32>
    %72 = math.tanh %71 : vector<2x32xf32>
    %73 = arith.mulf %68, %72 : vector<2x32xf32>
    %c0_26 = arith.constant 0 : index
    %c0_27 = arith.constant 0 : index
    %74 = vector.load %arg8[%c0_26, %c0_27] : memref<2x32xf32, #tpu.memory_space<vmem>>, vector<2x32xf32>
    tpu.vector_store %arg8[%c0_26, %c0_27], %73 {strides = array<i32>} : memref<2x32xf32, #tpu.memory_space<vmem>>, vector<2x32xf32>,
    %c0_28 = arith.constant 0 : index
    %c0_29 = arith.constant 0 : index
    %75 = vector.load %arg9[%c0_28, %c0_29] : memref<2x32xf32, #tpu.memory_space<vmem>>, vector<2x32xf32>
    tpu.vector_store %arg9[%c0_28, %c0_29], %71 {strides = array<i32>} : memref<2x32xf32, #tpu.memory_space<vmem>>, vector<2x32xf32>,
    %c2_i32 = arith.constant 2 : i32
    %c0_30 = arith.constant 0 : index
    %c0_31 = arith.constant 0 : index
    %76 = vector.load %arg8[%c0_30, %c0_31] : memref<2x32xf32, #tpu.memory_space<vmem>>, vector<2x32xf32>
    %c0_32 = arith.constant 0 : index
    %c0_33 = arith.constant 0 : index
    %77 = vector.load %arg9[%c0_32, %c0_33] : memref<2x32xf32, #tpu.memory_space<vmem>>, vector<2x32xf32>
    %78 = arith.index_cast %c2_i32 : i32 to index
    %c0_34 = arith.constant 0 : index
    %c0_35 = arith.constant 0 : index
    %79 = vector.load %arg2[%78, %c0_34, %c0_35] : memref<8x2x128xbf16, #tpu.memory_space<vmem>>, vector<1x2x128xbf16>
    %80 = vector.shape_cast %79 : vector<1x2x128xbf16> to vector<2x128xbf16>
    %81 = arith.extf %80 : vector<2x128xbf16> to vector<2x128xf32>
    %82 = arith.truncf %76 : vector<2x32xf32> to vector<2x32xbf16>
    %cst_36 = arith.constant dense<0.000000e+00> : vector<2x128xf32>
    %83 = tpu.matmul %82, %3, %cst_36 {dimension_numbers = #tpu.dot_dimension_numbers<[1], [0], [0], [1], [0, 0, 1, 1], [], []>} : vector<2x32xbf16>, vector<32x128xbf16>, vector<2x128xf32> -> vector<2x128xf32>
    %84 = arith.addf %81, %83 : vector<2x128xf32>
    %85 = vector.extract_strided_slice %84 {offsets = [0, 0], sizes = [2, 32], strides = [1, 1]} : vector<2x128xf32> to vector<2x32xf32>
    %86 = arith.negf %85 : vector<2x32xf32>
    %87 = math.exp %86 : vector<2x32xf32>
    %cst_37 = arith.constant 1.000000e+00 : f32
    %88 = vector.broadcast %cst_37 : f32 to vector<2x32xf32>
    %89 = arith.addf %88, %87 : vector<2x32xf32>
    %90 = arith.divf %88, %89 : vector<2x32xf32>
    %91 = vector.extract_strided_slice %84 {offsets = [0, 32], sizes = [2, 32], strides = [1, 1]} : vector<2x128xf32> to vector<2x32xf32>
    %92 = arith.negf %91 : vector<2x32xf32>
    %93 = math.exp %92 : vector<2x32xf32>
    %cst_38 = arith.constant 1.000000e+00 : f32
    %94 = vector.broadcast %cst_38 : f32 to vector<2x32xf32>
    %95 = arith.addf %94, %93 : vector<2x32xf32>
    %96 = arith.divf %94, %95 : vector<2x32xf32>
    %97 = vector.extract_strided_slice %84 {offsets = [0, 64], sizes = [2, 32], strides = [1, 1]} : vector<2x128xf32> to vector<2x32xf32>
    %98 = math.tanh %97 : vector<2x32xf32>
    %99 = vector.extract_strided_slice %84 {offsets = [0, 96], sizes = [2, 32], strides = [1, 1]} : vector<2x128xf32> to vector<2x32xf32>
    %100 = arith.negf %99 : vector<2x32xf32>
    %101 = math.exp %100 : vector<2x32xf32>
    %cst_39 = arith.constant 1.000000e+00 : f32
    %102 = vector.broadcast %cst_39 : f32 to vector<2x32xf32>
    %103 = arith.addf %102, %101 : vector<2x32xf32>
    %104 = arith.divf %102, %103 : vector<2x32xf32>
    %105 = arith.mulf %96, %77 : vector<2x32xf32>
    %106 = arith.mulf %90, %98 : vector<2x32xf32>
    %107 = arith.addf %105, %106 : vector<2x32xf32>
    %108 = math.tanh %107 : vector<2x32xf32>
    %109 = arith.mulf %104, %108 : vector<2x32xf32>
    %c0_40 = arith.constant 0 : index
    %c0_41 = arith.constant 0 : index
    %110 = vector.load %arg8[%c0_40, %c0_41] : memref<2x32xf32, #tpu.memory_space<vmem>>, vector<2x32xf32>
    tpu.vector_store %arg8[%c0_40, %c0_41], %109 {strides = array<i32>} : memref<2x32xf32, #tpu.memory_space<vmem>>, vector<2x32xf32>,
    %c0_42 = arith.constant 0 : index
    %c0_43 = arith.constant 0 : index
    %111 = vector.load %arg9[%c0_42, %c0_43] : memref<2x32xf32, #tpu.memory_space<vmem>>, vector<2x32xf32>
    tpu.vector_store %arg9[%c0_42, %c0_43], %107 {strides = array<i32>} : memref<2x32xf32, #tpu.memory_space<vmem>>, vector<2x32xf32>,
    %c3_i32 = arith.constant 3 : i32
    %c0_44 = arith.constant 0 : index
    %c0_45 = arith.constant 0 : index
    %112 = vector.load %arg8[%c0_44, %c0_45] : memref<2x32xf32, #tpu.memory_space<vmem>>, vector<2x32xf32>
    %c0_46 = arith.constant 0 : index
    %c0_47 = arith.constant 0 : index
    %113 = vector.load %arg9[%c0_46, %c0_47] : memref<2x32xf32, #tpu.memory_space<vmem>>, vector<2x32xf32>
    %114 = arith.index_cast %c3_i32 : i32 to index
    %c0_48 = arith.constant 0 : index
    %c0_49 = arith.constant 0 : index
    %115 = vector.load %arg2[%114, %c0_48, %c0_49] : memref<8x2x128xbf16, #tpu.memory_space<vmem>>, vector<1x2x128xbf16>
    %116 = vector.shape_cast %115 : vector<1x2x128xbf16> to vector<2x128xbf16>
    %117 = arith.extf %116 : vector<2x128xbf16> to vector<2x128xf32>
    %118 = arith.truncf %112 : vector<2x32xf32> to vector<2x32xbf16>
    %cst_50 = arith.constant dense<0.000000e+00> : vector<2x128xf32>
    %119 = tpu.matmul %118, %3, %cst_50 {dimension_numbers = #tpu.dot_dimension_numbers<[1], [0], [0], [1], [0, 0, 1, 1], [], []>} : vector<2x32xbf16>, vector<32x128xbf16>, vector<2x128xf32> -> vector<2x128xf32>
    %120 = arith.addf %117, %119 : vector<2x128xf32>
    %121 = vector.extract_strided_slice %120 {offsets = [0, 0], sizes = [2, 32], strides = [1, 1]} : vector<2x128xf32> to vector<2x32xf32>
    %122 = arith.negf %121 : vector<2x32xf32>
    %123 = math.exp %122 : vector<2x32xf32>
    %cst_51 = arith.constant 1.000000e+00 : f32
    %124 = vector.broadcast %cst_51 : f32 to vector<2x32xf32>
    %125 = arith.addf %124, %123 : vector<2x32xf32>
    %126 = arith.divf %124, %125 : vector<2x32xf32>
    %127 = vector.extract_strided_slice %120 {offsets = [0, 32], sizes = [2, 32], strides = [1, 1]} : vector<2x128xf32> to vector<2x32xf32>
    %128 = arith.negf %127 : vector<2x32xf32>
    %129 = math.exp %128 : vector<2x32xf32>
    %cst_52 = arith.constant 1.000000e+00 : f32
    %130 = vector.broadcast %cst_52 : f32 to vector<2x32xf32>
    %131 = arith.addf %130, %129 : vector<2x32xf32>
    %132 = arith.divf %130, %131 : vector<2x32xf32>
    %133 = vector.extract_strided_slice %120 {offsets = [0, 64], sizes = [2, 32], strides = [1, 1]} : vector<2x128xf32> to vector<2x32xf32>
    %134 = math.tanh %133 : vector<2x32xf32>
    %135 = vector.extract_strided_slice %120 {offsets = [0, 96], sizes = [2, 32], strides = [1, 1]} : vector<2x128xf32> to vector<2x32xf32>
    %136 = arith.negf %135 : vector<2x32xf32>
    %137 = math.exp %136 : vector<2x32xf32>
    %cst_53 = arith.constant 1.000000e+00 : f32
    %138 = vector.broadcast %cst_53 : f32 to vector<2x32xf32>
    %139 = arith.addf %138, %137 : vector<2x32xf32>
    %140 = arith.divf %138, %139 : vector<2x32xf32>
    %141 = arith.mulf %132, %113 : vector<2x32xf32>
    %142 = arith.mulf %126, %134 : vector<2x32xf32>
    %143 = arith.addf %141, %142 : vector<2x32xf32>
    %144 = math.tanh %143 : vector<2x32xf32>
    %145 = arith.mulf %140, %144 : vector<2x32xf32>
    %c0_54 = arith.constant 0 : index
    %c0_55 = arith.constant 0 : index
    %146 = vector.load %arg8[%c0_54, %c0_55] : memref<2x32xf32, #tpu.memory_space<vmem>>, vector<2x32xf32>
    tpu.vector_store %arg8[%c0_54, %c0_55], %145 {strides = array<i32>} : memref<2x32xf32, #tpu.memory_space<vmem>>, vector<2x32xf32>,
    %c0_56 = arith.constant 0 : index
    %c0_57 = arith.constant 0 : index
    %147 = vector.load %arg9[%c0_56, %c0_57] : memref<2x32xf32, #tpu.memory_space<vmem>>, vector<2x32xf32>
    tpu.vector_store %arg9[%c0_56, %c0_57], %143 {strides = array<i32>} : memref<2x32xf32, #tpu.memory_space<vmem>>, vector<2x32xf32>,
    %c4_i32 = arith.constant 4 : i32
    %c0_58 = arith.constant 0 : index
    %c0_59 = arith.constant 0 : index
    %148 = vector.load %arg8[%c0_58, %c0_59] : memref<2x32xf32, #tpu.memory_space<vmem>>, vector<2x32xf32>
    %c0_60 = arith.constant 0 : index
    %c0_61 = arith.constant 0 : index
    %149 = vector.load %arg9[%c0_60, %c0_61] : memref<2x32xf32, #tpu.memory_space<vmem>>, vector<2x32xf32>
    %150 = arith.index_cast %c4_i32 : i32 to index
    %c0_62 = arith.constant 0 : index
    %c0_63 = arith.constant 0 : index
    %151 = vector.load %arg2[%150, %c0_62, %c0_63] : memref<8x2x128xbf16, #tpu.memory_space<vmem>>, vector<1x2x128xbf16>
    %152 = vector.shape_cast %151 : vector<1x2x128xbf16> to vector<2x128xbf16>
    %153 = arith.extf %152 : vector<2x128xbf16> to vector<2x128xf32>
    %154 = arith.truncf %148 : vector<2x32xf32> to vector<2x32xbf16>
    %cst_64 = arith.constant dense<0.000000e+00> : vector<2x128xf32>
    %155 = tpu.matmul %154, %3, %cst_64 {dimension_numbers = #tpu.dot_dimension_numbers<[1], [0], [0], [1], [0, 0, 1, 1], [], []>} : vector<2x32xbf16>, vector<32x128xbf16>, vector<2x128xf32> -> vector<2x128xf32>
    %156 = arith.addf %153, %155 : vector<2x128xf32>
    %157 = vector.extract_strided_slice %156 {offsets = [0, 0], sizes = [2, 32], strides = [1, 1]} : vector<2x128xf32> to vector<2x32xf32>
    %158 = arith.negf %157 : vector<2x32xf32>
    %159 = math.exp %158 : vector<2x32xf32>
    %cst_65 = arith.constant 1.000000e+00 : f32
    %160 = vector.broadcast %cst_65 : f32 to vector<2x32xf32>
    %161 = arith.addf %160, %159 : vector<2x32xf32>
    %162 = arith.divf %160, %161 : vector<2x32xf32>
    %163 = vector.extract_strided_slice %156 {offsets = [0, 32], sizes = [2, 32], strides = [1, 1]} : vector<2x128xf32> to vector<2x32xf32>
    %164 = arith.negf %163 : vector<2x32xf32>
    %165 = math.exp %164 : vector<2x32xf32>
    %cst_66 = arith.constant 1.000000e+00 : f32
    %166 = vector.broadcast %cst_66 : f32 to vector<2x32xf32>
    %167 = arith.addf %166, %165 : vector<2x32xf32>
    %168 = arith.divf %166, %167 : vector<2x32xf32>
    %169 = vector.extract_strided_slice %156 {offsets = [0, 64], sizes = [2, 32], strides = [1, 1]} : vector<2x128xf32> to vector<2x32xf32>
    %170 = math.tanh %169 : vector<2x32xf32>
    %171 = vector.extract_strided_slice %156 {offsets = [0, 96], sizes = [2, 32], strides = [1, 1]} : vector<2x128xf32> to vector<2x32xf32>
    %172 = arith.negf %171 : vector<2x32xf32>
    %173 = math.exp %172 : vector<2x32xf32>
    %cst_67 = arith.constant 1.000000e+00 : f32
    %174 = vector.broadcast %cst_67 : f32 to vector<2x32xf32>
    %175 = arith.addf %174, %173 : vector<2x32xf32>
    %176 = arith.divf %174, %175 : vector<2x32xf32>
    %177 = arith.mulf %168, %149 : vector<2x32xf32>
    %178 = arith.mulf %162, %170 : vector<2x32xf32>
    %179 = arith.addf %177, %178 : vector<2x32xf32>
    %180 = math.tanh %179 : vector<2x32xf32>
    %181 = arith.mulf %176, %180 : vector<2x32xf32>
    %c0_68 = arith.constant 0 : index
    %c0_69 = arith.constant 0 : index
    %182 = vector.load %arg8[%c0_68, %c0_69] : memref<2x32xf32, #tpu.memory_space<vmem>>, vector<2x32xf32>
    tpu.vector_store %arg8[%c0_68, %c0_69], %181 {strides = array<i32>} : memref<2x32xf32, #tpu.memory_space<vmem>>, vector<2x32xf32>,
    %c0_70 = arith.constant 0 : index
    %c0_71 = arith.constant 0 : index
    %183 = vector.load %arg9[%c0_70, %c0_71] : memref<2x32xf32, #tpu.memory_space<vmem>>, vector<2x32xf32>
    tpu.vector_store %arg9[%c0_70, %c0_71], %179 {strides = array<i32>} : memref<2x32xf32, #tpu.memory_space<vmem>>, vector<2x32xf32>,
    %c5_i32 = arith.constant 5 : i32
    %c0_72 = arith.constant 0 : index
    %c0_73 = arith.constant 0 : index
    %184 = vector.load %arg8[%c0_72, %c0_73] : memref<2x32xf32, #tpu.memory_space<vmem>>, vector<2x32xf32>
    %c0_74 = arith.constant 0 : index
    %c0_75 = arith.constant 0 : index
    %185 = vector.load %arg9[%c0_74, %c0_75] : memref<2x32xf32, #tpu.memory_space<vmem>>, vector<2x32xf32>
    %186 = arith.index_cast %c5_i32 : i32 to index
    %c0_76 = arith.constant 0 : index
    %c0_77 = arith.constant 0 : index
    %187 = vector.load %arg2[%186, %c0_76, %c0_77] : memref<8x2x128xbf16, #tpu.memory_space<vmem>>, vector<1x2x128xbf16>
    %188 = vector.shape_cast %187 : vector<1x2x128xbf16> to vector<2x128xbf16>
    %189 = arith.extf %188 : vector<2x128xbf16> to vector<2x128xf32>
    %190 = arith.truncf %184 : vector<2x32xf32> to vector<2x32xbf16>
    %cst_78 = arith.constant dense<0.000000e+00> : vector<2x128xf32>
    %191 = tpu.matmul %190, %3, %cst_78 {dimension_numbers = #tpu.dot_dimension_numbers<[1], [0], [0], [1], [0, 0, 1, 1], [], []>} : vector<2x32xbf16>, vector<32x128xbf16>, vector<2x128xf32> -> vector<2x128xf32>
    %192 = arith.addf %189, %191 : vector<2x128xf32>
    %193 = vector.extract_strided_slice %192 {offsets = [0, 0], sizes = [2, 32], strides = [1, 1]} : vector<2x128xf32> to vector<2x32xf32>
    %194 = arith.negf %193 : vector<2x32xf32>
    %195 = math.exp %194 : vector<2x32xf32>
    %cst_79 = arith.constant 1.000000e+00 : f32
    %196 = vector.broadcast %cst_79 : f32 to vector<2x32xf32>
    %197 = arith.addf %196, %195 : vector<2x32xf32>
    %198 = arith.divf %196, %197 : vector<2x32xf32>
    %199 = vector.extract_strided_slice %192 {offsets = [0, 32], sizes = [2, 32], strides = [1, 1]} : vector<2x128xf32> to vector<2x32xf32>
    %200 = arith.negf %199 : vector<2x32xf32>
    %201 = math.exp %200 : vector<2x32xf32>
    %cst_80 = arith.constant 1.000000e+00 : f32
    %202 = vector.broadcast %cst_80 : f32 to vector<2x32xf32>
    %203 = arith.addf %202, %201 : vector<2x32xf32>
    %204 = arith.divf %202, %203 : vector<2x32xf32>
    %205 = vector.extract_strided_slice %192 {offsets = [0, 64], sizes = [2, 32], strides = [1, 1]} : vector<2x128xf32> to vector<2x32xf32>
    %206 = math.tanh %205 : vector<2x32xf32>
    %207 = vector.extract_strided_slice %192 {offsets = [0, 96], sizes = [2, 32], strides = [1, 1]} : vector<2x128xf32> to vector<2x32xf32>
    %208 = arith.negf %207 : vector<2x32xf32>
    %209 = math.exp %208 : vector<2x32xf32>
    %cst_81 = arith.constant 1.000000e+00 : f32
    %210 = vector.broadcast %cst_81 : f32 to vector<2x32xf32>
    %211 = arith.addf %210, %209 : vector<2x32xf32>
    %212 = arith.divf %210, %211 : vector<2x32xf32>
    %213 = arith.mulf %204, %185 : vector<2x32xf32>
    %214 = arith.mulf %198, %206 : vector<2x32xf32>
    %215 = arith.addf %213, %214 : vector<2x32xf32>
    %216 = math.tanh %215 : vector<2x32xf32>
    %217 = arith.mulf %212, %216 : vector<2x32xf32>
    %c0_82 = arith.constant 0 : index
    %c0_83 = arith.constant 0 : index
    %218 = vector.load %arg8[%c0_82, %c0_83] : memref<2x32xf32, #tpu.memory_space<vmem>>, vector<2x32xf32>
    tpu.vector_store %arg8[%c0_82, %c0_83], %217 {strides = array<i32>} : memref<2x32xf32, #tpu.memory_space<vmem>>, vector<2x32xf32>,
    %c0_84 = arith.constant 0 : index
    %c0_85 = arith.constant 0 : index
    %219 = vector.load %arg9[%c0_84, %c0_85] : memref<2x32xf32, #tpu.memory_space<vmem>>, vector<2x32xf32>
    tpu.vector_store %arg9[%c0_84, %c0_85], %215 {strides = array<i32>} : memref<2x32xf32, #tpu.memory_space<vmem>>, vector<2x32xf32>,
    %c6_i32 = arith.constant 6 : i32
    %c0_86 = arith.constant 0 : index
    %c0_87 = arith.constant 0 : index
    %220 = vector.load %arg8[%c0_86, %c0_87] : memref<2x32xf32, #tpu.memory_space<vmem>>, vector<2x32xf32>
    %c0_88 = arith.constant 0 : index
    %c0_89 = arith.constant 0 : index
    %221 = vector.load %arg9[%c0_88, %c0_89] : memref<2x32xf32, #tpu.memory_space<vmem>>, vector<2x32xf32>
    %222 = arith.index_cast %c6_i32 : i32 to index
    %c0_90 = arith.constant 0 : index
    %c0_91 = arith.constant 0 : index
    %223 = vector.load %arg2[%222, %c0_90, %c0_91] : memref<8x2x128xbf16, #tpu.memory_space<vmem>>, vector<1x2x128xbf16>
    %224 = vector.shape_cast %223 : vector<1x2x128xbf16> to vector<2x128xbf16>
    %225 = arith.extf %224 : vector<2x128xbf16> to vector<2x128xf32>
    %226 = arith.truncf %220 : vector<2x32xf32> to vector<2x32xbf16>
    %cst_92 = arith.constant dense<0.000000e+00> : vector<2x128xf32>
    %227 = tpu.matmul %226, %3, %cst_92 {dimension_numbers = #tpu.dot_dimension_numbers<[1], [0], [0], [1], [0, 0, 1, 1], [], []>} : vector<2x32xbf16>, vector<32x128xbf16>, vector<2x128xf32> -> vector<2x128xf32>
    %228 = arith.addf %225, %227 : vector<2x128xf32>
    %229 = vector.extract_strided_slice %228 {offsets = [0, 0], sizes = [2, 32], strides = [1, 1]} : vector<2x128xf32> to vector<2x32xf32>
    %230 = arith.negf %229 : vector<2x32xf32>
    %231 = math.exp %230 : vector<2x32xf32>
    %cst_93 = arith.constant 1.000000e+00 : f32
    %232 = vector.broadcast %cst_93 : f32 to vector<2x32xf32>
    %233 = arith.addf %232, %231 : vector<2x32xf32>
    %234 = arith.divf %232, %233 : vector<2x32xf32>
    %235 = vector.extract_strided_slice %228 {offsets = [0, 32], sizes = [2, 32], strides = [1, 1]} : vector<2x128xf32> to vector<2x32xf32>
    %236 = arith.negf %235 : vector<2x32xf32>
    %237 = math.exp %236 : vector<2x32xf32>
    %cst_94 = arith.constant 1.000000e+00 : f32
    %238 = vector.broadcast %cst_94 : f32 to vector<2x32xf32>
    %239 = arith.addf %238, %237 : vector<2x32xf32>
    %240 = arith.divf %238, %239 : vector<2x32xf32>
    %241 = vector.extract_strided_slice %228 {offsets = [0, 64], sizes = [2, 32], strides = [1, 1]} : vector<2x128xf32> to vector<2x32xf32>
    %242 = math.tanh %241 : vector<2x32xf32>
    %243 = vector.extract_strided_slice %228 {offsets = [0, 96], sizes = [2, 32], strides = [1, 1]} : vector<2x128xf32> to vector<2x32xf32>
    %244 = arith.negf %243 : vector<2x32xf32>
    %245 = math.exp %244 : vector<2x32xf32>
    %cst_95 = arith.constant 1.000000e+00 : f32
    %246 = vector.broadcast %cst_95 : f32 to vector<2x32xf32>
    %247 = arith.addf %246, %245 : vector<2x32xf32>
    %248 = arith.divf %246, %247 : vector<2x32xf32>
    %249 = arith.mulf %240, %221 : vector<2x32xf32>
    %250 = arith.mulf %234, %242 : vector<2x32xf32>
    %251 = arith.addf %249, %250 : vector<2x32xf32>
    %252 = math.tanh %251 : vector<2x32xf32>
    %253 = arith.mulf %248, %252 : vector<2x32xf32>
    %c0_96 = arith.constant 0 : index
    %c0_97 = arith.constant 0 : index
    %254 = vector.load %arg8[%c0_96, %c0_97] : memref<2x32xf32, #tpu.memory_space<vmem>>, vector<2x32xf32>
    tpu.vector_store %arg8[%c0_96, %c0_97], %253 {strides = array<i32>} : memref<2x32xf32, #tpu.memory_space<vmem>>, vector<2x32xf32>,
    %c0_98 = arith.constant 0 : index
    %c0_99 = arith.constant 0 : index
    %255 = vector.load %arg9[%c0_98, %c0_99] : memref<2x32xf32, #tpu.memory_space<vmem>>, vector<2x32xf32>
    tpu.vector_store %arg9[%c0_98, %c0_99], %251 {strides = array<i32>} : memref<2x32xf32, #tpu.memory_space<vmem>>, vector<2x32xf32>,
    %c7_i32 = arith.constant 7 : i32
    %c0_100 = arith.constant 0 : index
    %c0_101 = arith.constant 0 : index
    %256 = vector.load %arg8[%c0_100, %c0_101] : memref<2x32xf32, #tpu.memory_space<vmem>>, vector<2x32xf32>
    %c0_102 = arith.constant 0 : index
    %c0_103 = arith.constant 0 : index
    %257 = vector.load %arg9[%c0_102, %c0_103] : memref<2x32xf32, #tpu.memory_space<vmem>>, vector<2x32xf32>
    %258 = arith.index_cast %c7_i32 : i32 to index
    %c0_104 = arith.constant 0 : index
    %c0_105 = arith.constant 0 : index
    %259 = vector.load %arg2[%258, %c0_104, %c0_105] : memref<8x2x128xbf16, #tpu.memory_space<vmem>>, vector<1x2x128xbf16>
    %260 = vector.shape_cast %259 : vector<1x2x128xbf16> to vector<2x128xbf16>
    %261 = arith.extf %260 : vector<2x128xbf16> to vector<2x128xf32>
    %262 = arith.truncf %256 : vector<2x32xf32> to vector<2x32xbf16>
    %cst_106 = arith.constant dense<0.000000e+00> : vector<2x128xf32>
    %263 = tpu.matmul %262, %3, %cst_106 {dimension_numbers = #tpu.dot_dimension_numbers<[1], [0], [0], [1], [0, 0, 1, 1], [], []>} : vector<2x32xbf16>, vector<32x128xbf16>, vector<2x128xf32> -> vector<2x128xf32>
    %264 = arith.addf %261, %263 : vector<2x128xf32>
    %265 = vector.extract_strided_slice %264 {offsets = [0, 0], sizes = [2, 32], strides = [1, 1]} : vector<2x128xf32> to vector<2x32xf32>
    %266 = arith.negf %265 : vector<2x32xf32>
    %267 = math.exp %266 : vector<2x32xf32>
    %cst_107 = arith.constant 1.000000e+00 : f32
    %268 = vector.broadcast %cst_107 : f32 to vector<2x32xf32>
    %269 = arith.addf %268, %267 : vector<2x32xf32>
    %270 = arith.divf %268, %269 : vector<2x32xf32>
    %271 = vector.extract_strided_slice %264 {offsets = [0, 32], sizes = [2, 32], strides = [1, 1]} : vector<2x128xf32> to vector<2x32xf32>
    %272 = arith.negf %271 : vector<2x32xf32>
    %273 = math.exp %272 : vector<2x32xf32>
    %cst_108 = arith.constant 1.000000e+00 : f32
    %274 = vector.broadcast %cst_108 : f32 to vector<2x32xf32>
    %275 = arith.addf %274, %273 : vector<2x32xf32>
    %276 = arith.divf %274, %275 : vector<2x32xf32>
    %277 = vector.extract_strided_slice %264 {offsets = [0, 64], sizes = [2, 32], strides = [1, 1]} : vector<2x128xf32> to vector<2x32xf32>
    %278 = math.tanh %277 : vector<2x32xf32>
    %279 = vector.extract_strided_slice %264 {offsets = [0, 96], sizes = [2, 32], strides = [1, 1]} : vector<2x128xf32> to vector<2x32xf32>
    %280 = arith.negf %279 : vector<2x32xf32>
    %281 = math.exp %280 : vector<2x32xf32>
    %cst_109 = arith.constant 1.000000e+00 : f32
    %282 = vector.broadcast %cst_109 : f32 to vector<2x32xf32>
    %283 = arith.addf %282, %281 : vector<2x32xf32>
    %284 = arith.divf %282, %283 : vector<2x32xf32>
    %285 = arith.mulf %276, %257 : vector<2x32xf32>
    %286 = arith.mulf %270, %278 : vector<2x32xf32>
    %287 = arith.addf %285, %286 : vector<2x32xf32>
    %288 = math.tanh %287 : vector<2x32xf32>
    %289 = arith.mulf %284, %288 : vector<2x32xf32>
    %c0_110 = arith.constant 0 : index
    %c0_111 = arith.constant 0 : index
    %290 = vector.load %arg8[%c0_110, %c0_111] : memref<2x32xf32, #tpu.memory_space<vmem>>, vector<2x32xf32>
    tpu.vector_store %arg8[%c0_110, %c0_111], %289 {strides = array<i32>} : memref<2x32xf32, #tpu.memory_space<vmem>>, vector<2x32xf32>,
    %c0_112 = arith.constant 0 : index
    %c0_113 = arith.constant 0 : index
    %291 = vector.load %arg9[%c0_112, %c0_113] : memref<2x32xf32, #tpu.memory_space<vmem>>, vector<2x32xf32>
    tpu.vector_store %arg9[%c0_112, %c0_113], %287 {strides = array<i32>} : memref<2x32xf32, #tpu.memory_space<vmem>>, vector<2x32xf32>,
    %c8_i32 = arith.constant 8 : i32
    %c0_114 = arith.constant 0 : index
    %c0_115 = arith.constant 0 : index
    %292 = vector.load %arg8[%c0_114, %c0_115] : memref<2x32xf32, #tpu.memory_space<vmem>>, vector<2x32xf32>
    %c0_116 = arith.constant 0 : index
    %c0_117 = arith.constant 0 : index
    %293 = vector.load %arg6[%c0_116, %c0_117] : memref<2x32xf32, #tpu.memory_space<vmem>>, vector<2x32xf32>
    tpu.vector_store %arg6[%c0_116, %c0_117], %292 {strides = array<i32>} : memref<2x32xf32, #tpu.memory_space<vmem>>, vector<2x32xf32>,
    %c0_118 = arith.constant 0 : index
    %c0_119 = arith.constant 0 : index
    %294 = vector.load %arg9[%c0_118, %c0_119] : memref<2x32xf32, #tpu.memory_space<vmem>>, vector<2x32xf32>
    %c0_120 = arith.constant 0 : index
    %c0_121 = arith.constant 0 : index
    %295 = vector.load %arg7[%c0_120, %c0_121] : memref<2x32xf32, #tpu.memory_space<vmem>>, vector<2x32xf32>
    tpu.vector_store %arg7[%c0_120, %c0_121], %294 {strides = array<i32>} : memref<2x32xf32, #tpu.memory_space<vmem>>, vector<2x32xf32>,
    return
  }
  func.func @transform_0(%arg0: i32, %arg1: i32) -> (i32, i32, i32) {
    %c0_i32 = arith.constant 0 : i32
    %c0_i32_0 = arith.constant 0 : i32
    return %arg1, %arg0, %c0_i32 : i32, i32, i32
  }
  func.func @transform_1(%arg0: i32, %arg1: i32) -> (i32, i32) {
    %c0_i32 = arith.constant 0 : i32
    %c0_i32_0 = arith.constant 0 : i32
    return %arg0, %c0_i32 : i32, i32
  }
  func.func @transform_2(%arg0: i32, %arg1: i32) -> (i32, i32) {
    %c0_i32 = arith.constant 0 : i32
    %c0_i32_0 = arith.constant 0 : i32
    return %arg0, %c0_i32 : i32, i32
  }
  func.func @transform_3(%arg0: i32, %arg1: i32) -> (i32, i32) {
    %c0_i32 = arith.constant 0 : i32
    %c0_i32_0 = arith.constant 0 : i32
    %c0_i32_1 = arith.constant 0 : i32
    return %c0_i32, %c0_i32_0 : i32, i32
  }
  func.func @transform_4(%arg0: i32, %arg1: i32) -> (i32, i32) {
    %c0_i32 = arith.constant 0 : i32
    %c0_i32_0 = arith.constant 0 : i32
    return %arg0, %c0_i32 : i32, i32
  }
  func.func @transform_5(%arg0: i32, %arg1: i32) -> (i32, i32) {
    %c0_i32 = arith.constant 0 : i32
    %c0_i32_0 = arith.constant 0 : i32
    return %arg0, %c0_i32 : i32, i32
  }
}

module attributes {stable_mosaic.version = 11 : i64} {
  func.func @_matmul_bias_kernel(%arg0: i32, %arg1: i32, %arg2: i32, %arg3: memref<14x32xbf16, #tpu.memory_space<vmem>>, %arg4: memref<32x60xbf16, #tpu.memory_space<vmem>>, %arg5: memref<1x60xf32, #tpu.memory_space<vmem>>, %arg6: memref<14x60xf32, #tpu.memory_space<vmem>>, %arg7: memref<14x60xf32, #tpu.memory_space<vmem>>) attributes {dimension_semantics = [#tpu.dimension_semantics<parallel>, #tpu.dimension_semantics<parallel>, #tpu.dimension_semantics<arbitrary>], iteration_bounds = array<i64: 1, 1, 1>, scalar_prefetch = 0 : i64, scratch_operands = 1 : i64, tpu.core_type = #tpu.core_type<tc>, window_params = [{transform_indices = @transform_0, window_bounds = array<i64: 14, 32>}, {transform_indices = @transform_1, window_bounds = array<i64: 32, 60>}, {transform_indices = @transform_2, window_bounds = array<i64: 1, 60>}, {transform_indices = @transform_3, window_bounds = array<i64: 14, 60>}]} {
    %c0_i32 = arith.constant 0 : i32
    %0 = arith.cmpi eq, %arg2, %c0_i32 : i32
    %1 = arith.extui %0 : i1 to i32
    %c0_i32_0 = arith.constant 0 : i32
    %2 = arith.cmpi ne, %1, %c0_i32_0 : i32
    scf.if %2 {
      %cst_10 = arith.constant 0.000000e+00 : f32
      %12 = vector.broadcast %cst_10 : f32 to vector<14x60xf32>
      %c0_11 = arith.constant 0 : index
      %c0_12 = arith.constant 0 : index
      %13 = vector.load %arg7[%c0_11, %c0_12] : memref<14x60xf32, #tpu.memory_space<vmem>>, vector<14x60xf32>
      tpu.vector_store %arg7[%c0_11, %c0_12], %12 {strides = array<i32>} : memref<14x60xf32, #tpu.memory_space<vmem>>, vector<14x60xf32>,
    } else {
    }
    %c0 = arith.constant 0 : index
    %c0_1 = arith.constant 0 : index
    %3 = vector.load %arg7[%c0, %c0_1] : memref<14x60xf32, #tpu.memory_space<vmem>>, vector<14x60xf32>
    %c0_2 = arith.constant 0 : index
    %c0_3 = arith.constant 0 : index
    %4 = vector.load %arg3[%c0_2, %c0_3] : memref<14x32xbf16, #tpu.memory_space<vmem>>, vector<14x32xbf16>
    %c0_4 = arith.constant 0 : index
    %c0_5 = arith.constant 0 : index
    %5 = vector.load %arg4[%c0_4, %c0_5] : memref<32x60xbf16, #tpu.memory_space<vmem>>, vector<32x60xbf16>
    %cst = arith.constant dense<0.000000e+00> : vector<14x60xf32>
    %6 = tpu.matmul %4, %5, %cst {dimension_numbers = #tpu.dot_dimension_numbers<[1], [0], [0], [1], [0, 0, 1, 1], [], []>} : vector<14x32xbf16>, vector<32x60xbf16>, vector<14x60xf32> -> vector<14x60xf32>
    %7 = arith.addf %3, %6 : vector<14x60xf32>
    %c0_6 = arith.constant 0 : index
    %c0_7 = arith.constant 0 : index
    %8 = vector.load %arg7[%c0_6, %c0_7] : memref<14x60xf32, #tpu.memory_space<vmem>>, vector<14x60xf32>
    tpu.vector_store %arg7[%c0_6, %c0_7], %7 {strides = array<i32>} : memref<14x60xf32, #tpu.memory_space<vmem>>, vector<14x60xf32>,
    %c0_i32_8 = arith.constant 0 : i32
    %9 = arith.cmpi eq, %arg2, %c0_i32_8 : i32
    %10 = arith.extui %9 : i1 to i32
    %c0_i32_9 = arith.constant 0 : i32
    %11 = arith.cmpi ne, %10, %c0_i32_9 : i32
    scf.if %11 {
      %c0_10 = arith.constant 0 : index
      %c0_11 = arith.constant 0 : index
      %12 = vector.load %arg7[%c0_10, %c0_11] : memref<14x60xf32, #tpu.memory_space<vmem>>, vector<14x60xf32>
      %c0_12 = arith.constant 0 : index
      %c0_13 = arith.constant 0 : index
      %13 = vector.load %arg5[%c0_12, %c0_13] : memref<1x60xf32, #tpu.memory_space<vmem>>, vector<1x60xf32>
      %14 = vector.broadcast %13 : vector<1x60xf32> to vector<14x60xf32>
      %15 = arith.addf %12, %14 : vector<14x60xf32>
      %c0_14 = arith.constant 0 : index
      %c0_15 = arith.constant 0 : index
      %16 = vector.load %arg6[%c0_14, %c0_15] : memref<14x60xf32, #tpu.memory_space<vmem>>, vector<14x60xf32>
      tpu.vector_store %arg6[%c0_14, %c0_15], %15 {strides = array<i32>} : memref<14x60xf32, #tpu.memory_space<vmem>>, vector<14x60xf32>,
    } else {
    }
    return
  }
  func.func @transform_0(%arg0: i32, %arg1: i32, %arg2: i32) -> (i32, i32) {
    %c0_i32 = arith.constant 0 : i32
    return %arg0, %arg2 : i32, i32
  }
  func.func @transform_1(%arg0: i32, %arg1: i32, %arg2: i32) -> (i32, i32) {
    %c0_i32 = arith.constant 0 : i32
    return %arg2, %arg1 : i32, i32
  }
  func.func @transform_2(%arg0: i32, %arg1: i32, %arg2: i32) -> (i32, i32) {
    %c0_i32 = arith.constant 0 : i32
    %c0_i32_0 = arith.constant 0 : i32
    return %c0_i32, %arg1 : i32, i32
  }
  func.func @transform_3(%arg0: i32, %arg1: i32, %arg2: i32) -> (i32, i32) {
    %c0_i32 = arith.constant 0 : i32
    return %arg0, %arg1 : i32, i32
  }
}

module attributes {stable_mosaic.version = 11 : i64} {
  func.func @_lstm_kernel_with_hs(%arg0: i32, %arg1: i32, %arg2: memref<7x2x128xbf16, #tpu.memory_space<vmem>>, %arg3: memref<2x32xf32, #tpu.memory_space<vmem>>, %arg4: memref<2x32xf32, #tpu.memory_space<vmem>>, %arg5: memref<32x128xbf16, #tpu.memory_space<vmem>>, %arg6: memref<2x7x32xbf16, #tpu.memory_space<vmem>>, %arg7: memref<2x32xf32, #tpu.memory_space<vmem>>, %arg8: memref<2x32xf32, #tpu.memory_space<vmem>>, %arg9: memref<2x32xf32, #tpu.memory_space<vmem>>, %arg10: memref<2x32xf32, #tpu.memory_space<vmem>>) attributes {dimension_semantics = [#tpu.dimension_semantics<parallel>, #tpu.dimension_semantics<arbitrary>], iteration_bounds = array<i64: 1, 1>, scalar_prefetch = 0 : i64, scratch_operands = 2 : i64, tpu.core_type = #tpu.core_type<tc>, window_params = [{transform_indices = @transform_0, window_bounds = array<i64: 7, 2, 128>}, {transform_indices = @transform_1, window_bounds = array<i64: 2, 32>}, {transform_indices = @transform_2, window_bounds = array<i64: 2, 32>}, {pipeline_mode = #tpu.pipeline_mode<synchronous>, transform_indices = @transform_3, window_bounds = array<i64: 32, 128>}, {transform_indices = @transform_4, window_bounds = array<i64: 2, 7, 32>}, {transform_indices = @transform_5, window_bounds = array<i64: 2, 32>}, {transform_indices = @transform_6, window_bounds = array<i64: 2, 32>}]} {
    %c0_i32 = arith.constant 0 : i32
    %0 = arith.cmpi eq, %arg1, %c0_i32 : i32
    %1 = arith.extui %0 : i1 to i32
    %c0_i32_0 = arith.constant 0 : i32
    %2 = arith.cmpi ne, %1, %c0_i32_0 : i32
    scf.if %2 {
      %c0_122 = arith.constant 0 : index
      %c0_123 = arith.constant 0 : index
      %288 = vector.load %arg3[%c0_122, %c0_123] : memref<2x32xf32, #tpu.memory_space<vmem>>, vector<2x32xf32>
      %c0_124 = arith.constant 0 : index
      %c0_125 = arith.constant 0 : index
      %289 = vector.load %arg9[%c0_124, %c0_125] : memref<2x32xf32, #tpu.memory_space<vmem>>, vector<2x32xf32>
      tpu.vector_store %arg9[%c0_124, %c0_125], %288 {strides = array<i32>} : memref<2x32xf32, #tpu.memory_space<vmem>>, vector<2x32xf32>,
      %c0_126 = arith.constant 0 : index
      %c0_127 = arith.constant 0 : index
      %290 = vector.load %arg4[%c0_126, %c0_127] : memref<2x32xf32, #tpu.memory_space<vmem>>, vector<2x32xf32>
      %c0_128 = arith.constant 0 : index
      %c0_129 = arith.constant 0 : index
      %291 = vector.load %arg10[%c0_128, %c0_129] : memref<2x32xf32, #tpu.memory_space<vmem>>, vector<2x32xf32>
      tpu.vector_store %arg10[%c0_128, %c0_129], %290 {strides = array<i32>} : memref<2x32xf32, #tpu.memory_space<vmem>>, vector<2x32xf32>,
    } else {
    }
    %c0 = arith.constant 0 : index
    %c0_1 = arith.constant 0 : index
    %3 = vector.load %arg5[%c0, %c0_1] : memref<32x128xbf16, #tpu.memory_space<vmem>>, vector<32x128xbf16>
    %c0_i32_2 = arith.constant 0 : i32
    %c0_3 = arith.constant 0 : index
    %c0_4 = arith.constant 0 : index
    %4 = vector.load %arg9[%c0_3, %c0_4] : memref<2x32xf32, #tpu.memory_space<vmem>>, vector<2x32xf32>
    %c0_5 = arith.constant 0 : index
    %c0_6 = arith.constant 0 : index
    %5 = vector.load %arg10[%c0_5, %c0_6] : memref<2x32xf32, #tpu.memory_space<vmem>>, vector<2x32xf32>
    %6 = arith.index_cast %c0_i32_2 : i32 to index
    %c0_7 = arith.constant 0 : index
    %c0_8 = arith.constant 0 : index
    %7 = vector.load %arg2[%6, %c0_7, %c0_8] : memref<7x2x128xbf16, #tpu.memory_space<vmem>>, vector<1x2x128xbf16>
    %8 = vector.shape_cast %7 : vector<1x2x128xbf16> to vector<2x128xbf16>
    %9 = arith.extf %8 : vector<2x128xbf16> to vector<2x128xf32>
    %10 = arith.truncf %4 : vector<2x32xf32> to vector<2x32xbf16>
    %cst = arith.constant dense<0.000000e+00> : vector<2x128xf32>
    %11 = tpu.matmul %10, %3, %cst {dimension_numbers = #tpu.dot_dimension_numbers<[1], [0], [0], [1], [0, 0, 1, 1], [], []>} : vector<2x32xbf16>, vector<32x128xbf16>, vector<2x128xf32> -> vector<2x128xf32>
    %12 = arith.addf %9, %11 : vector<2x128xf32>
    %13 = vector.extract_strided_slice %12 {offsets = [0, 0], sizes = [2, 32], strides = [1, 1]} : vector<2x128xf32> to vector<2x32xf32>
    %14 = arith.negf %13 : vector<2x32xf32>
    %15 = math.exp %14 : vector<2x32xf32>
    %cst_9 = arith.constant 1.000000e+00 : f32
    %16 = vector.broadcast %cst_9 : f32 to vector<2x32xf32>
    %17 = arith.addf %16, %15 : vector<2x32xf32>
    %18 = arith.divf %16, %17 : vector<2x32xf32>
    %19 = vector.extract_strided_slice %12 {offsets = [0, 32], sizes = [2, 32], strides = [1, 1]} : vector<2x128xf32> to vector<2x32xf32>
    %20 = arith.negf %19 : vector<2x32xf32>
    %21 = math.exp %20 : vector<2x32xf32>
    %cst_10 = arith.constant 1.000000e+00 : f32
    %22 = vector.broadcast %cst_10 : f32 to vector<2x32xf32>
    %23 = arith.addf %22, %21 : vector<2x32xf32>
    %24 = arith.divf %22, %23 : vector<2x32xf32>
    %25 = vector.extract_strided_slice %12 {offsets = [0, 64], sizes = [2, 32], strides = [1, 1]} : vector<2x128xf32> to vector<2x32xf32>
    %26 = math.tanh %25 : vector<2x32xf32>
    %27 = vector.extract_strided_slice %12 {offsets = [0, 96], sizes = [2, 32], strides = [1, 1]} : vector<2x128xf32> to vector<2x32xf32>
    %28 = arith.negf %27 : vector<2x32xf32>
    %29 = math.exp %28 : vector<2x32xf32>
    %cst_11 = arith.constant 1.000000e+00 : f32
    %30 = vector.broadcast %cst_11 : f32 to vector<2x32xf32>
    %31 = arith.addf %30, %29 : vector<2x32xf32>
    %32 = arith.divf %30, %31 : vector<2x32xf32>
    %33 = arith.mulf %24, %5 : vector<2x32xf32>
    %34 = arith.mulf %18, %26 : vector<2x32xf32>
    %35 = arith.addf %33, %34 : vector<2x32xf32>
    %36 = math.tanh %35 : vector<2x32xf32>
    %37 = arith.mulf %32, %36 : vector<2x32xf32>
    %c0_12 = arith.constant 0 : index
    %c0_13 = arith.constant 0 : index
    %38 = vector.load %arg9[%c0_12, %c0_13] : memref<2x32xf32, #tpu.memory_space<vmem>>, vector<2x32xf32>
    tpu.vector_store %arg9[%c0_12, %c0_13], %37 {strides = array<i32>} : memref<2x32xf32, #tpu.memory_space<vmem>>, vector<2x32xf32>,
    %c0_14 = arith.constant 0 : index
    %c0_15 = arith.constant 0 : index
    %39 = vector.load %arg10[%c0_14, %c0_15] : memref<2x32xf32, #tpu.memory_space<vmem>>, vector<2x32xf32>
    tpu.vector_store %arg10[%c0_14, %c0_15], %35 {strides = array<i32>} : memref<2x32xf32, #tpu.memory_space<vmem>>, vector<2x32xf32>,
    %40 = vector.shape_cast %37 : vector<2x32xf32> to vector<2x1x32xf32>
    %41 = arith.truncf %40 : vector<2x1x32xf32> to vector<2x1x32xbf16>
    %c0_16 = arith.constant 0 : index
    %42 = arith.index_cast %c0_i32_2 : i32 to index
    %c0_17 = arith.constant 0 : index
    %43 = vector.load %arg6[%c0_16, %42, %c0_17] : memref<2x7x32xbf16, #tpu.memory_space<vmem>>, vector<2x1x32xbf16>
    tpu.vector_store %arg6[%c0_16, %42, %c0_17], %41 {strides = array<i32>} : memref<2x7x32xbf16, #tpu.memory_space<vmem>>, vector<2x1x32xbf16>,
    %c1_i32 = arith.constant 1 : i32
    %c0_18 = arith.constant 0 : index
    %c0_19 = arith.constant 0 : index
    %44 = vector.load %arg9[%c0_18, %c0_19] : memref<2x32xf32, #tpu.memory_space<vmem>>, vector<2x32xf32>
    %c0_20 = arith.constant 0 : index
    %c0_21 = arith.constant 0 : index
    %45 = vector.load %arg10[%c0_20, %c0_21] : memref<2x32xf32, #tpu.memory_space<vmem>>, vector<2x32xf32>
    %46 = arith.index_cast %c1_i32 : i32 to index
    %c0_22 = arith.constant 0 : index
    %c0_23 = arith.constant 0 : index
    %47 = vector.load %arg2[%46, %c0_22, %c0_23] : memref<7x2x128xbf16, #tpu.memory_space<vmem>>, vector<1x2x128xbf16>
    %48 = vector.shape_cast %47 : vector<1x2x128xbf16> to vector<2x128xbf16>
    %49 = arith.extf %48 : vector<2x128xbf16> to vector<2x128xf32>
    %50 = arith.truncf %44 : vector<2x32xf32> to vector<2x32xbf16>
    %cst_24 = arith.constant dense<0.000000e+00> : vector<2x128xf32>
    %51 = tpu.matmul %50, %3, %cst_24 {dimension_numbers = #tpu.dot_dimension_numbers<[1], [0], [0], [1], [0, 0, 1, 1], [], []>} : vector<2x32xbf16>, vector<32x128xbf16>, vector<2x128xf32> -> vector<2x128xf32>
    %52 = arith.addf %49, %51 : vector<2x128xf32>
    %53 = vector.extract_strided_slice %52 {offsets = [0, 0], sizes = [2, 32], strides = [1, 1]} : vector<2x128xf32> to vector<2x32xf32>
    %54 = arith.negf %53 : vector<2x32xf32>
    %55 = math.exp %54 : vector<2x32xf32>
    %cst_25 = arith.constant 1.000000e+00 : f32
    %56 = vector.broadcast %cst_25 : f32 to vector<2x32xf32>
    %57 = arith.addf %56, %55 : vector<2x32xf32>
    %58 = arith.divf %56, %57 : vector<2x32xf32>
    %59 = vector.extract_strided_slice %52 {offsets = [0, 32], sizes = [2, 32], strides = [1, 1]} : vector<2x128xf32> to vector<2x32xf32>
    %60 = arith.negf %59 : vector<2x32xf32>
    %61 = math.exp %60 : vector<2x32xf32>
    %cst_26 = arith.constant 1.000000e+00 : f32
    %62 = vector.broadcast %cst_26 : f32 to vector<2x32xf32>
    %63 = arith.addf %62, %61 : vector<2x32xf32>
    %64 = arith.divf %62, %63 : vector<2x32xf32>
    %65 = vector.extract_strided_slice %52 {offsets = [0, 64], sizes = [2, 32], strides = [1, 1]} : vector<2x128xf32> to vector<2x32xf32>
    %66 = math.tanh %65 : vector<2x32xf32>
    %67 = vector.extract_strided_slice %52 {offsets = [0, 96], sizes = [2, 32], strides = [1, 1]} : vector<2x128xf32> to vector<2x32xf32>
    %68 = arith.negf %67 : vector<2x32xf32>
    %69 = math.exp %68 : vector<2x32xf32>
    %cst_27 = arith.constant 1.000000e+00 : f32
    %70 = vector.broadcast %cst_27 : f32 to vector<2x32xf32>
    %71 = arith.addf %70, %69 : vector<2x32xf32>
    %72 = arith.divf %70, %71 : vector<2x32xf32>
    %73 = arith.mulf %64, %45 : vector<2x32xf32>
    %74 = arith.mulf %58, %66 : vector<2x32xf32>
    %75 = arith.addf %73, %74 : vector<2x32xf32>
    %76 = math.tanh %75 : vector<2x32xf32>
    %77 = arith.mulf %72, %76 : vector<2x32xf32>
    %c0_28 = arith.constant 0 : index
    %c0_29 = arith.constant 0 : index
    %78 = vector.load %arg9[%c0_28, %c0_29] : memref<2x32xf32, #tpu.memory_space<vmem>>, vector<2x32xf32>
    tpu.vector_store %arg9[%c0_28, %c0_29], %77 {strides = array<i32>} : memref<2x32xf32, #tpu.memory_space<vmem>>, vector<2x32xf32>,
    %c0_30 = arith.constant 0 : index
    %c0_31 = arith.constant 0 : index
    %79 = vector.load %arg10[%c0_30, %c0_31] : memref<2x32xf32, #tpu.memory_space<vmem>>, vector<2x32xf32>
    tpu.vector_store %arg10[%c0_30, %c0_31], %75 {strides = array<i32>} : memref<2x32xf32, #tpu.memory_space<vmem>>, vector<2x32xf32>,
    %80 = vector.shape_cast %77 : vector<2x32xf32> to vector<2x1x32xf32>
    %81 = arith.truncf %80 : vector<2x1x32xf32> to vector<2x1x32xbf16>
    %c0_32 = arith.constant 0 : index
    %82 = arith.index_cast %c1_i32 : i32 to index
    %c0_33 = arith.constant 0 : index
    %83 = vector.load %arg6[%c0_32, %82, %c0_33] : memref<2x7x32xbf16, #tpu.memory_space<vmem>>, vector<2x1x32xbf16>
    tpu.vector_store %arg6[%c0_32, %82, %c0_33], %81 {strides = array<i32>} : memref<2x7x32xbf16, #tpu.memory_space<vmem>>, vector<2x1x32xbf16>,
    %c2_i32 = arith.constant 2 : i32
    %c0_34 = arith.constant 0 : index
    %c0_35 = arith.constant 0 : index
    %84 = vector.load %arg9[%c0_34, %c0_35] : memref<2x32xf32, #tpu.memory_space<vmem>>, vector<2x32xf32>
    %c0_36 = arith.constant 0 : index
    %c0_37 = arith.constant 0 : index
    %85 = vector.load %arg10[%c0_36, %c0_37] : memref<2x32xf32, #tpu.memory_space<vmem>>, vector<2x32xf32>
    %86 = arith.index_cast %c2_i32 : i32 to index
    %c0_38 = arith.constant 0 : index
    %c0_39 = arith.constant 0 : index
    %87 = vector.load %arg2[%86, %c0_38, %c0_39] : memref<7x2x128xbf16, #tpu.memory_space<vmem>>, vector<1x2x128xbf16>
    %88 = vector.shape_cast %87 : vector<1x2x128xbf16> to vector<2x128xbf16>
    %89 = arith.extf %88 : vector<2x128xbf16> to vector<2x128xf32>
    %90 = arith.truncf %84 : vector<2x32xf32> to vector<2x32xbf16>
    %cst_40 = arith.constant dense<0.000000e+00> : vector<2x128xf32>
    %91 = tpu.matmul %90, %3, %cst_40 {dimension_numbers = #tpu.dot_dimension_numbers<[1], [0], [0], [1], [0, 0, 1, 1], [], []>} : vector<2x32xbf16>, vector<32x128xbf16>, vector<2x128xf32> -> vector<2x128xf32>
    %92 = arith.addf %89, %91 : vector<2x128xf32>
    %93 = vector.extract_strided_slice %92 {offsets = [0, 0], sizes = [2, 32], strides = [1, 1]} : vector<2x128xf32> to vector<2x32xf32>
    %94 = arith.negf %93 : vector<2x32xf32>
    %95 = math.exp %94 : vector<2x32xf32>
    %cst_41 = arith.constant 1.000000e+00 : f32
    %96 = vector.broadcast %cst_41 : f32 to vector<2x32xf32>
    %97 = arith.addf %96, %95 : vector<2x32xf32>
    %98 = arith.divf %96, %97 : vector<2x32xf32>
    %99 = vector.extract_strided_slice %92 {offsets = [0, 32], sizes = [2, 32], strides = [1, 1]} : vector<2x128xf32> to vector<2x32xf32>
    %100 = arith.negf %99 : vector<2x32xf32>
    %101 = math.exp %100 : vector<2x32xf32>
    %cst_42 = arith.constant 1.000000e+00 : f32
    %102 = vector.broadcast %cst_42 : f32 to vector<2x32xf32>
    %103 = arith.addf %102, %101 : vector<2x32xf32>
    %104 = arith.divf %102, %103 : vector<2x32xf32>
    %105 = vector.extract_strided_slice %92 {offsets = [0, 64], sizes = [2, 32], strides = [1, 1]} : vector<2x128xf32> to vector<2x32xf32>
    %106 = math.tanh %105 : vector<2x32xf32>
    %107 = vector.extract_strided_slice %92 {offsets = [0, 96], sizes = [2, 32], strides = [1, 1]} : vector<2x128xf32> to vector<2x32xf32>
    %108 = arith.negf %107 : vector<2x32xf32>
    %109 = math.exp %108 : vector<2x32xf32>
    %cst_43 = arith.constant 1.000000e+00 : f32
    %110 = vector.broadcast %cst_43 : f32 to vector<2x32xf32>
    %111 = arith.addf %110, %109 : vector<2x32xf32>
    %112 = arith.divf %110, %111 : vector<2x32xf32>
    %113 = arith.mulf %104, %85 : vector<2x32xf32>
    %114 = arith.mulf %98, %106 : vector<2x32xf32>
    %115 = arith.addf %113, %114 : vector<2x32xf32>
    %116 = math.tanh %115 : vector<2x32xf32>
    %117 = arith.mulf %112, %116 : vector<2x32xf32>
    %c0_44 = arith.constant 0 : index
    %c0_45 = arith.constant 0 : index
    %118 = vector.load %arg9[%c0_44, %c0_45] : memref<2x32xf32, #tpu.memory_space<vmem>>, vector<2x32xf32>
    tpu.vector_store %arg9[%c0_44, %c0_45], %117 {strides = array<i32>} : memref<2x32xf32, #tpu.memory_space<vmem>>, vector<2x32xf32>,
    %c0_46 = arith.constant 0 : index
    %c0_47 = arith.constant 0 : index
    %119 = vector.load %arg10[%c0_46, %c0_47] : memref<2x32xf32, #tpu.memory_space<vmem>>, vector<2x32xf32>
    tpu.vector_store %arg10[%c0_46, %c0_47], %115 {strides = array<i32>} : memref<2x32xf32, #tpu.memory_space<vmem>>, vector<2x32xf32>,
    %120 = vector.shape_cast %117 : vector<2x32xf32> to vector<2x1x32xf32>
    %121 = arith.truncf %120 : vector<2x1x32xf32> to vector<2x1x32xbf16>
    %c0_48 = arith.constant 0 : index
    %122 = arith.index_cast %c2_i32 : i32 to index
    %c0_49 = arith.constant 0 : index
    %123 = vector.load %arg6[%c0_48, %122, %c0_49] : memref<2x7x32xbf16, #tpu.memory_space<vmem>>, vector<2x1x32xbf16>
    tpu.vector_store %arg6[%c0_48, %122, %c0_49], %121 {strides = array<i32>} : memref<2x7x32xbf16, #tpu.memory_space<vmem>>, vector<2x1x32xbf16>,
    %c3_i32 = arith.constant 3 : i32
    %c0_50 = arith.constant 0 : index
    %c0_51 = arith.constant 0 : index
    %124 = vector.load %arg9[%c0_50, %c0_51] : memref<2x32xf32, #tpu.memory_space<vmem>>, vector<2x32xf32>
    %c0_52 = arith.constant 0 : index
    %c0_53 = arith.constant 0 : index
    %125 = vector.load %arg10[%c0_52, %c0_53] : memref<2x32xf32, #tpu.memory_space<vmem>>, vector<2x32xf32>
    %126 = arith.index_cast %c3_i32 : i32 to index
    %c0_54 = arith.constant 0 : index
    %c0_55 = arith.constant 0 : index
    %127 = vector.load %arg2[%126, %c0_54, %c0_55] : memref<7x2x128xbf16, #tpu.memory_space<vmem>>, vector<1x2x128xbf16>
    %128 = vector.shape_cast %127 : vector<1x2x128xbf16> to vector<2x128xbf16>
    %129 = arith.extf %128 : vector<2x128xbf16> to vector<2x128xf32>
    %130 = arith.truncf %124 : vector<2x32xf32> to vector<2x32xbf16>
    %cst_56 = arith.constant dense<0.000000e+00> : vector<2x128xf32>
    %131 = tpu.matmul %130, %3, %cst_56 {dimension_numbers = #tpu.dot_dimension_numbers<[1], [0], [0], [1], [0, 0, 1, 1], [], []>} : vector<2x32xbf16>, vector<32x128xbf16>, vector<2x128xf32> -> vector<2x128xf32>
    %132 = arith.addf %129, %131 : vector<2x128xf32>
    %133 = vector.extract_strided_slice %132 {offsets = [0, 0], sizes = [2, 32], strides = [1, 1]} : vector<2x128xf32> to vector<2x32xf32>
    %134 = arith.negf %133 : vector<2x32xf32>
    %135 = math.exp %134 : vector<2x32xf32>
    %cst_57 = arith.constant 1.000000e+00 : f32
    %136 = vector.broadcast %cst_57 : f32 to vector<2x32xf32>
    %137 = arith.addf %136, %135 : vector<2x32xf32>
    %138 = arith.divf %136, %137 : vector<2x32xf32>
    %139 = vector.extract_strided_slice %132 {offsets = [0, 32], sizes = [2, 32], strides = [1, 1]} : vector<2x128xf32> to vector<2x32xf32>
    %140 = arith.negf %139 : vector<2x32xf32>
    %141 = math.exp %140 : vector<2x32xf32>
    %cst_58 = arith.constant 1.000000e+00 : f32
    %142 = vector.broadcast %cst_58 : f32 to vector<2x32xf32>
    %143 = arith.addf %142, %141 : vector<2x32xf32>
    %144 = arith.divf %142, %143 : vector<2x32xf32>
    %145 = vector.extract_strided_slice %132 {offsets = [0, 64], sizes = [2, 32], strides = [1, 1]} : vector<2x128xf32> to vector<2x32xf32>
    %146 = math.tanh %145 : vector<2x32xf32>
    %147 = vector.extract_strided_slice %132 {offsets = [0, 96], sizes = [2, 32], strides = [1, 1]} : vector<2x128xf32> to vector<2x32xf32>
    %148 = arith.negf %147 : vector<2x32xf32>
    %149 = math.exp %148 : vector<2x32xf32>
    %cst_59 = arith.constant 1.000000e+00 : f32
    %150 = vector.broadcast %cst_59 : f32 to vector<2x32xf32>
    %151 = arith.addf %150, %149 : vector<2x32xf32>
    %152 = arith.divf %150, %151 : vector<2x32xf32>
    %153 = arith.mulf %144, %125 : vector<2x32xf32>
    %154 = arith.mulf %138, %146 : vector<2x32xf32>
    %155 = arith.addf %153, %154 : vector<2x32xf32>
    %156 = math.tanh %155 : vector<2x32xf32>
    %157 = arith.mulf %152, %156 : vector<2x32xf32>
    %c0_60 = arith.constant 0 : index
    %c0_61 = arith.constant 0 : index
    %158 = vector.load %arg9[%c0_60, %c0_61] : memref<2x32xf32, #tpu.memory_space<vmem>>, vector<2x32xf32>
    tpu.vector_store %arg9[%c0_60, %c0_61], %157 {strides = array<i32>} : memref<2x32xf32, #tpu.memory_space<vmem>>, vector<2x32xf32>,
    %c0_62 = arith.constant 0 : index
    %c0_63 = arith.constant 0 : index
    %159 = vector.load %arg10[%c0_62, %c0_63] : memref<2x32xf32, #tpu.memory_space<vmem>>, vector<2x32xf32>
    tpu.vector_store %arg10[%c0_62, %c0_63], %155 {strides = array<i32>} : memref<2x32xf32, #tpu.memory_space<vmem>>, vector<2x32xf32>,
    %160 = vector.shape_cast %157 : vector<2x32xf32> to vector<2x1x32xf32>
    %161 = arith.truncf %160 : vector<2x1x32xf32> to vector<2x1x32xbf16>
    %c0_64 = arith.constant 0 : index
    %162 = arith.index_cast %c3_i32 : i32 to index
    %c0_65 = arith.constant 0 : index
    %163 = vector.load %arg6[%c0_64, %162, %c0_65] : memref<2x7x32xbf16, #tpu.memory_space<vmem>>, vector<2x1x32xbf16>
    tpu.vector_store %arg6[%c0_64, %162, %c0_65], %161 {strides = array<i32>} : memref<2x7x32xbf16, #tpu.memory_space<vmem>>, vector<2x1x32xbf16>,
    %c4_i32 = arith.constant 4 : i32
    %c0_66 = arith.constant 0 : index
    %c0_67 = arith.constant 0 : index
    %164 = vector.load %arg9[%c0_66, %c0_67] : memref<2x32xf32, #tpu.memory_space<vmem>>, vector<2x32xf32>
    %c0_68 = arith.constant 0 : index
    %c0_69 = arith.constant 0 : index
    %165 = vector.load %arg10[%c0_68, %c0_69] : memref<2x32xf32, #tpu.memory_space<vmem>>, vector<2x32xf32>
    %166 = arith.index_cast %c4_i32 : i32 to index
    %c0_70 = arith.constant 0 : index
    %c0_71 = arith.constant 0 : index
    %167 = vector.load %arg2[%166, %c0_70, %c0_71] : memref<7x2x128xbf16, #tpu.memory_space<vmem>>, vector<1x2x128xbf16>
    %168 = vector.shape_cast %167 : vector<1x2x128xbf16> to vector<2x128xbf16>
    %169 = arith.extf %168 : vector<2x128xbf16> to vector<2x128xf32>
    %170 = arith.truncf %164 : vector<2x32xf32> to vector<2x32xbf16>
    %cst_72 = arith.constant dense<0.000000e+00> : vector<2x128xf32>
    %171 = tpu.matmul %170, %3, %cst_72 {dimension_numbers = #tpu.dot_dimension_numbers<[1], [0], [0], [1], [0, 0, 1, 1], [], []>} : vector<2x32xbf16>, vector<32x128xbf16>, vector<2x128xf32> -> vector<2x128xf32>
    %172 = arith.addf %169, %171 : vector<2x128xf32>
    %173 = vector.extract_strided_slice %172 {offsets = [0, 0], sizes = [2, 32], strides = [1, 1]} : vector<2x128xf32> to vector<2x32xf32>
    %174 = arith.negf %173 : vector<2x32xf32>
    %175 = math.exp %174 : vector<2x32xf32>
    %cst_73 = arith.constant 1.000000e+00 : f32
    %176 = vector.broadcast %cst_73 : f32 to vector<2x32xf32>
    %177 = arith.addf %176, %175 : vector<2x32xf32>
    %178 = arith.divf %176, %177 : vector<2x32xf32>
    %179 = vector.extract_strided_slice %172 {offsets = [0, 32], sizes = [2, 32], strides = [1, 1]} : vector<2x128xf32> to vector<2x32xf32>
    %180 = arith.negf %179 : vector<2x32xf32>
    %181 = math.exp %180 : vector<2x32xf32>
    %cst_74 = arith.constant 1.000000e+00 : f32
    %182 = vector.broadcast %cst_74 : f32 to vector<2x32xf32>
    %183 = arith.addf %182, %181 : vector<2x32xf32>
    %184 = arith.divf %182, %183 : vector<2x32xf32>
    %185 = vector.extract_strided_slice %172 {offsets = [0, 64], sizes = [2, 32], strides = [1, 1]} : vector<2x128xf32> to vector<2x32xf32>
    %186 = math.tanh %185 : vector<2x32xf32>
    %187 = vector.extract_strided_slice %172 {offsets = [0, 96], sizes = [2, 32], strides = [1, 1]} : vector<2x128xf32> to vector<2x32xf32>
    %188 = arith.negf %187 : vector<2x32xf32>
    %189 = math.exp %188 : vector<2x32xf32>
    %cst_75 = arith.constant 1.000000e+00 : f32
    %190 = vector.broadcast %cst_75 : f32 to vector<2x32xf32>
    %191 = arith.addf %190, %189 : vector<2x32xf32>
    %192 = arith.divf %190, %191 : vector<2x32xf32>
    %193 = arith.mulf %184, %165 : vector<2x32xf32>
    %194 = arith.mulf %178, %186 : vector<2x32xf32>
    %195 = arith.addf %193, %194 : vector<2x32xf32>
    %196 = math.tanh %195 : vector<2x32xf32>
    %197 = arith.mulf %192, %196 : vector<2x32xf32>
    %c0_76 = arith.constant 0 : index
    %c0_77 = arith.constant 0 : index
    %198 = vector.load %arg9[%c0_76, %c0_77] : memref<2x32xf32, #tpu.memory_space<vmem>>, vector<2x32xf32>
    tpu.vector_store %arg9[%c0_76, %c0_77], %197 {strides = array<i32>} : memref<2x32xf32, #tpu.memory_space<vmem>>, vector<2x32xf32>,
    %c0_78 = arith.constant 0 : index
    %c0_79 = arith.constant 0 : index
    %199 = vector.load %arg10[%c0_78, %c0_79] : memref<2x32xf32, #tpu.memory_space<vmem>>, vector<2x32xf32>
    tpu.vector_store %arg10[%c0_78, %c0_79], %195 {strides = array<i32>} : memref<2x32xf32, #tpu.memory_space<vmem>>, vector<2x32xf32>,
    %200 = vector.shape_cast %197 : vector<2x32xf32> to vector<2x1x32xf32>
    %201 = arith.truncf %200 : vector<2x1x32xf32> to vector<2x1x32xbf16>
    %c0_80 = arith.constant 0 : index
    %202 = arith.index_cast %c4_i32 : i32 to index
    %c0_81 = arith.constant 0 : index
    %203 = vector.load %arg6[%c0_80, %202, %c0_81] : memref<2x7x32xbf16, #tpu.memory_space<vmem>>, vector<2x1x32xbf16>
    tpu.vector_store %arg6[%c0_80, %202, %c0_81], %201 {strides = array<i32>} : memref<2x7x32xbf16, #tpu.memory_space<vmem>>, vector<2x1x32xbf16>,
    %c5_i32 = arith.constant 5 : i32
    %c0_82 = arith.constant 0 : index
    %c0_83 = arith.constant 0 : index
    %204 = vector.load %arg9[%c0_82, %c0_83] : memref<2x32xf32, #tpu.memory_space<vmem>>, vector<2x32xf32>
    %c0_84 = arith.constant 0 : index
    %c0_85 = arith.constant 0 : index
    %205 = vector.load %arg10[%c0_84, %c0_85] : memref<2x32xf32, #tpu.memory_space<vmem>>, vector<2x32xf32>
    %206 = arith.index_cast %c5_i32 : i32 to index
    %c0_86 = arith.constant 0 : index
    %c0_87 = arith.constant 0 : index
    %207 = vector.load %arg2[%206, %c0_86, %c0_87] : memref<7x2x128xbf16, #tpu.memory_space<vmem>>, vector<1x2x128xbf16>
    %208 = vector.shape_cast %207 : vector<1x2x128xbf16> to vector<2x128xbf16>
    %209 = arith.extf %208 : vector<2x128xbf16> to vector<2x128xf32>
    %210 = arith.truncf %204 : vector<2x32xf32> to vector<2x32xbf16>
    %cst_88 = arith.constant dense<0.000000e+00> : vector<2x128xf32>
    %211 = tpu.matmul %210, %3, %cst_88 {dimension_numbers = #tpu.dot_dimension_numbers<[1], [0], [0], [1], [0, 0, 1, 1], [], []>} : vector<2x32xbf16>, vector<32x128xbf16>, vector<2x128xf32> -> vector<2x128xf32>
    %212 = arith.addf %209, %211 : vector<2x128xf32>
    %213 = vector.extract_strided_slice %212 {offsets = [0, 0], sizes = [2, 32], strides = [1, 1]} : vector<2x128xf32> to vector<2x32xf32>
    %214 = arith.negf %213 : vector<2x32xf32>
    %215 = math.exp %214 : vector<2x32xf32>
    %cst_89 = arith.constant 1.000000e+00 : f32
    %216 = vector.broadcast %cst_89 : f32 to vector<2x32xf32>
    %217 = arith.addf %216, %215 : vector<2x32xf32>
    %218 = arith.divf %216, %217 : vector<2x32xf32>
    %219 = vector.extract_strided_slice %212 {offsets = [0, 32], sizes = [2, 32], strides = [1, 1]} : vector<2x128xf32> to vector<2x32xf32>
    %220 = arith.negf %219 : vector<2x32xf32>
    %221 = math.exp %220 : vector<2x32xf32>
    %cst_90 = arith.constant 1.000000e+00 : f32
    %222 = vector.broadcast %cst_90 : f32 to vector<2x32xf32>
    %223 = arith.addf %222, %221 : vector<2x32xf32>
    %224 = arith.divf %222, %223 : vector<2x32xf32>
    %225 = vector.extract_strided_slice %212 {offsets = [0, 64], sizes = [2, 32], strides = [1, 1]} : vector<2x128xf32> to vector<2x32xf32>
    %226 = math.tanh %225 : vector<2x32xf32>
    %227 = vector.extract_strided_slice %212 {offsets = [0, 96], sizes = [2, 32], strides = [1, 1]} : vector<2x128xf32> to vector<2x32xf32>
    %228 = arith.negf %227 : vector<2x32xf32>
    %229 = math.exp %228 : vector<2x32xf32>
    %cst_91 = arith.constant 1.000000e+00 : f32
    %230 = vector.broadcast %cst_91 : f32 to vector<2x32xf32>
    %231 = arith.addf %230, %229 : vector<2x32xf32>
    %232 = arith.divf %230, %231 : vector<2x32xf32>
    %233 = arith.mulf %224, %205 : vector<2x32xf32>
    %234 = arith.mulf %218, %226 : vector<2x32xf32>
    %235 = arith.addf %233, %234 : vector<2x32xf32>
    %236 = math.tanh %235 : vector<2x32xf32>
    %237 = arith.mulf %232, %236 : vector<2x32xf32>
    %c0_92 = arith.constant 0 : index
    %c0_93 = arith.constant 0 : index
    %238 = vector.load %arg9[%c0_92, %c0_93] : memref<2x32xf32, #tpu.memory_space<vmem>>, vector<2x32xf32>
    tpu.vector_store %arg9[%c0_92, %c0_93], %237 {strides = array<i32>} : memref<2x32xf32, #tpu.memory_space<vmem>>, vector<2x32xf32>,
    %c0_94 = arith.constant 0 : index
    %c0_95 = arith.constant 0 : index
    %239 = vector.load %arg10[%c0_94, %c0_95] : memref<2x32xf32, #tpu.memory_space<vmem>>, vector<2x32xf32>
    tpu.vector_store %arg10[%c0_94, %c0_95], %235 {strides = array<i32>} : memref<2x32xf32, #tpu.memory_space<vmem>>, vector<2x32xf32>,
    %240 = vector.shape_cast %237 : vector<2x32xf32> to vector<2x1x32xf32>
    %241 = arith.truncf %240 : vector<2x1x32xf32> to vector<2x1x32xbf16>
    %c0_96 = arith.constant 0 : index
    %242 = arith.index_cast %c5_i32 : i32 to index
    %c0_97 = arith.constant 0 : index
    %243 = vector.load %arg6[%c0_96, %242, %c0_97] : memref<2x7x32xbf16, #tpu.memory_space<vmem>>, vector<2x1x32xbf16>
    tpu.vector_store %arg6[%c0_96, %242, %c0_97], %241 {strides = array<i32>} : memref<2x7x32xbf16, #tpu.memory_space<vmem>>, vector<2x1x32xbf16>,
    %c6_i32 = arith.constant 6 : i32
    %c0_98 = arith.constant 0 : index
    %c0_99 = arith.constant 0 : index
    %244 = vector.load %arg9[%c0_98, %c0_99] : memref<2x32xf32, #tpu.memory_space<vmem>>, vector<2x32xf32>
    %c0_100 = arith.constant 0 : index
    %c0_101 = arith.constant 0 : index
    %245 = vector.load %arg10[%c0_100, %c0_101] : memref<2x32xf32, #tpu.memory_space<vmem>>, vector<2x32xf32>
    %246 = arith.index_cast %c6_i32 : i32 to index
    %c0_102 = arith.constant 0 : index
    %c0_103 = arith.constant 0 : index
    %247 = vector.load %arg2[%246, %c0_102, %c0_103] : memref<7x2x128xbf16, #tpu.memory_space<vmem>>, vector<1x2x128xbf16>
    %248 = vector.shape_cast %247 : vector<1x2x128xbf16> to vector<2x128xbf16>
    %249 = arith.extf %248 : vector<2x128xbf16> to vector<2x128xf32>
    %250 = arith.truncf %244 : vector<2x32xf32> to vector<2x32xbf16>
    %cst_104 = arith.constant dense<0.000000e+00> : vector<2x128xf32>
    %251 = tpu.matmul %250, %3, %cst_104 {dimension_numbers = #tpu.dot_dimension_numbers<[1], [0], [0], [1], [0, 0, 1, 1], [], []>} : vector<2x32xbf16>, vector<32x128xbf16>, vector<2x128xf32> -> vector<2x128xf32>
    %252 = arith.addf %249, %251 : vector<2x128xf32>
    %253 = vector.extract_strided_slice %252 {offsets = [0, 0], sizes = [2, 32], strides = [1, 1]} : vector<2x128xf32> to vector<2x32xf32>
    %254 = arith.negf %253 : vector<2x32xf32>
    %255 = math.exp %254 : vector<2x32xf32>
    %cst_105 = arith.constant 1.000000e+00 : f32
    %256 = vector.broadcast %cst_105 : f32 to vector<2x32xf32>
    %257 = arith.addf %256, %255 : vector<2x32xf32>
    %258 = arith.divf %256, %257 : vector<2x32xf32>
    %259 = vector.extract_strided_slice %252 {offsets = [0, 32], sizes = [2, 32], strides = [1, 1]} : vector<2x128xf32> to vector<2x32xf32>
    %260 = arith.negf %259 : vector<2x32xf32>
    %261 = math.exp %260 : vector<2x32xf32>
    %cst_106 = arith.constant 1.000000e+00 : f32
    %262 = vector.broadcast %cst_106 : f32 to vector<2x32xf32>
    %263 = arith.addf %262, %261 : vector<2x32xf32>
    %264 = arith.divf %262, %263 : vector<2x32xf32>
    %265 = vector.extract_strided_slice %252 {offsets = [0, 64], sizes = [2, 32], strides = [1, 1]} : vector<2x128xf32> to vector<2x32xf32>
    %266 = math.tanh %265 : vector<2x32xf32>
    %267 = vector.extract_strided_slice %252 {offsets = [0, 96], sizes = [2, 32], strides = [1, 1]} : vector<2x128xf32> to vector<2x32xf32>
    %268 = arith.negf %267 : vector<2x32xf32>
    %269 = math.exp %268 : vector<2x32xf32>
    %cst_107 = arith.constant 1.000000e+00 : f32
    %270 = vector.broadcast %cst_107 : f32 to vector<2x32xf32>
    %271 = arith.addf %270, %269 : vector<2x32xf32>
    %272 = arith.divf %270, %271 : vector<2x32xf32>
    %273 = arith.mulf %264, %245 : vector<2x32xf32>
    %274 = arith.mulf %258, %266 : vector<2x32xf32>
    %275 = arith.addf %273, %274 : vector<2x32xf32>
    %276 = math.tanh %275 : vector<2x32xf32>
    %277 = arith.mulf %272, %276 : vector<2x32xf32>
    %c0_108 = arith.constant 0 : index
    %c0_109 = arith.constant 0 : index
    %278 = vector.load %arg9[%c0_108, %c0_109] : memref<2x32xf32, #tpu.memory_space<vmem>>, vector<2x32xf32>
    tpu.vector_store %arg9[%c0_108, %c0_109], %277 {strides = array<i32>} : memref<2x32xf32, #tpu.memory_space<vmem>>, vector<2x32xf32>,
    %c0_110 = arith.constant 0 : index
    %c0_111 = arith.constant 0 : index
    %279 = vector.load %arg10[%c0_110, %c0_111] : memref<2x32xf32, #tpu.memory_space<vmem>>, vector<2x32xf32>
    tpu.vector_store %arg10[%c0_110, %c0_111], %275 {strides = array<i32>} : memref<2x32xf32, #tpu.memory_space<vmem>>, vector<2x32xf32>,
    %280 = vector.shape_cast %277 : vector<2x32xf32> to vector<2x1x32xf32>
    %281 = arith.truncf %280 : vector<2x1x32xf32> to vector<2x1x32xbf16>
    %c0_112 = arith.constant 0 : index
    %282 = arith.index_cast %c6_i32 : i32 to index
    %c0_113 = arith.constant 0 : index
    %283 = vector.load %arg6[%c0_112, %282, %c0_113] : memref<2x7x32xbf16, #tpu.memory_space<vmem>>, vector<2x1x32xbf16>
    tpu.vector_store %arg6[%c0_112, %282, %c0_113], %281 {strides = array<i32>} : memref<2x7x32xbf16, #tpu.memory_space<vmem>>, vector<2x1x32xbf16>,
    %c7_i32 = arith.constant 7 : i32
    %c0_114 = arith.constant 0 : index
    %c0_115 = arith.constant 0 : index
    %284 = vector.load %arg9[%c0_114, %c0_115] : memref<2x32xf32, #tpu.memory_space<vmem>>, vector<2x32xf32>
    %c0_116 = arith.constant 0 : index
    %c0_117 = arith.constant 0 : index
    %285 = vector.load %arg7[%c0_116, %c0_117] : memref<2x32xf32, #tpu.memory_space<vmem>>, vector<2x32xf32>
    tpu.vector_store %arg7[%c0_116, %c0_117], %284 {strides = array<i32>} : memref<2x32xf32, #tpu.memory_space<vmem>>, vector<2x32xf32>,
    %c0_118 = arith.constant 0 : index
    %c0_119 = arith.constant 0 : index
    %286 = vector.load %arg10[%c0_118, %c0_119] : memref<2x32xf32, #tpu.memory_space<vmem>>, vector<2x32xf32>
    %c0_120 = arith.constant 0 : index
    %c0_121 = arith.constant 0 : index
    %287 = vector.load %arg8[%c0_120, %c0_121] : memref<2x32xf32, #tpu.memory_space<vmem>>, vector<2x32xf32>
    tpu.vector_store %arg8[%c0_120, %c0_121], %286 {strides = array<i32>} : memref<2x32xf32, #tpu.memory_space<vmem>>, vector<2x32xf32>,
    return
  }
  func.func @transform_0(%arg0: i32, %arg1: i32) -> (i32, i32, i32) {
    %c0_i32 = arith.constant 0 : i32
    %c0_i32_0 = arith.constant 0 : i32
    return %arg1, %arg0, %c0_i32 : i32, i32, i32
  }
  func.func @transform_1(%arg0: i32, %arg1: i32) -> (i32, i32) {
    %c0_i32 = arith.constant 0 : i32
    %c0_i32_0 = arith.constant 0 : i32
    return %arg0, %c0_i32 : i32, i32
  }
  func.func @transform_2(%arg0: i32, %arg1: i32) -> (i32, i32) {
    %c0_i32 = arith.constant 0 : i32
    %c0_i32_0 = arith.constant 0 : i32
    return %arg0, %c0_i32 : i32, i32
  }
  func.func @transform_3(%arg0: i32, %arg1: i32) -> (i32, i32) {
    %c0_i32 = arith.constant 0 : i32
    %c0_i32_0 = arith.constant 0 : i32
    %c0_i32_1 = arith.constant 0 : i32
    return %c0_i32, %c0_i32_0 : i32, i32
  }
  func.func @transform_4(%arg0: i32, %arg1: i32) -> (i32, i32, i32) {
    %c0_i32 = arith.constant 0 : i32
    %c0_i32_0 = arith.constant 0 : i32
    return %arg0, %arg1, %c0_i32 : i32, i32, i32
  }
  func.func @transform_5(%arg0: i32, %arg1: i32) -> (i32, i32) {
    %c0_i32 = arith.constant 0 : i32
    %c0_i32_0 = arith.constant 0 : i32
    return %arg0, %c0_i32 : i32, i32
  }
  func.func @transform_6(%arg0: i32, %arg1: i32) -> (i32, i32) {
    %c0_i32 = arith.constant 0 : i32
    %c0_i32_0 = arith.constant 0 : i32
    return %arg0, %c0_i32 : i32, i32
  }
}

</mosaic_0001>

<llo_original>
// kernel: baseline_seq2seq_forward.9
$region0: #{baseline_seq2seq_forward.9}
  #allocation0 [shape = 'u32[]', space=smem, size = 0x4, offset = 0x4, fixed_abs, tag = 'smem constant byte address 0x4 - core index']
  #allocation1 [shape = 'u32[144,128]{1,0:T(1,128)}', space=vmem, size = 0x12000, scoped, tag = 'internal scratch']
  #allocation2 [shape = 'f32[14,60]{1,0:T(8,128)}', space=vmem, size = 0x2000, scoped, tag = 'scratch operand']
  %s0 = inlined_call_operand.vmem [shape: bf16[14,32], index: 0, kind: input, shape index: {}]
  %s1 = inlined_call_operand.vmem [shape: bf16[32,60], index: 1, kind: input, shape index: {}]
  %s2 = inlined_call_operand.vmem [shape: f32[1,60], index: 2, kind: input, shape index: {}]
  %s3 = inlined_call_operand.vmem [shape: f32[14,60], index: 3, kind: output, shape index: {}]
  %s4 = sld [smem:[#allocation0]]
  $region30: #{baseline_seq2seq_forward.9} parent=0
    _
  %s6 = ssub.s32 1, %s4
  %s7 = scalar_select 0, %s6, %s4
  // Predicated region
  $region2: #{baseline_seq2seq_forward.9} parent=0 // pred_check
    _
  $region3: #{baseline_seq2seq_forward.9} parent=0 // pred_check_branch
    %9 = sbr.rel (0) target = $region5
  $region4: #{baseline_seq2seq_forward.9} parent=0 // pred_region
    _
  $region5: #{baseline_seq2seq_forward.9} parent=0 // pred_fallthru
    _
  // Predicated region
  $region6: #{baseline_seq2seq_forward.9} parent=0 // pred_check
    _
  $region7: #{baseline_seq2seq_forward.9} parent=0 // pred_check_branch
    %11 = sbr.rel (0) target = $region9
  $region8: #{baseline_seq2seq_forward.9} parent=0 // pred_region
    _
  $region9: #{baseline_seq2seq_forward.9} parent=0 // pred_fallthru
    _
  // Predicated region
  $region10: #{baseline_seq2seq_forward.9} parent=0 // pred_check
    _
  $region11: #{baseline_seq2seq_forward.9} parent=0 // pred_check_branch
    %13 = sbr.rel (0) target = $region13
  $region12: #{baseline_seq2seq_forward.9} parent=0 // pred_region
    _
  $region13: #{baseline_seq2seq_forward.9} parent=0 // pred_fallthru
    _
  %p15 = scmp.eq.s32.totalorder 0, 0
  // Predicated region
  $region14: #{baseline_seq2seq_forward.9} parent=0 // pred_check
    %p16 = pneg %p15
  $region15: #{baseline_seq2seq_forward.9} parent=0 // pred_check_branch
    %18 = sbr.rel (%p16) target = $region17
  $region16: #{baseline_seq2seq_forward.9} parent=0 // pred_region
    %vm19 = vcmask 490496
    %20 = vst.msk [vmem:[#allocation2] sm:$0xff] %vm19, 0.0
    %vm21 = vcmask 488448
    %22 = vst.msk [vmem:[#allocation2 + $0x8] sm:$0x3f] %vm21, 0.0
  $region17: #{baseline_seq2seq_forward.9} parent=0 // pred_fallthru
    _
  %v23 = vld [vmem:[#allocation2] sm:$0xff]
  %v24 = vld [vmem:[#allocation2 + $0x8] sm:$0x3f]
  %v25 = vld [vmem:[%s0] sm:$0xf]
  %v26 = vld [vmem:[%s0 + $0x4] sm:$0x7]
  %v27 = vld [vmem:[%s1] sm:$0xf]
  %v28 = vld [vmem:[%s1 + $0x4] sm:$0xf]
  %v29 = vld [vmem:[%s1 + $0x8] sm:$0xf]
  %v30 = vld [vmem:[%s1 + $0xc] sm:$0xf]
  %v33 = vunpack.c.l.b16 %v25
  %v34 = vunpack.c.l.b16 %v26
  %v35 = vpack.c.b16 %v34, %v33
  %v40 = vunpack.c.l.b16 %v27
  %v41 = vunpack.c.l.b16 %v28
  %v42 = vunpack.c.l.b16 %v29
  %v43 = vunpack.c.l.b16 %v30
  %v44 = vpack.c.b16 %v41, %v40
  %v45 = vpack.c.b16 %v43, %v42
  %vm48 = vcmask 261120
  %v50 = vsel %vm48, %v35, 0
  %52 = vmatprep.subr.bf16.mxu0 0
  %53 = vmatpush1.bf16.msra.mxu0 0
  %54 = vmatprep.subr.bf16.mxu0 0
  %55 = vmatpush1.bf16.msra.mxu0 0
  %56 = vmatprep.subr.bf16.mxu0 0
  %57 = vmatpush1.bf16.msra.mxu0 0
  %58 = vmatprep.subr.bf16.mxu0 0
  %59 = vmatpush1.bf16.msra.mxu0 0
  %60 = vmatprep.subr.bf16.mxu0 0
  %61 = vmatpush1.bf16.msra.mxu0 0
  %62 = vmatprep.subr.bf16.mxu0 0
  %63 = vmatpush1.bf16.msra.mxu0 0
  %64 = vmatprep.subr.bf16.mxu0 0
  %65 = vmatpush1.bf16.msra.mxu0 %v45
  %66 = vmatprep.subr.bf16.mxu0 0
  %67 = vmatpush1.bf16.msra.mxu0 %v44
  %68 = vmatprep.subr.bf16.mxu0 0
  %69 = vmatpush2.bf16.msra.mxu0 0
  %70 = vmatprep.subr.bf16.mxu0 0
  %71 = vmatpush2.bf16.msra.mxu0 0
  %72 = vmatprep.subr.bf16.mxu0 0
  %73 = vmatpush2.bf16.msra.mxu0 0
  %74 = vmatprep.subr.bf16.mxu0 0
  %75 = vmatpush2.bf16.msra.mxu0 0
  %76 = vmatprep.subr.bf16.mxu0 0
  %77 = vmatpush2.bf16.msra.mxu0 0
  %78 = vmatprep.subr.bf16.mxu0 0
  %79 = vmatpush2.bf16.msra.mxu0 0
  %80 = vmatprep.subr.bf16.mxu0 0
  %81 = vmatpush2.bf16.msra.mxu0 0
  %82 = vmatprep.subr.bf16.mxu0 0
  %83 = vmatpush2.bf16.msra.mxu0 0
  %84 = vmatprep.mubr.bf16.mxu0 0
  %85 = vmatmul.mubr.bf16.gmra.mxu0 %v50
  %v86 = vpop.f32.mrf.mxu0
  %v87 = vadd.f32 0.0, %v86
  %v88 = vpop.f32.mrf.mxu0
  %v89 = vpop.f32.mrf.mxu0
  %v90 = vadd.f32 0.0, %v89
  %v91 = vpop.f32.mrf.mxu0
  %92 = vdwg.mxu0
  %v93 = vadd.f32 %v23, %v87
  %v94 = vadd.f32 %v24, %v90
  %vm95 = vcmask 490496
  %96 = vst.msk [vmem:[#allocation2] sm:$0xff] %vm95, %v93
  %vm97 = vcmask 488448
  %98 = vst.msk [vmem:[#allocation2 + $0x8] sm:$0x3f] %vm97, %v94
  // Predicated region
  $region18: #{baseline_seq2seq_forward.9} parent=0 // pred_check
    %p99 = pneg %p15
  $region19: #{baseline_seq2seq_forward.9} parent=0 // pred_check_branch
    %101 = sbr.rel (%p99) target = $region21
  $region20: #{baseline_seq2seq_forward.9} parent=0 // pred_region
    %v102 = vld [vmem:[#allocation2] sm:$0xff]
    %v103 = vld [vmem:[#allocation2 + $0x8] sm:$0x3f]
    %v104 = vld [vmem:[%s2] sm:$0x1]
    %v106 = vlaneseq
    %v107 = vshrl.u32 %v106, 7
    %v108 = vsub.s32 0, %v107
    %v109 = vrot.slane %v104, %v108
    %v111 = vadd.f32 %v102, %v109
    %v112 = vadd.f32 %v103, %v109
    %113 = vst.msk [vmem:[%s3] sm:$0xff] %vm95, %v111
    %114 = vst.msk [vmem:[%s3 + $0x8] sm:$0x3f] %vm97, %v112
  $region21: #{baseline_seq2seq_forward.9} parent=0 // pred_fallthru
    _
  // Predicated region
  $region22: #{baseline_seq2seq_forward.9} parent=0 // pred_check
    _
  $region23: #{baseline_seq2seq_forward.9} parent=0 // pred_check_branch
    %116 = sbr.rel (0) target = $region25
  $region24: #{baseline_seq2seq_forward.9} parent=0 // pred_region
    _
  $region25: #{baseline_seq2seq_forward.9} parent=0 // pred_fallthru
    _
  // Predicated region
  $region26: #{baseline_seq2seq_forward.9} parent=0 // pred_check
    _
  $region27: #{baseline_seq2seq_forward.9} parent=0 // pred_check_branch
    %118 = sbr.rel (0) target = $region29
  $region28: #{baseline_seq2seq_forward.9} parent=0 // pred_region
    _
  $region29: #{baseline_seq2seq_forward.9} parent=0 // pred_fallthru
    _

// kernel: baseline_seq2seq_forward.5
$region0: #{baseline_seq2seq_forward.5}
  #allocation0 [shape = 'u32[]', space=smem, size = 0x4, offset = 0x4, fixed_abs, tag = 'smem constant byte address 0x4 - core index']
  #allocation1 [shape = 'u32[144,128]{1,0:T(1,128)}', space=vmem, size = 0x12000, scoped, tag = 'internal scratch']
  #allocation2 [shape = 'f32[50,128]{1,0:T(8,128)}', space=vmem, size = 0x7000, scoped, tag = 'scratch operand']
  %s0 = inlined_call_operand.vmem [shape: bf16[50,32], index: 0, kind: input, shape index: {}]
  %s1 = inlined_call_operand.vmem [shape: bf16[32,128], index: 1, kind: input, shape index: {}]
  %s2 = inlined_call_operand.vmem [shape: f32[1,128], index: 2, kind: input, shape index: {}]
  %s3 = inlined_call_operand.vmem [shape: bf16[50,128], index: 3, kind: output, shape index: {}]
  %s4 = sld [smem:[#allocation0]]
  $region30: #{baseline_seq2seq_forward.5} parent=0
    _
  %s6 = ssub.s32 1, %s4
  %s7 = scalar_select 0, %s6, %s4
  // Predicated region
  $region2: #{baseline_seq2seq_forward.5} parent=0 // pred_check
    _
  $region3: #{baseline_seq2seq_forward.5} parent=0 // pred_check_branch
    %9 = sbr.rel (0) target = $region5
  $region4: #{baseline_seq2seq_forward.5} parent=0 // pred_region
    _
  $region5: #{baseline_seq2seq_forward.5} parent=0 // pred_fallthru
    _
  // Predicated region
  $region6: #{baseline_seq2seq_forward.5} parent=0 // pred_check
    _
  $region7: #{baseline_seq2seq_forward.5} parent=0 // pred_check_branch
    %11 = sbr.rel (0) target = $region9
  $region8: #{baseline_seq2seq_forward.5} parent=0 // pred_region
    _
  $region9: #{baseline_seq2seq_forward.5} parent=0 // pred_fallthru
    _
  // Predicated region
  $region10: #{baseline_seq2seq_forward.5} parent=0 // pred_check
    _
  $region11: #{baseline_seq2seq_forward.5} parent=0 // pred_check_branch
    %13 = sbr.rel (0) target = $region13
  $region12: #{baseline_seq2seq_forward.5} parent=0 // pred_region
    _
  $region13: #{baseline_seq2seq_forward.5} parent=0 // pred_fallthru
    _
  %p15 = scmp.eq.s32.totalorder 0, 0
  // Predicated region
  $region14: #{baseline_seq2seq_forward.5} parent=0 // pred_check
    %p16 = pneg %p15
  $region15: #{baseline_seq2seq_forward.5} parent=0 // pred_check_branch
    %18 = sbr.rel (%p16) target = $region17
  $region16: #{baseline_seq2seq_forward.5} parent=0 // pred_region
    %19 = vst [vmem:[#allocation2] sm:$0xff] 0.0
    %20 = vst [vmem:[#allocation2 + $0x8] sm:$0xff] 0.0
    %21 = vst [vmem:[#allocation2 + $0x10] sm:$0xff] 0.0
    %22 = vst [vmem:[#allocation2 + $0x18] sm:$0xff] 0.0
    %23 = vst [vmem:[#allocation2 + $0x20] sm:$0xff] 0.0
    %24 = vst [vmem:[#allocation2 + $0x28] sm:$0xff] 0.0
    %25 = vst [vmem:[#allocation2 + $0x30] sm:$0x3] 0.0
  $region17: #{baseline_seq2seq_forward.5} parent=0 // pred_fallthru
    _
  %v26 = vld [vmem:[#allocation2] sm:$0xff]
  %v27 = vld [vmem:[#allocation2 + $0x8] sm:$0xff]
  %v28 = vld [vmem:[#allocation2 + $0x10] sm:$0xff]
  %v29 = vld [vmem:[#allocation2 + $0x18] sm:$0xff]
  %v30 = vld [vmem:[#allocation2 + $0x20] sm:$0xff]
  %v31 = vld [vmem:[#allocation2 + $0x28] sm:$0xff]
  %v32 = vld [vmem:[#allocation2 + $0x30] sm:$0x3]
  %v33 = vld [vmem:[%s0] sm:$0xf]
  %v34 = vld [vmem:[%s0 + $0x4] sm:$0xf]
  %v35 = vld [vmem:[%s0 + $0x8] sm:$0xf]
  %v36 = vld [vmem:[%s0 + $0xc] sm:$0xf]
  %v37 = vld [vmem:[%s0 + $0x10] sm:$0xf]
  %v38 = vld [vmem:[%s0 + $0x14] sm:$0xf]
  %v39 = vld [vmem:[%s0 + $0x18] sm:$0x1]
  %v40 = vld [vmem:[%s1] sm:$0xf]
  %v41 = vld [vmem:[%s1 + $0x4] sm:$0xf]
  %v42 = vld [vmem:[%s1 + $0x8] sm:$0xf]
  %v43 = vld [vmem:[%s1 + $0xc] sm:$0xf]
  %v51 = vunpack.c.l.b16 %v33
  %v52 = vunpack.c.l.b16 %v34
  %v53 = vunpack.c.l.b16 %v35
  %v54 = vunpack.c.l.b16 %v36
  %v55 = vunpack.c.l.b16 %v37
  %v56 = vunpack.c.l.b16 %v38
  %v57 = vunpack.c.l.b16 %v39
  %v58 = vpack.c.b16 %v52, %v51
  %v59 = vpack.c.b16 %v54, %v53
  %v60 = vpack.c.b16 %v56, %v55
  %v61 = vpack.c.b16 %v57, %v57
  %v66 = vunpack.c.l.b16 %v40
  %v67 = vunpack.c.l.b16 %v41
  %v68 = vunpack.c.l.b16 %v42
  %v69 = vunpack.c.l.b16 %v43
  %v70 = vpack.c.b16 %v67, %v66
  %v71 = vpack.c.b16 %v69, %v68
  %vm74 = vcmask 261120
  %v76 = vsel %vm74, %v58, 0
  %v79 = vsel %vm74, %v59, 0
  %v82 = vsel %vm74, %v60, 0
  %v85 = vsel %vm74, %v61, 0
  %87 = vmatprep.subr.bf16.mxu0 0
  %88 = vmatpush1.bf16.msra.mxu0 0
  %89 = vmatprep.subr.bf16.mxu0 0
  %90 = vmatpush1.bf16.msra.mxu0 0
  %91 = vmatprep.subr.bf16.mxu0 0
  %92 = vmatpush1.bf16.msra.mxu0 0
  %93 = vmatprep.subr.bf16.mxu0 0
  %94 = vmatpush1.bf16.msra.mxu0 0
  %95 = vmatprep.subr.bf16.mxu0 0
  %96 = vmatpush1.bf16.msra.mxu0 0
  %97 = vmatprep.subr.bf16.mxu0 0
  %98 = vmatpush1.bf16.msra.mxu0 0
  %99 = vmatprep.subr.bf16.mxu0 0
  %100 = vmatpush1.bf16.msra.mxu0 %v71
  %101 = vmatprep.subr.bf16.mxu0 0
  %102 = vmatpush1.bf16.msra.mxu0 %v70
  %103 = vmatprep.subr.bf16.mxu0 0
  %104 = vmatpush2.bf16.msra.mxu0 0
  %105 = vmatprep.subr.bf16.mxu0 0
  %106 = vmatpush2.bf16.msra.mxu0 0
  %107 = vmatprep.subr.bf16.mxu0 0
  %108 = vmatpush2.bf16.msra.mxu0 0
  %109 = vmatprep.subr.bf16.mxu0 0
  %110 = vmatpush2.bf16.msra.mxu0 0
  %111 = vmatprep.subr.bf16.mxu0 0
  %112 = vmatpush2.bf16.msra.mxu0 0
  %113 = vmatprep.subr.bf16.mxu0 0
  %114 = vmatpush2.bf16.msra.mxu0 0
  %115 = vmatprep.subr.bf16.mxu0 0
  %116 = vmatpush2.bf16.msra.mxu0 0
  %117 = vmatprep.subr.bf16.mxu0 0
  %118 = vmatpush2.bf16.msra.mxu0 0
  %119 = vmatprep.mubr.bf16.mxu0 0
  %120 = vmatmul.mubr.bf16.gmra.mxu0 %v76
  %v121 = vpop.f32.mrf.mxu0
  %v122 = vadd.f32 0.0, %v121
  %v123 = vpop.f32.mrf.mxu0
  %v124 = vpop.f32.mrf.mxu0
  %v125 = vadd.f32 0.0, %v124
  %v126 = vpop.f32.mrf.mxu0
  %127 = vmatprep.mubr.bf16.mxu0 0
  %128 = vmatmul.mubr.bf16.gmra.mxu0 %v79
  %v129 = vpop.f32.mrf.mxu0
  %v130 = vadd.f32 0.0, %v129
  %v131 = vpop.f32.mrf.mxu0
  %v132 = vpop.f32.mrf.mxu0
  %v133 = vadd.f32 0.0, %v132
  %v134 = vpop.f32.mrf.mxu0
  %135 = vmatprep.mubr.bf16.mxu0 0
  %136 = vmatmul.mubr.bf16.gmra.mxu0 %v82
  %v137 = vpop.f32.mrf.mxu0
  %v138 = vadd.f32 0.0, %v137
  %v139 = vpop.f32.mrf.mxu0
  %v140 = vpop.f32.mrf.mxu0
  %v141 = vadd.f32 0.0, %v140
  %v142 = vpop.f32.mrf.mxu0
  %143 = vmatprep.mubr.bf16.mxu0 0
  %144 = vmatmul.mubr.bf16.gmra.mxu0 %v85
  %v145 = vpop.f32.mrf.mxu0
  %v146 = vadd.f32 0.0, %v145
  %v147 = vpop.f32.mrf.mxu0
  %v148 = vpop.f32.mrf.mxu0
  %v149 = vpop.f32.mrf.mxu0
  %150 = vdwg.mxu0
  %v151 = vadd.f32 %v26, %v122
  %v152 = vadd.f32 %v27, %v125
  %v153 = vadd.f32 %v28, %v130
  %v154 = vadd.f32 %v29, %v133
  %v155 = vadd.f32 %v30, %v138
  %v156 = vadd.f32 %v31, %v141
  %v157 = vadd.f32 %v32, %v146
  %158 = vst [vmem:[#allocation2] sm:$0xff] %v151
  %159 = vst [vmem:[#allocation2 + $0x8] sm:$0xff] %v152
  %160 = vst [vmem:[#allocation2 + $0x10] sm:$0xff] %v153
  %161 = vst [vmem:[#allocation2 + $0x18] sm:$0xff] %v154
  %162 = vst [vmem:[#allocation2 + $0x20] sm:$0xff] %v155
  %163 = vst [vmem:[#allocation2 + $0x28] sm:$0xff] %v156
  %164 = vst [vmem:[#allocation2 + $0x30] sm:$0x3] %v157
  // Predicated region
  $region18: #{baseline_seq2seq_forward.5} parent=0 // pred_check
    %p165 = pneg %p15
  $region19: #{baseline_seq2seq_forward.5} parent=0 // pred_check_branch
    %167 = sbr.rel (%p165) target = $region21
  $region20: #{baseline_seq2seq_forward.5} parent=0 // pred_region
    %v168 = vld [vmem:[#allocation2] sm:$0xff]
    %v169 = vld [vmem:[#allocation2 + $0x8] sm:$0xff]
    %v170 = vld [vmem:[#allocation2 + $0x10] sm:$0xff]
    %v171 = vld [vmem:[#allocation2 + $0x18] sm:$0xff]
    %v172 = vld [vmem:[#allocation2 + $0x20] sm:$0xff]
    %v173 = vld [vmem:[#allocation2 + $0x28] sm:$0xff]
    %v174 = vld [vmem:[#allocation2 + $0x30] sm:$0x3]
    %v175 = vld [vmem:[%s2] sm:$0x1]
    %v177 = vlaneseq
    %v178 = vshrl.u32 %v177, 7
    %v179 = vsub.s32 0, %v178
    %v180 = vrot.slane %v175, %v179
    %v182 = vadd.f32 %v168, %v180
    %v183 = vadd.f32 %v169, %v180
    %v184 = vadd.f32 %v170, %v180
    %v185 = vadd.f32 %v171, %v180
    %v186 = vadd.f32 %v172, %v180
    %v187 = vadd.f32 %v173, %v180
    %v188 = vadd.f32 %v174, %v180
    %v189 = vpack.c.bf16 %v183, %v182
    %v190 = vpack.c.bf16 %v185, %v184
    %v191 = vpack.c.bf16 %v187, %v186
    %v192 = vpack.c.bf16 %v188, %v188
    %v197 = vunpack.c.l.b16 %v189
    %v198 = vunpack.c.h.b16 %v189
    %v199 = vunpack.c.l.b16 %v190
    %v200 = vunpack.c.h.b16 %v190
    %v201 = vunpack.c.l.b16 %v191
    %v202 = vunpack.c.h.b16 %v191
    %v203 = vunpack.c.l.b16 %v192
    %v204 = vpack.c.b16 %v197, %v197
    %v205 = vpack.c.b16 %v198, %v198
    %v206 = vpack.c.b16 %v199, %v199
    %v207 = vpack.c.b16 %v200, %v200
    %v208 = vpack.c.b16 %v201, %v201
    %v209 = vpack.c.b16 %v202, %v202
    %v210 = vpack.c.b16 %v203, %v203
    %218 = vst [vmem:[%s3] sm:$0xf] %v204
    %219 = vst [vmem:[%s3 + $0x4] sm:$0xf] %v205
    %220 = vst [vmem:[%s3 + $0x8] sm:$0xf] %v206
    %221 = vst [vmem:[%s3 + $0xc] sm:$0xf] %v207
    %222 = vst [vmem:[%s3 + $0x10] sm:$0xf] %v208
    %223 = vst [vmem:[%s3 + $0x14] sm:$0xf] %v209
    %224 = vst [vmem:[%s3 + $0x18] sm:$0x1] %v210
  $region21: #{baseline_seq2seq_forward.5} parent=0 // pred_fallthru
    _
  // Predicated region
  $region22: #{baseline_seq2seq_forward.5} parent=0 // pred_check
    _
  $region23: #{baseline_seq2seq_forward.5} parent=0 // pred_check_branch
    %226 = sbr.rel (0) target = $region25
  $region24: #{baseline_seq2seq_forward.5} parent=0 // pred_region
    _
  $region25: #{baseline_seq2seq_forward.5} parent=0 // pred_fallthru
    _
  // Predicated region
  $region26: #{baseline_seq2seq_forward.5} parent=0 // pred_check
    _
  $region27: #{baseline_seq2seq_forward.5} parent=0 // pred_check_branch
    %228 = sbr.rel (0) target = $region29
  $region28: #{baseline_seq2seq_forward.5} parent=0 // pred_region
    _
  $region29: #{baseline_seq2seq_forward.5} parent=0 // pred_fallthru
    _

// kernel: baseline_seq2seq_forward.7
$region0: #{baseline_seq2seq_forward.7}
  #allocation0 [shape = 'u32[]', space=smem, size = 0x4, offset = 0x4, fixed_abs, tag = 'smem constant byte address 0x4 - core index']
  #allocation1 [shape = 'u32[144,128]{1,0:T(1,128)}', space=vmem, size = 0x12000, scoped, tag = 'internal scratch']
  #allocation2 [shape = 'f32[2,32]{1,0:T(2,128)}', space=vmem, size = 0x400, scoped, tag = 'scratch operand']
  #allocation3 [shape = 'f32[2,32]{1,0:T(2,128)}', space=vmem, size = 0x400, scoped, tag = 'scratch operand']
  %s0 = inlined_call_operand.vmem [shape: bf16[8,2,128], index: 0, kind: input, shape index: {}]
  %s1 = inlined_call_operand.vmem [shape: f32[2,32], index: 1, kind: input, shape index: {}, may-alias: {1,2}]
  %s2 = inlined_call_operand.vmem [shape: f32[2,32], index: 2, kind: input, shape index: {}, may-alias: {1,2}]
  %s3 = inlined_call_operand.vmem [shape: bf16[32,128], index: 3, kind: input, shape index: {}]
  %s4 = inlined_call_operand.vmem [shape: f32[2,32], index: 4, kind: output, shape index: {0}]
  %s5 = inlined_call_operand.vmem [shape: f32[2,32], index: 5, kind: output, shape index: {1}]
  %6 = xla_tuple %s4, %s5
  %s7 = sld [smem:[#allocation0]]
  $region38: #{baseline_seq2seq_forward.7} parent=0
    _
  %s9 = ssub.s32 1, %s7
  %s10 = scalar_select 0, %s9, %s7
  // Predicated region
  $region2: #{baseline_seq2seq_forward.7} parent=0 // pred_check
    _
  $region3: #{baseline_seq2seq_forward.7} parent=0 // pred_check_branch
    %12 = sbr.rel (0) target = $region5
  $region4: #{baseline_seq2seq_forward.7} parent=0 // pred_region
    _
  $region5: #{baseline_seq2seq_forward.7} parent=0 // pred_fallthru
    _
  // Predicated region
  $region6: #{baseline_seq2seq_forward.7} parent=0 // pred_check
    _
  $region7: #{baseline_seq2seq_forward.7} parent=0 // pred_check_branch
    %14 = sbr.rel (0) target = $region9
  $region8: #{baseline_seq2seq_forward.7} parent=0 // pred_region
    _
  $region9: #{baseline_seq2seq_forward.7} parent=0 // pred_fallthru
    _
  // Predicated region
  $region10: #{baseline_seq2seq_forward.7} parent=0 // pred_check
    _
  $region11: #{baseline_seq2seq_forward.7} parent=0 // pred_check_branch
    %16 = sbr.rel (0) target = $region13
  $region12: #{baseline_seq2seq_forward.7} parent=0 // pred_region
    _
  $region13: #{baseline_seq2seq_forward.7} parent=0 // pred_fallthru
    _
  // Predicated region
  $region14: #{baseline_seq2seq_forward.7} parent=0 // pred_check
    _
  $region15: #{baseline_seq2seq_forward.7} parent=0 // pred_check_branch
    %18 = sbr.rel (0) target = $region17
  $region16: #{baseline_seq2seq_forward.7} parent=0 // pred_region
    _
  $region17: #{baseline_seq2seq_forward.7} parent=0 // pred_fallthru
    _
  %p20 = scmp.eq.s32.totalorder 0, 0
  // Predicated region
  $region18: #{baseline_seq2seq_forward.7} parent=0 // pred_check
    %p21 = pneg %p20
  $region19: #{baseline_seq2seq_forward.7} parent=0 // pred_check_branch
    %23 = sbr.rel (%p21) target = $region21
  $region20: #{baseline_seq2seq_forward.7} parent=0 // pred_region
    %v24 = vld [vmem:[%s1] sm:$0x3]
    %vm25 = vcmask 254976
    %26 = vst.msk [vmem:[#allocation2] sm:$0x3] %vm25, %v24
    %v27 = vld [vmem:[%s2] sm:$0x3]
    %28 = vst.msk [vmem:[#allocation3] sm:$0x3] %vm25, %v27
  $region21: #{baseline_seq2seq_forward.7} parent=0 // pred_fallthru
    _
  %v29 = vld [vmem:[%s3] sm:$0xf]
  %v30 = vld [vmem:[%s3 + $0x4] sm:$0xf]
  %v31 = vld [vmem:[%s3 + $0x8] sm:$0xf]
  %v32 = vld [vmem:[%s3 + $0xc] sm:$0xf]
  %v33 = vld [vmem:[#allocation2] sm:$0x3]
  %v34 = vld [vmem:[#allocation3] sm:$0x3]
  %v35 = vld [vmem:[%s0] sm:$0x1]
  %v36 = vunpack.c.l.bf16 %v35
  %v37 = vpack.c.bf16 %v33, %v33
  %v42 = vunpack.c.l.b16 %v29
  %v43 = vunpack.c.l.b16 %v30
  %v44 = vunpack.c.l.b16 %v31
  %v45 = vunpack.c.l.b16 %v32
  %v46 = vpack.c.b16 %v43, %v42
  %v47 = vpack.c.b16 %v45, %v44
  %vm50 = vcmask 261120
  %v52 = vsel %vm50, %v37, 0
  %54 = vmatprep.subr.bf16.mxu0 0
  %55 = vmatpush1.bf16.msra.mxu0 0
  %56 = vmatprep.subr.bf16.mxu0 0
  %57 = vmatpush1.bf16.msra.mxu0 0
  %58 = vmatprep.subr.bf16.mxu0 0
  %59 = vmatpush1.bf16.msra.mxu0 0
  %60 = vmatprep.subr.bf16.mxu0 0
  %61 = vmatpush1.bf16.msra.mxu0 0
  %62 = vmatprep.subr.bf16.mxu0 0
  %63 = vmatpush1.bf16.msra.mxu0 0
  %64 = vmatprep.subr.bf16.mxu0 0
  %65 = vmatpush1.bf16.msra.mxu0 0
  %66 = vmatprep.subr.bf16.mxu0 0
  %67 = vmatpush1.bf16.msra.mxu0 %v47
  %68 = vmatprep.subr.bf16.mxu0 0
  %69 = vmatpush1.bf16.msra.mxu0 %v46
  %70 = vmatprep.subr.bf16.mxu0 0
  %71 = vmatpush2.bf16.msra.mxu0 0
  %72 = vmatprep.subr.bf16.mxu0 0
  %73 = vmatpush2.bf16.msra.mxu0 0
  %74 = vmatprep.subr.bf16.mxu0 0
  %75 = vmatpush2.bf16.msra.mxu0 0
  %76 = vmatprep.subr.bf16.mxu0 0
  %77 = vmatpush2.bf16.msra.mxu0 0
  %78 = vmatprep.subr.bf16.mxu0 0
  %79 = vmatpush2.bf16.msra.mxu0 0
  %80 = vmatprep.subr.bf16.mxu0 0
  %81 = vmatpush2.bf16.msra.mxu0 0
  %82 = vmatprep.subr.bf16.mxu0 0
  %83 = vmatpush2.bf16.msra.mxu0 0
  %84 = vmatprep.subr.bf16.mxu0 0
  %85 = vmatpush2.bf16.msra.mxu0 0
  %86 = vmatprep.mubr.bf16.mxu0 0
  %87 = vmatmul.mubr.bf16.gmra.mxu0 %v52
  %v88 = vpop.f32.mrf.mxu0
  %v89 = vadd.f32 0.0, %v88
  %v90 = vpop.f32.mrf.mxu0
  %v91 = vpop.f32.mrf.mxu0
  %v92 = vpop.f32.mrf.mxu0
  %93 = vdwg.mxu0
  %v94 = vadd.f32 %v36, %v89
  %v95 = vxor.u32 %v94, 2147483648
  %v96 = vmul.f32 %v95, 1.442695
  %v97 = vpow.pop %v96
  %v98 = vadd.f32 %v97, 1.0
  %v99 = vrcp.pop %v98
  %v100 = vmul.f32 1.0, %v99
  %v101 = vtanh.pop %v94
  %v104 = vunpack.c.l.s4 1983009808
  %v105 = vunpack.c.0.s8 %v104
  %v106 = vlaneseq
  %v107 = vshrl.u32 %v106, 7
  %v108 = vsub.s32 %v105, %v107
  %v109 = vrot.slane %v34, %v108
  %110 = vrot.lane.b32.xlu0 %v109, 32
  %v111 = vpop.permute.xlu0 %110
  %v113 = vmul.f32 %v100, %v111
  %115 = vrot.lane.b32.xlu0 %v101, 64
  %v116 = vpop.permute.xlu0 %115
  %v118 = vmul.f32 %v100, %v116
  %120 = vrot.lane.b32.xlu0 %v118, 32
  %v121 = vpop.permute.xlu0 %120
  %v123 = vadd.f32 %v113, %v121
  %v124 = vtanh.pop %v123
  %126 = vrot.lane.b32.xlu0 %v124, 64
  %v127 = vpop.permute.xlu0 %126
  %v129 = vmul.f32 %v100, %v127
  %v132 = vunpack.c.l.s4 1983009808
  %v133 = vunpack.c.0.s8 %v132
  %v134 = vlaneseq
  %v135 = vshrl.u32 %v134, 7
  %v136 = vsub.s32 %v133, %v135
  %v137 = vrot.slane %v129, %v136
  %138 = vrot.lane.b32.xlu0 %v137, 32
  %v139 = vpop.permute.xlu0 %138
  %vm141 = vcmask 254976
  %142 = vst.msk [vmem:[#allocation2] sm:$0x3] %vm141, %v139
  %v145 = vunpack.c.l.s4 1983009808
  %v146 = vunpack.c.0.s8 %v145
  %v147 = vlaneseq
  %v148 = vshrl.u32 %v147, 7
  %v149 = vsub.s32 %v146, %v148
  %v150 = vrot.slane %v123, %v149
  %151 = vrot.lane.b32.xlu0 %v150, 96
  %v152 = vpop.permute.xlu0 %151
  %154 = vst.msk [vmem:[#allocation3] sm:$0x3] %vm141, %v152
  %v155 = vld [vmem:[#allocation2] sm:$0x3]
  %v156 = vld [vmem:[#allocation3] sm:$0x3]
  %s157 = scalar_lea.vmem %s0, 1
  %v158 = vld [vmem:[%s157] sm:$0x1]
  %v159 = vunpack.c.l.bf16 %v158
  %v160 = vpack.c.bf16 %v155, %v155
  %v162 = vsel %vm50, %v160, 0
  %164 = vmatprep.subr.bf16.mxu0 0
  %165 = vmatpush1.bf16.msra.mxu0 0
  %166 = vmatprep.subr.bf16.mxu0 0
  %167 = vmatpush1.bf16.msra.mxu0 0
  %168 = vmatprep.subr.bf16.mxu0 0
  %169 = vmatpush1.bf16.msra.mxu0 0
  %170 = vmatprep.subr.bf16.mxu0 0
  %171 = vmatpush1.bf16.msra.mxu0 0
  %172 = vmatprep.subr.bf16.mxu0 0
  %173 = vmatpush1.bf16.msra.mxu0 0
  %174 = vmatprep.subr.bf16.mxu0 0
  %175 = vmatpush1.bf16.msra.mxu0 0
  %176 = vmatprep.subr.bf16.mxu0 0
  %177 = vmatpush1.bf16.msra.mxu0 %v47
  %178 = vmatprep.subr.bf16.mxu0 0
  %179 = vmatpush1.bf16.msra.mxu0 %v46
  %180 = vmatprep.subr.bf16.mxu0 0
  %181 = vmatpush2.bf16.msra.mxu0 0
  %182 = vmatprep.subr.bf16.mxu0 0
  %183 = vmatpush2.bf16.msra.mxu0 0
  %184 = vmatprep.subr.bf16.mxu0 0
  %185 = vmatpush2.bf16.msra.mxu0 0
  %186 = vmatprep.subr.bf16.mxu0 0
  %187 = vmatpush2.bf16.msra.mxu0 0
  %188 = vmatprep.subr.bf16.mxu0 0
  %189 = vmatpush2.bf16.msra.mxu0 0
  %190 = vmatprep.subr.bf16.mxu0 0
  %191 = vmatpush2.bf16.msra.mxu0 0
  %192 = vmatprep.subr.bf16.mxu0 0
  %193 = vmatpush2.bf16.msra.mxu0 0
  %194 = vmatprep.subr.bf16.mxu0 0
  %195 = vmatpush2.bf16.msra.mxu0 0
  %196 = vmatprep.mubr.bf16.mxu0 0
  %197 = vmatmul.mubr.bf16.gmra.mxu0 %v162
  %v198 = vpop.f32.mrf.mxu0
  %v199 = vadd.f32 0.0, %v198
  %v200 = vpop.f32.mrf.mxu0
  %v201 = vpop.f32.mrf.mxu0
  %v202 = vpop.f32.mrf.mxu0
  %203 = vdwg.mxu0
  %v204 = vadd.f32 %v159, %v199
  %v205 = vxor.u32 %v204, 2147483648
  %v206 = vmul.f32 %v205, 1.442695
  %v207 = vpow.pop %v206
  %v208 = vadd.f32 %v207, 1.0
  %v209 = vrcp.pop %v208
  %v210 = vmul.f32 1.0, %v209
  %v211 = vtanh.pop %v204
  %v214 = vunpack.c.l.s4 1983009808
  %v215 = vunpack.c.0.s8 %v214
  %v216 = vlaneseq
  %v217 = vshrl.u32 %v216, 7
  %v218 = vsub.s32 %v215, %v217
  %v219 = vrot.slane %v156, %v218
  %220 = vrot.lane.b32.xlu0 %v219, 32
  %v221 = vpop.permute.xlu0 %220
  %v223 = vmul.f32 %v210, %v221
  %225 = vrot.lane.b32.xlu0 %v211, 64
  %v226 = vpop.permute.xlu0 %225
  %v228 = vmul.f32 %v210, %v226
  %230 = vrot.lane.b32.xlu0 %v228, 32
  %v231 = vpop.permute.xlu0 %230
  %v233 = vadd.f32 %v223, %v231
  %v234 = vtanh.pop %v233
  %236 = vrot.lane.b32.xlu0 %v234, 64
  %v237 = vpop.permute.xlu0 %236
  %v239 = vmul.f32 %v210, %v237
  %v242 = vunpack.c.l.s4 1983009808
  %v243 = vunpack.c.0.s8 %v242
  %v244 = vlaneseq
  %v245 = vshrl.u32 %v244, 7
  %v246 = vsub.s32 %v243, %v245
  %v247 = vrot.slane %v239, %v246
  %248 = vrot.lane.b32.xlu0 %v247, 32
  %v249 = vpop.permute.xlu0 %248
  %251 = vst.msk [vmem:[#allocation2] sm:$0x3] %vm141, %v249
  %v254 = vunpack.c.l.s4 1983009808
  %v255 = vunpack.c.0.s8 %v254
  %v256 = vlaneseq
  %v257 = vshrl.u32 %v256, 7
  %v258 = vsub.s32 %v255, %v257
  %v259 = vrot.slane %v233, %v258
  %260 = vrot.lane.b32.xlu0 %v259, 96
  %v261 = vpop.permute.xlu0 %260
  %263 = vst.msk [vmem:[#allocation3] sm:$0x3] %vm141, %v261
  %v264 = vld [vmem:[#allocation2] sm:$0x3]
  %v265 = vld [vmem:[#allocation3] sm:$0x3]
  %s266 = scalar_lea.vmem %s0, 2
  %v267 = vld [vmem:[%s266] sm:$0x1]
  %v268 = vunpack.c.l.bf16 %v267
  %v269 = vpack.c.bf16 %v264, %v264
  %v271 = vsel %vm50, %v269, 0
  %273 = vmatprep.subr.bf16.mxu0 0
  %274 = vmatpush1.bf16.msra.mxu0 0
  %275 = vmatprep.subr.bf16.mxu0 0
  %276 = vmatpush1.bf16.msra.mxu0 0
  %277 = vmatprep.subr.bf16.mxu0 0
  %278 = vmatpush1.bf16.msra.mxu0 0
  %279 = vmatprep.subr.bf16.mxu0 0
  %280 = vmatpush1.bf16.msra.mxu0 0
  %281 = vmatprep.subr.bf16.mxu0 0
  %282 = vmatpush1.bf16.msra.mxu0 0
  %283 = vmatprep.subr.bf16.mxu0 0
  %284 = vmatpush1.bf16.msra.mxu0 0
  %285 = vmatprep.subr.bf16.mxu0 0
  %286 = vmatpush1.bf16.msra.mxu0 %v47
  %287 = vmatprep.subr.bf16.mxu0 0
  %288 = vmatpush1.bf16.msra.mxu0 %v46
  %289 = vmatprep.subr.bf16.mxu0 0
  %290 = vmatpush2.bf16.msra.mxu0 0
  %291 = vmatprep.subr.bf16.mxu0 0
  %292 = vmatpush2.bf16.msra.mxu0 0
  %293 = vmatprep.subr.bf16.mxu0 0
  %294 = vmatpush2.bf16.msra.mxu0 0
  %295 = vmatprep.subr.bf16.mxu0 0
  %296 = vmatpush2.bf16.msra.mxu0 0
  %297 = vmatprep.subr.bf16.mxu0 0
  %298 = vmatpush2.bf16.msra.mxu0 0
  %299 = vmatprep.subr.bf16.mxu0 0
  %300 = vmatpush2.bf16.msra.mxu0 0
  %301 = vmatprep.subr.bf16.mxu0 0
  %302 = vmatpush2.bf16.msra.mxu0 0
  %303 = vmatprep.subr.bf16.mxu0 0
  %304 = vmatpush2.bf16.msra.mxu0 0
  %305 = vmatprep.mubr.bf16.mxu0 0
  %306 = vmatmul.mubr.bf16.gmra.mxu0 %v271
  %v307 = vpop.f32.mrf.mxu0
  %v308 = vadd.f32 0.0, %v307
  %v309 = vpop.f32.mrf.mxu0
  %v310 = vpop.f32.mrf.mxu0
  %v311 = vpop.f32.mrf.mxu0
  %312 = vdwg.mxu0
  %v313 = vadd.f32 %v268, %v308
  %v314 = vxor.u32 %v313, 2147483648
  %v315 = vmul.f32 %v314, 1.442695
  %v316 = vpow.pop %v315
  %v317 = vadd.f32 %v316, 1.0
  %v318 = vrcp.pop %v317
  %v319 = vmul.f32 1.0, %v318
  %v320 = vtanh.pop %v313
  %v323 = vunpack.c.l.s4 1983009808
  %v324 = vunpack.c.0.s8 %v323
  %v325 = vlaneseq
  %v326 = vshrl.u32 %v325, 7
  %v327 = vsub.s32 %v324, %v326
  %v328 = vrot.slane %v265, %v327
  %329 = vrot.lane.b32.xlu0 %v328, 32
  %v330 = vpop.permute.xlu0 %329
  %v332 = vmul.f32 %v319, %v330
  %334 = vrot.lane.b32.xlu0 %v320, 64
  %v335 = vpop.permute.xlu0 %334
  %v337 = vmul.f32 %v319, %v335
  %339 = vrot.lane.b32.xlu0 %v337, 32
  %v340 = vpop.permute.xlu0 %339
  %v342 = vadd.f32 %v332, %v340
  %v343 = vtanh.pop %v342
  %345 = vrot.lane.b32.xlu0 %v343, 64
  %v346 = vpop.permute.xlu0 %345
  %v348 = vmul.f32 %v319, %v346
  %v351 = vunpack.c.l.s4 1983009808
  %v352 = vunpack.c.0.s8 %v351
  %v353 = vlaneseq
  %v354 = vshrl.u32 %v353, 7
  %v355 = vsub.s32 %v352, %v354
  %v356 = vrot.slane %v348, %v355
  %357 = vrot.lane.b32.xlu0 %v356, 32
  %v358 = vpop.permute.xlu0 %357
  %360 = vst.msk [vmem:[#allocation2] sm:$0x3] %vm141, %v358
  %v363 = vunpack.c.l.s4 1983009808
  %v364 = vunpack.c.0.s8 %v363
  %v365 = vlaneseq
  %v366 = vshrl.u32 %v365, 7
  %v367 = vsub.s32 %v364, %v366
  %v368 = vrot.slane %v342, %v367
  %369 = vrot.lane.b32.xlu0 %v368, 96
  %v370 = vpop.permute.xlu0 %369
  %372 = vst.msk [vmem:[#allocation3] sm:$0x3] %vm141, %v370
  %v373 = vld [vmem:[#allocation2] sm:$0x3]
  %v374 = vld [vmem:[#allocation3] sm:$0x3]
  %s375 = scalar_lea.vmem %s0, 3
  %v376 = vld [vmem:[%s375] sm:$0x1]
  %v377 = vunpack.c.l.bf16 %v376
  %v378 = vpack.c.bf16 %v373, %v373
  %v380 = vsel %vm50, %v378, 0
  %382 = vmatprep.subr.bf16.mxu0 0
  %383 = vmatpush1.bf16.msra.mxu0 0
  %384 = vmatprep.subr.bf16.mxu0 0
  %385 = vmatpush1.bf16.msra.mxu0 0
  %386 = vmatprep.subr.bf16.mxu0 0
  %387 = vmatpush1.bf16.msra.mxu0 0
  %388 = vmatprep.subr.bf16.mxu0 0
  %389 = vmatpush1.bf16.msra.mxu0 0
  %390 = vmatprep.subr.bf16.mxu0 0
  %391 = vmatpush1.bf16.msra.mxu0 0
  %392 = vmatprep.subr.bf16.mxu0 0
  %393 = vmatpush1.bf16.msra.mxu0 0
  %394 = vmatprep.subr.bf16.mxu0 0
  %395 = vmatpush1.bf16.msra.mxu0 %v47
  %396 = vmatprep.subr.bf16.mxu0 0
  %397 = vmatpush1.bf16.msra.mxu0 %v46
  %398 = vmatprep.subr.bf16.mxu0 0
  %399 = vmatpush2.bf16.msra.mxu0 0
  %400 = vmatprep.subr.bf16.mxu0 0
  %401 = vmatpush2.bf16.msra.mxu0 0
  %402 = vmatprep.subr.bf16.mxu0 0
  %403 = vmatpush2.bf16.msra.mxu0 0
  %404 = vmatprep.subr.bf16.mxu0 0
  %405 = vmatpush2.bf16.msra.mxu0 0
  %406 = vmatprep.subr.bf16.mxu0 0
  %407 = vmatpush2.bf16.msra.mxu0 0
  %408 = vmatprep.subr.bf16.mxu0 0
  %409 = vmatpush2.bf16.msra.mxu0 0
  %410 = vmatprep.subr.bf16.mxu0 0
  %411 = vmatpush2.bf16.msra.mxu0 0
  %412 = vmatprep.subr.bf16.mxu0 0
  %413 = vmatpush2.bf16.msra.mxu0 0
  %414 = vmatprep.mubr.bf16.mxu0 0
  %415 = vmatmul.mubr.bf16.gmra.mxu0 %v380
  %v416 = vpop.f32.mrf.mxu0
  %v417 = vadd.f32 0.0, %v416
  %v418 = vpop.f32.mrf.mxu0
  %v419 = vpop.f32.mrf.mxu0
  %v420 = vpop.f32.mrf.mxu0
  %421 = vdwg.mxu0
  %v422 = vadd.f32 %v377, %v417
  %v423 = vxor.u32 %v422, 2147483648
  %v424 = vmul.f32 %v423, 1.442695
  %v425 = vpow.pop %v424
  %v426 = vadd.f32 %v425, 1.0
  %v427 = vrcp.pop %v426
  %v428 = vmul.f32 1.0, %v427
  %v429 = vtanh.pop %v422
  %v432 = vunpack.c.l.s4 1983009808
  %v433 = vunpack.c.0.s8 %v432
  %v434 = vlaneseq
  %v435 = vshrl.u32 %v434, 7
  %v436 = vsub.s32 %v433, %v435
  %v437 = vrot.slane %v374, %v436
  %438 = vrot.lane.b32.xlu0 %v437, 32
  %v439 = vpop.permute.xlu0 %438
  %v441 = vmul.f32 %v428, %v439
  %443 = vrot.lane.b32.xlu0 %v429, 64
  %v444 = vpop.permute.xlu0 %443
  %v446 = vmul.f32 %v428, %v444
  %448 = vrot.lane.b32.xlu0 %v446, 32
  %v449 = vpop.permute.xlu0 %448
  %v451 = vadd.f32 %v441, %v449
  %v452 = vtanh.pop %v451
  %454 = vrot.lane.b32.xlu0 %v452, 64
  %v455 = vpop.permute.xlu0 %454
  %v457 = vmul.f32 %v428, %v455
  %v460 = vunpack.c.l.s4 1983009808
  %v461 = vunpack.c.0.s8 %v460
  %v462 = vlaneseq
  %v463 = vshrl.u32 %v462, 7
  %v464 = vsub.s32 %v461, %v463
  %v465 = vrot.slane %v457, %v464
  %466 = vrot.lane.b32.xlu0 %v465, 32
  %v467 = vpop.permute.xlu0 %466
  %469 = vst.msk [vmem:[#allocation2] sm:$0x3] %vm141, %v467
  %v472 = vunpack.c.l.s4 1983009808
  %v473 = vunpack.c.0.s8 %v472
  %v474 = vlaneseq
  %v475 = vshrl.u32 %v474, 7
  %v476 = vsub.s32 %v473, %v475
  %v477 = vrot.slane %v451, %v476
  %478 = vrot.lane.b32.xlu0 %v477, 96
  %v479 = vpop.permute.xlu0 %478
  %481 = vst.msk [vmem:[#allocation3] sm:$0x3] %vm141, %v479
  %v482 = vld [vmem:[#allocation2] sm:$0x3]
  %v483 = vld [vmem:[#allocation3] sm:$0x3]
  %s484 = scalar_lea.vmem %s0, 4
  %v485 = vld [vmem:[%s484] sm:$0x1]
  %v486 = vunpack.c.l.bf16 %v485
  %v487 = vpack.c.bf16 %v482, %v482
  %v489 = vsel %vm50, %v487, 0
  %491 = vmatprep.subr.bf16.mxu0 0
  %492 = vmatpush1.bf16.msra.mxu0 0
  %493 = vmatprep.subr.bf16.mxu0 0
  %494 = vmatpush1.bf16.msra.mxu0 0
  %495 = vmatprep.subr.bf16.mxu0 0
  %496 = vmatpush1.bf16.msra.mxu0 0
  %497 = vmatprep.subr.bf16.mxu0 0
  %498 = vmatpush1.bf16.msra.mxu0 0
  %499 = vmatprep.subr.bf16.mxu0 0
  %500 = vmatpush1.bf16.msra.mxu0 0
  %501 = vmatprep.subr.bf16.mxu0 0
  %502 = vmatpush1.bf16.msra.mxu0 0
  %503 = vmatprep.subr.bf16.mxu0 0
  %504 = vmatpush1.bf16.msra.mxu0 %v47
  %505 = vmatprep.subr.bf16.mxu0 0
  %506 = vmatpush1.bf16.msra.mxu0 %v46
  %507 = vmatprep.subr.bf16.mxu0 0
  %508 = vmatpush2.bf16.msra.mxu0 0
  %509 = vmatprep.subr.bf16.mxu0 0
  %510 = vmatpush2.bf16.msra.mxu0 0
  %511 = vmatprep.subr.bf16.mxu0 0
  %512 = vmatpush2.bf16.msra.mxu0 0
  %513 = vmatprep.subr.bf16.mxu0 0
  %514 = vmatpush2.bf16.msra.mxu0 0
  %515 = vmatprep.subr.bf16.mxu0 0
  %516 = vmatpush2.bf16.msra.mxu0 0
  %517 = vmatprep.subr.bf16.mxu0 0
  %518 = vmatpush2.bf16.msra.mxu0 0
  %519 = vmatprep.subr.bf16.mxu0 0
  %520 = vmatpush2.bf16.msra.mxu0 0
  %521 = vmatprep.subr.bf16.mxu0 0
  %522 = vmatpush2.bf16.msra.mxu0 0
  %523 = vmatprep.mubr.bf16.mxu0 0
  %524 = vmatmul.mubr.bf16.gmra.mxu0 %v489
  %v525 = vpop.f32.mrf.mxu0
  %v526 = vadd.f32 0.0, %v525
  %v527 = vpop.f32.mrf.mxu0
  %v528 = vpop.f32.mrf.mxu0
  %v529 = vpop.f32.mrf.mxu0
  %530 = vdwg.mxu0
  %v531 = vadd.f32 %v486, %v526
  %v532 = vxor.u32 %v531, 2147483648
  %v533 = vmul.f32 %v532, 1.442695
  %v534 = vpow.pop %v533
  %v535 = vadd.f32 %v534, 1.0
  %v536 = vrcp.pop %v535
  %v537 = vmul.f32 1.0, %v536
  %v538 = vtanh.pop %v531
  %v541 = vunpack.c.l.s4 1983009808
  %v542 = vunpack.c.0.s8 %v541
  %v543 = vlaneseq
  %v544 = vshrl.u32 %v543, 7
  %v545 = vsub.s32 %v542, %v544
  %v546 = vrot.slane %v483, %v545
  %547 = vrot.lane.b32.xlu0 %v546, 32
  %v548 = vpop.permute.xlu0 %547
  %v550 = vmul.f32 %v537, %v548
  %552 = vrot.lane.b32.xlu0 %v538, 64
  %v553 = vpop.permute.xlu0 %552
  %v555 = vmul.f32 %v537, %v553
  %557 = vrot.lane.b32.xlu0 %v555, 32
  %v558 = vpop.permute.xlu0 %557
  %v560 = vadd.f32 %v550, %v558
  %v561 = vtanh.pop %v560
  %563 = vrot.lane.b32.xlu0 %v561, 64
  %v564 = vpop.permute.xlu0 %563
  %v566 = vmul.f32 %v537, %v564
  %v569 = vunpack.c.l.s4 1983009808
  %v570 = vunpack.c.0.s8 %v569
  %v571 = vlaneseq
  %v572 = vshrl.u32 %v571, 7
  %v573 = vsub.s32 %v570, %v572
  %v574 = vrot.slane %v566, %v573
  %575 = vrot.lane.b32.xlu0 %v574, 32
  %v576 = vpop.permute.xlu0 %575
  %578 = vst.msk [vmem:[#allocation2] sm:$0x3] %vm141, %v576
  %v581 = vunpack.c.l.s4 1983009808
  %v582 = vunpack.c.0.s8 %v581
  %v583 = vlaneseq
  %v584 = vshrl.u32 %v583, 7
  %v585 = vsub.s32 %v582, %v584
  %v586 = vrot.slane %v560, %v585
  %587 = vrot.lane.b32.xlu0 %v586, 96
  %v588 = vpop.permute.xlu0 %587
  %590 = vst.msk [vmem:[#allocation3] sm:$0x3] %vm141, %v588
  %v591 = vld [vmem:[#allocation2] sm:$0x3]
  %v592 = vld [vmem:[#allocation3] sm:$0x3]
  %s593 = scalar_lea.vmem %s0, 5
  %v594 = vld [vmem:[%s593] sm:$0x1]
  %v595 = vunpack.c.l.bf16 %v594
  %v596 = vpack.c.bf16 %v591, %v591
  %v598 = vsel %vm50, %v596, 0
  %600 = vmatprep.subr.bf16.mxu0 0
  %601 = vmatpush1.bf16.msra.mxu0 0
  %602 = vmatprep.subr.bf16.mxu0 0
  %603 = vmatpush1.bf16.msra.mxu0 0
  %604 = vmatprep.subr.bf16.mxu0 0
  %605 = vmatpush1.bf16.msra.mxu0 0
  %606 = vmatprep.subr.bf16.mxu0 0
  %607 = vmatpush1.bf16.msra.mxu0 0
  %608 = vmatprep.subr.bf16.mxu0 0
  %609 = vmatpush1.bf16.msra.mxu0 0
  %610 = vmatprep.subr.bf16.mxu0 0
  %611 = vmatpush1.bf16.msra.mxu0 0
  %612 = vmatprep.subr.bf16.mxu0 0
  %613 = vmatpush1.bf16.msra.mxu0 %v47
  %614 = vmatprep.subr.bf16.mxu0 0
  %615 = vmatpush1.bf16.msra.mxu0 %v46
  %616 = vmatprep.subr.bf16.mxu0 0
  %617 = vmatpush2.bf16.msra.mxu0 0
  %618 = vmatprep.subr.bf16.mxu0 0
  %619 = vmatpush2.bf16.msra.mxu0 0
  %620 = vmatprep.subr.bf16.mxu0 0
  %621 = vmatpush2.bf16.msra.mxu0 0
  %622 = vmatprep.subr.bf16.mxu0 0
  %623 = vmatpush2.bf16.msra.mxu0 0
  %624 = vmatprep.subr.bf16.mxu0 0
  %625 = vmatpush2.bf16.msra.mxu0 0
  %626 = vmatprep.subr.bf16.mxu0 0
  %627 = vmatpush2.bf16.msra.mxu0 0
  %628 = vmatprep.subr.bf16.mxu0 0
  %629 = vmatpush2.bf16.msra.mxu0 0
  %630 = vmatprep.subr.bf16.mxu0 0
  %631 = vmatpush2.bf16.msra.mxu0 0
  %632 = vmatprep.mubr.bf16.mxu0 0
  %633 = vmatmul.mubr.bf16.gmra.mxu0 %v598
  %v634 = vpop.f32.mrf.mxu0
  %v635 = vadd.f32 0.0, %v634
  %v636 = vpop.f32.mrf.mxu0
  %v637 = vpop.f32.mrf.mxu0
  %v638 = vpop.f32.mrf.mxu0
  %639 = vdwg.mxu0
  %v640 = vadd.f32 %v595, %v635
  %v641 = vxor.u32 %v640, 2147483648
  %v642 = vmul.f32 %v641, 1.442695
  %v643 = vpow.pop %v642
  %v644 = vadd.f32 %v643, 1.0
  %v645 = vrcp.pop %v644
  %v646 = vmul.f32 1.0, %v645
  %v647 = vtanh.pop %v640
  %v650 = vunpack.c.l.s4 1983009808
  %v651 = vunpack.c.0.s8 %v650
  %v652 = vlaneseq
  %v653 = vshrl.u32 %v652, 7
  %v654 = vsub.s32 %v651, %v653
  %v655 = vrot.slane %v592, %v654
  %656 = vrot.lane.b32.xlu0 %v655, 32
  %v657 = vpop.permute.xlu0 %656
  %v659 = vmul.f32 %v646, %v657
  %661 = vrot.lane.b32.xlu0 %v647, 64
  %v662 = vpop.permute.xlu0 %661
  %v664 = vmul.f32 %v646, %v662
  %666 = vrot.lane.b32.xlu0 %v664, 32
  %v667 = vpop.permute.xlu0 %666
  %v669 = vadd.f32 %v659, %v667
  %v670 = vtanh.pop %v669
  %672 = vrot.lane.b32.xlu0 %v670, 64
  %v673 = vpop.permute.xlu0 %672
  %v675 = vmul.f32 %v646, %v673
  %v678 = vunpack.c.l.s4 1983009808
  %v679 = vunpack.c.0.s8 %v678
  %v680 = vlaneseq
  %v681 = vshrl.u32 %v680, 7
  %v682 = vsub.s32 %v679, %v681
  %v683 = vrot.slane %v675, %v682
  %684 = vrot.lane.b32.xlu0 %v683, 32
  %v685 = vpop.permute.xlu0 %684
  %687 = vst.msk [vmem:[#allocation2] sm:$0x3] %vm141, %v685
  %v690 = vunpack.c.l.s4 1983009808
  %v691 = vunpack.c.0.s8 %v690
  %v692 = vlaneseq
  %v693 = vshrl.u32 %v692, 7
  %v694 = vsub.s32 %v691, %v693
  %v695 = vrot.slane %v669, %v694
  %696 = vrot.lane.b32.xlu0 %v695, 96
  %v697 = vpop.permute.xlu0 %696
  %699 = vst.msk [vmem:[#allocation3] sm:$0x3] %vm141, %v697
  %v700 = vld [vmem:[#allocation2] sm:$0x3]
  %v701 = vld [vmem:[#allocation3] sm:$0x3]
  %s702 = scalar_lea.vmem %s0, 6
  %v703 = vld [vmem:[%s702] sm:$0x1]
  %v704 = vunpack.c.l.bf16 %v703
  %v705 = vpack.c.bf16 %v700, %v700
  %v707 = vsel %vm50, %v705, 0
  %709 = vmatprep.subr.bf16.mxu0 0
  %710 = vmatpush1.bf16.msra.mxu0 0
  %711 = vmatprep.subr.bf16.mxu0 0
  %712 = vmatpush1.bf16.msra.mxu0 0
  %713 = vmatprep.subr.bf16.mxu0 0
  %714 = vmatpush1.bf16.msra.mxu0 0
  %715 = vmatprep.subr.bf16.mxu0 0
  %716 = vmatpush1.bf16.msra.mxu0 0
  %717 = vmatprep.subr.bf16.mxu0 0
  %718 = vmatpush1.bf16.msra.mxu0 0
  %719 = vmatprep.subr.bf16.mxu0 0
  %720 = vmatpush1.bf16.msra.mxu0 0
  %721 = vmatprep.subr.bf16.mxu0 0
  %722 = vmatpush1.bf16.msra.mxu0 %v47
  %723 = vmatprep.subr.bf16.mxu0 0
  %724 = vmatpush1.bf16.msra.mxu0 %v46
  %725 = vmatprep.subr.bf16.mxu0 0
  %726 = vmatpush2.bf16.msra.mxu0 0
  %727 = vmatprep.subr.bf16.mxu0 0
  %728 = vmatpush2.bf16.msra.mxu0 0
  %729 = vmatprep.subr.bf16.mxu0 0
  %730 = vmatpush2.bf16.msra.mxu0 0
  %731 = vmatprep.subr.bf16.mxu0 0
  %732 = vmatpush2.bf16.msra.mxu0 0
  %733 = vmatprep.subr.bf16.mxu0 0
  %734 = vmatpush2.bf16.msra.mxu0 0
  %735 = vmatprep.subr.bf16.mxu0 0
  %736 = vmatpush2.bf16.msra.mxu0 0
  %737 = vmatprep.subr.bf16.mxu0 0
  %738 = vmatpush2.bf16.msra.mxu0 0
  %739 = vmatprep.subr.bf16.mxu0 0
  %740 = vmatpush2.bf16.msra.mxu0 0
  %741 = vmatprep.mubr.bf16.mxu0 0
  %742 = vmatmul.mubr.bf16.gmra.mxu0 %v707
  %v743 = vpop.f32.mrf.mxu0
  %v744 = vadd.f32 0.0, %v743
  %v745 = vpop.f32.mrf.mxu0
  %v746 = vpop.f32.mrf.mxu0
  %v747 = vpop.f32.mrf.mxu0
  %748 = vdwg.mxu0
  %v749 = vadd.f32 %v704, %v744
  %v750 = vxor.u32 %v749, 2147483648
  %v751 = vmul.f32 %v750, 1.442695
  %v752 = vpow.pop %v751
  %v753 = vadd.f32 %v752, 1.0
  %v754 = vrcp.pop %v753
  %v755 = vmul.f32 1.0, %v754
  %v756 = vtanh.pop %v749
  %v759 = vunpack.c.l.s4 1983009808
  %v760 = vunpack.c.0.s8 %v759
  %v761 = vlaneseq
  %v762 = vshrl.u32 %v761, 7
  %v763 = vsub.s32 %v760, %v762
  %v764 = vrot.slane %v701, %v763
  %765 = vrot.lane.b32.xlu0 %v764, 32
  %v766 = vpop.permute.xlu0 %765
  %v768 = vmul.f32 %v755, %v766
  %770 = vrot.lane.b32.xlu0 %v756, 64
  %v771 = vpop.permute.xlu0 %770
  %v773 = vmul.f32 %v755, %v771
  %775 = vrot.lane.b32.xlu0 %v773, 32
  %v776 = vpop.permute.xlu0 %775
  %v778 = vadd.f32 %v768, %v776
  %v779 = vtanh.pop %v778
  %781 = vrot.lane.b32.xlu0 %v779, 64
  %v782 = vpop.permute.xlu0 %781
  %v784 = vmul.f32 %v755, %v782
  %v787 = vunpack.c.l.s4 1983009808
  %v788 = vunpack.c.0.s8 %v787
  %v789 = vlaneseq
  %v790 = vshrl.u32 %v789, 7
  %v791 = vsub.s32 %v788, %v790
  %v792 = vrot.slane %v784, %v791
  %793 = vrot.lane.b32.xlu0 %v792, 32
  %v794 = vpop.permute.xlu0 %793
  %796 = vst.msk [vmem:[#allocation2] sm:$0x3] %vm141, %v794
  %v799 = vunpack.c.l.s4 1983009808
  %v800 = vunpack.c.0.s8 %v799
  %v801 = vlaneseq
  %v802 = vshrl.u32 %v801, 7
  %v803 = vsub.s32 %v800, %v802
  %v804 = vrot.slane %v778, %v803
  %805 = vrot.lane.b32.xlu0 %v804, 96
  %v806 = vpop.permute.xlu0 %805
  %808 = vst.msk [vmem:[#allocation3] sm:$0x3] %vm141, %v806
  %v809 = vld [vmem:[#allocation2] sm:$0x3]
  %v810 = vld [vmem:[#allocation3] sm:$0x3]
  %s811 = scalar_lea.vmem %s0, 7
  %v812 = vld [vmem:[%s811] sm:$0x1]
  %v813 = vunpack.c.l.bf16 %v812
  %v814 = vpack.c.bf16 %v809, %v809
  %v816 = vsel %vm50, %v814, 0
  %818 = vmatprep.subr.bf16.mxu0 0
  %819 = vmatpush1.bf16.msra.mxu0 0
  %820 = vmatprep.subr.bf16.mxu0 0
  %821 = vmatpush1.bf16.msra.mxu0 0
  %822 = vmatprep.subr.bf16.mxu0 0
  %823 = vmatpush1.bf16.msra.mxu0 0
  %824 = vmatprep.subr.bf16.mxu0 0
  %825 = vmatpush1.bf16.msra.mxu0 0
  %826 = vmatprep.subr.bf16.mxu0 0
  %827 = vmatpush1.bf16.msra.mxu0 0
  %828 = vmatprep.subr.bf16.mxu0 0
  %829 = vmatpush1.bf16.msra.mxu0 0
  %830 = vmatprep.subr.bf16.mxu0 0
  %831 = vmatpush1.bf16.msra.mxu0 %v47
  %832 = vmatprep.subr.bf16.mxu0 0
  %833 = vmatpush1.bf16.msra.mxu0 %v46
  %834 = vmatprep.subr.bf16.mxu0 0
  %835 = vmatpush2.bf16.msra.mxu0 0
  %836 = vmatprep.subr.bf16.mxu0 0
  %837 = vmatpush2.bf16.msra.mxu0 0
  %838 = vmatprep.subr.bf16.mxu0 0
  %839 = vmatpush2.bf16.msra.mxu0 0
  %840 = vmatprep.subr.bf16.mxu0 0
  %841 = vmatpush2.bf16.msra.mxu0 0
  %842 = vmatprep.subr.bf16.mxu0 0
  %843 = vmatpush2.bf16.msra.mxu0 0
  %844 = vmatprep.subr.bf16.mxu0 0
  %845 = vmatpush2.bf16.msra.mxu0 0
  %846 = vmatprep.subr.bf16.mxu0 0
  %847 = vmatpush2.bf16.msra.mxu0 0
  %848 = vmatprep.subr.bf16.mxu0 0
  %849 = vmatpush2.bf16.msra.mxu0 0
  %850 = vmatprep.mubr.bf16.mxu0 0
  %851 = vmatmul.mubr.bf16.gmra.mxu0 %v816
  %v852 = vpop.f32.mrf.mxu0
  %v853 = vadd.f32 0.0, %v852
  %v854 = vpop.f32.mrf.mxu0
  %v855 = vpop.f32.mrf.mxu0
  %v856 = vpop.f32.mrf.mxu0
  %857 = vdwg.mxu0
  %v858 = vadd.f32 %v813, %v853
  %v859 = vxor.u32 %v858, 2147483648
  %v860 = vmul.f32 %v859, 1.442695
  %v861 = vpow.pop %v860
  %v862 = vadd.f32 %v861, 1.0
  %v863 = vrcp.pop %v862
  %v864 = vmul.f32 1.0, %v863
  %v865 = vtanh.pop %v858
  %v868 = vunpack.c.l.s4 1983009808
  %v869 = vunpack.c.0.s8 %v868
  %v870 = vlaneseq
  %v871 = vshrl.u32 %v870, 7
  %v872 = vsub.s32 %v869, %v871
  %v873 = vrot.slane %v810, %v872
  %874 = vrot.lane.b32.xlu0 %v873, 32
  %v875 = vpop.permute.xlu0 %874
  %v877 = vmul.f32 %v864, %v875
  %879 = vrot.lane.b32.xlu0 %v865, 64
  %v880 = vpop.permute.xlu0 %879
  %v882 = vmul.f32 %v864, %v880
  %884 = vrot.lane.b32.xlu0 %v882, 32
  %v885 = vpop.permute.xlu0 %884
  %v887 = vadd.f32 %v877, %v885
  %v888 = vtanh.pop %v887
  %890 = vrot.lane.b32.xlu0 %v888, 64
  %v891 = vpop.permute.xlu0 %890
  %v893 = vmul.f32 %v864, %v891
  %v896 = vunpack.c.l.s4 1983009808
  %v897 = vunpack.c.0.s8 %v896
  %v898 = vlaneseq
  %v899 = vshrl.u32 %v898, 7
  %v900 = vsub.s32 %v897, %v899
  %v901 = vrot.slane %v893, %v900
  %902 = vrot.lane.b32.xlu0 %v901, 32
  %v903 = vpop.permute.xlu0 %902
  %905 = vst.msk [vmem:[#allocation2] sm:$0x3] %vm141, %v903
  %v908 = vunpack.c.l.s4 1983009808
  %v909 = vunpack.c.0.s8 %v908
  %v910 = vlaneseq
  %v911 = vshrl.u32 %v910, 7
  %v912 = vsub.s32 %v909, %v911
  %v913 = vrot.slane %v887, %v912
  %914 = vrot.lane.b32.xlu0 %v913, 96
  %v915 = vpop.permute.xlu0 %914
  %917 = vst.msk [vmem:[#allocation3] sm:$0x3] %vm141, %v915
  %v918 = vld [vmem:[#allocation2] sm:$0x3]
  %919 = vst.msk [vmem:[%s4] sm:$0x3] %vm141, %v918
  %v920 = vld [vmem:[#allocation3] sm:$0x3]
  %921 = vst.msk [vmem:[%s5] sm:$0x3] %vm141, %v920
  // Predicated region
  $region22: #{baseline_seq2seq_forward.7} parent=0 // pred_check
    _
  $region23: #{baseline_seq2seq_forward.7} parent=0 // pred_check_branch
    %923 = sbr.rel (0) target = $region25
  $region24: #{baseline_seq2seq_forward.7} parent=0 // pred_region
    _
  $region25: #{baseline_seq2seq_forward.7} parent=0 // pred_fallthru
    _
  // Predicated region
  $region26: #{baseline_seq2seq_forward.7} parent=0 // pred_check
    _
  $region27: #{baseline_seq2seq_forward.7} parent=0 // pred_check_branch
    %925 = sbr.rel (0) target = $region29
  $region28: #{baseline_seq2seq_forward.7} parent=0 // pred_region
    _
  $region29: #{baseline_seq2seq_forward.7} parent=0 // pred_fallthru
    _
  // Predicated region
  $region30: #{baseline_seq2seq_forward.7} parent=0 // pred_check
    _
  $region31: #{baseline_seq2seq_forward.7} parent=0 // pred_check_branch
    %927 = sbr.rel (0) target = $region33
  $region32: #{baseline_seq2seq_forward.7} parent=0 // pred_region
    _
  $region33: #{baseline_seq2seq_forward.7} parent=0 // pred_fallthru
    _
  // Predicated region
  $region34: #{baseline_seq2seq_forward.7} parent=0 // pred_check
    _
  $region35: #{baseline_seq2seq_forward.7} parent=0 // pred_check_branch
    %929 = sbr.rel (0) target = $region37
  $region36: #{baseline_seq2seq_forward.7} parent=0 // pred_region
    _
  $region37: #{baseline_seq2seq_forward.7} parent=0 // pred_fallthru
    _

// kernel: baseline_seq2seq_forward.8
$region0: #{baseline_seq2seq_forward.8}
  #allocation0 [shape = 'u32[]', space=smem, size = 0x4, offset = 0x4, fixed_abs, tag = 'smem constant byte address 0x4 - core index']
  #allocation1 [shape = 'u32[144,128]{1,0:T(1,128)}', space=vmem, size = 0x12000, scoped, tag = 'internal scratch']
  #allocation2 [shape = 'f32[2,32]{1,0:T(2,128)}', space=vmem, size = 0x400, scoped, tag = 'scratch operand']
  #allocation3 [shape = 'f32[2,32]{1,0:T(2,128)}', space=vmem, size = 0x400, scoped, tag = 'scratch operand']
  %s0 = inlined_call_operand.vmem [shape: bf16[7,2,128], index: 0, kind: input, shape index: {}]
  %s1 = inlined_call_operand.vmem [shape: f32[2,32], index: 1, kind: input, shape index: {}]
  %s2 = inlined_call_operand.vmem [shape: f32[2,32], index: 2, kind: input, shape index: {}]
  %s3 = inlined_call_operand.vmem [shape: bf16[32,128], index: 3, kind: input, shape index: {}]
  %s4 = inlined_call_operand.vmem [shape: bf16[2,7,32], index: 4, kind: output, shape index: {0}]
  %s5 = inlined_call_operand.hbm [shape: f32[2,32], index: 5, kind: output, shape index: {1}]
  %s6 = inlined_call_operand.hbm [shape: f32[2,32], index: 6, kind: output, shape index: {2}]
  %7 = xla_tuple %s4, %s5, %s6
  %s8 = sld [smem:[#allocation0]]
  $region46: #{baseline_seq2seq_forward.8} parent=0
    _
  %s10 = ssub.s32 1, %s8
  %s11 = scalar_select 0, %s10, %s8
  $region1: #{baseline_seq2seq_forward.8} parent=0
    #allocation4 [shape = 'u8[1024]{0}', space=vmem, size = 0x400, scoped, tag = 'output window, operand 1, single buffered']
    #allocation5 [shape = 's32[1]{0}', space=sflag, size = 0x4, scoped, tag = 'scoped memory for baseline_seq2seq_forward.8']
    #allocation6 [shape = 'u8[1024]{0}', space=vmem, size = 0x400, scoped, tag = 'output window, operand 2, single buffered']
    #allocation7 [shape = 's32[1]{0}', space=sflag, size = 0x4, scoped, tag = 'scoped memory for baseline_seq2seq_forward.8']
    %12 = vsyncpa [#allocation5], 0
    %13 = vsyncpa [#allocation7], 0
    // Predicated region
    $region2: #{baseline_seq2seq_forward.8} parent=1 // pred_check
      _
    $region3: #{baseline_seq2seq_forward.8} parent=1 // pred_check_branch
      %15 = sbr.rel (0) target = $region5
    $region4: #{baseline_seq2seq_forward.8} parent=1 // pred_region
      _
    $region5: #{baseline_seq2seq_forward.8} parent=1 // pred_fallthru
      _
    // Predicated region
    $region6: #{baseline_seq2seq_forward.8} parent=1 // pred_check
      _
    $region7: #{baseline_seq2seq_forward.8} parent=1 // pred_check_branch
      %17 = sbr.rel (0) target = $region9
    $region8: #{baseline_seq2seq_forward.8} parent=1 // pred_region
      _
    $region9: #{baseline_seq2seq_forward.8} parent=1 // pred_fallthru
      _
    // Predicated region
    $region10: #{baseline_seq2seq_forward.8} parent=1 // pred_check
      _
    $region11: #{baseline_seq2seq_forward.8} parent=1 // pred_check_branch
      %19 = sbr.rel (0) target = $region13
    $region12: #{baseline_seq2seq_forward.8} parent=1 // pred_region
      _
    $region13: #{baseline_seq2seq_forward.8} parent=1 // pred_fallthru
      _
    // Predicated region
    $region14: #{baseline_seq2seq_forward.8} parent=1 // pred_check
      _
    $region15: #{baseline_seq2seq_forward.8} parent=1 // pred_check_branch
      %21 = sbr.rel (0) target = $region17
    $region16: #{baseline_seq2seq_forward.8} parent=1 // pred_region
      _
    $region17: #{baseline_seq2seq_forward.8} parent=1 // pred_fallthru
      _
    %p23 = scmp.eq.s32.totalorder 0, 0
    // Predicated region
    $region18: #{baseline_seq2seq_forward.8} parent=1 // pred_check
      %p24 = pneg %p23
    $region19: #{baseline_seq2seq_forward.8} parent=1 // pred_check_branch
      %26 = sbr.rel (%p24) target = $region21
    $region20: #{baseline_seq2seq_forward.8} parent=1 // pred_region
      %v27 = vld [vmem:[%s1] sm:$0x3]
      %vm28 = vcmask 254976
      %29 = vst.msk [vmem:[#allocation2] sm:$0x3] %vm28, %v27
      %v30 = vld [vmem:[%s2] sm:$0x3]
      %31 = vst.msk [vmem:[#allocation3] sm:$0x3] %vm28, %v30
    $region21: #{baseline_seq2seq_forward.8} parent=1 // pred_fallthru
      _
    %v32 = vld [vmem:[%s3] sm:$0xf]
    %v33 = vld [vmem:[%s3 + $0x4] sm:$0xf]
    %v34 = vld [vmem:[%s3 + $0x8] sm:$0xf]
    %v35 = vld [vmem:[%s3 + $0xc] sm:$0xf]
    %v36 = vld [vmem:[#allocation2] sm:$0x3]
    %v37 = vld [vmem:[#allocation3] sm:$0x3]
    %v38 = vld [vmem:[%s0] sm:$0x1]
    %v39 = vunpack.c.l.bf16 %v38
    %v40 = vpack.c.bf16 %v36, %v36
    %v45 = vunpack.c.l.b16 %v32
    %v46 = vunpack.c.l.b16 %v33
    %v47 = vunpack.c.l.b16 %v34
    %v48 = vunpack.c.l.b16 %v35
    %v49 = vpack.c.b16 %v46, %v45
    %v50 = vpack.c.b16 %v48, %v47
    %vm53 = vcmask 261120
    %v55 = vsel %vm53, %v40, 0
    %57 = vmatprep.subr.bf16.mxu0 0
    %58 = vmatpush1.bf16.msra.mxu0 0
    %59 = vmatprep.subr.bf16.mxu0 0
    %60 = vmatpush1.bf16.msra.mxu0 0
    %61 = vmatprep.subr.bf16.mxu0 0
    %62 = vmatpush1.bf16.msra.mxu0 0
    %63 = vmatprep.subr.bf16.mxu0 0
    %64 = vmatpush1.bf16.msra.mxu0 0
    %65 = vmatprep.subr.bf16.mxu0 0
    %66 = vmatpush1.bf16.msra.mxu0 0
    %67 = vmatprep.subr.bf16.mxu0 0
    %68 = vmatpush1.bf16.msra.mxu0 0
    %69 = vmatprep.subr.bf16.mxu0 0
    %70 = vmatpush1.bf16.msra.mxu0 %v50
    %71 = vmatprep.subr.bf16.mxu0 0
    %72 = vmatpush1.bf16.msra.mxu0 %v49
    %73 = vmatprep.subr.bf16.mxu0 0
    %74 = vmatpush2.bf16.msra.mxu0 0
    %75 = vmatprep.subr.bf16.mxu0 0
    %76 = vmatpush2.bf16.msra.mxu0 0
    %77 = vmatprep.subr.bf16.mxu0 0
    %78 = vmatpush2.bf16.msra.mxu0 0
    %79 = vmatprep.subr.bf16.mxu0 0
    %80 = vmatpush2.bf16.msra.mxu0 0
    %81 = vmatprep.subr.bf16.mxu0 0
    %82 = vmatpush2.bf16.msra.mxu0 0
    %83 = vmatprep.subr.bf16.mxu0 0
    %84 = vmatpush2.bf16.msra.mxu0 0
    %85 = vmatprep.subr.bf16.mxu0 0
    %86 = vmatpush2.bf16.msra.mxu0 0
    %87 = vmatprep.subr.bf16.mxu0 0
    %88 = vmatpush2.bf16.msra.mxu0 0
    %89 = vmatprep.mubr.bf16.mxu0 0
    %90 = vmatmul.mubr.bf16.gmra.mxu0 %v55
    %v91 = vpop.f32.mrf.mxu0
    %v92 = vadd.f32 0.0, %v91
    %v93 = vpop.f32.mrf.mxu0
    %v94 = vpop.f32.mrf.mxu0
    %v95 = vpop.f32.mrf.mxu0
    %96 = vdwg.mxu0
    %v97 = vadd.f32 %v39, %v92
    %v98 = vxor.u32 %v97, 2147483648
    %v99 = vmul.f32 %v98, 1.442695
    %v100 = vpow.pop %v99
    %v101 = vadd.f32 %v100, 1.0
    %v102 = vrcp.pop %v101
    %v103 = vmul.f32 1.0, %v102
    %v104 = vtanh.pop %v97
    %v107 = vunpack.c.l.s4 1983009808
    %v108 = vunpack.c.0.s8 %v107
    %v109 = vlaneseq
    %v110 = vshrl.u32 %v109, 7
    %v111 = vsub.s32 %v108, %v110
    %v112 = vrot.slane %v37, %v111
    %113 = vrot.lane.b32.xlu0 %v112, 32
    %v114 = vpop.permute.xlu0 %113
    %v116 = vmul.f32 %v103, %v114
    %118 = vrot.lane.b32.xlu0 %v104, 64
    %v119 = vpop.permute.xlu0 %118
    %v121 = vmul.f32 %v103, %v119
    %123 = vrot.lane.b32.xlu0 %v121, 32
    %v124 = vpop.permute.xlu0 %123
    %v126 = vadd.f32 %v116, %v124
    %v127 = vtanh.pop %v126
    %129 = vrot.lane.b32.xlu0 %v127, 64
    %v130 = vpop.permute.xlu0 %129
    %v132 = vmul.f32 %v103, %v130
    %v135 = vunpack.c.l.s4 1983009808
    %v136 = vunpack.c.0.s8 %v135
    %v137 = vlaneseq
    %v138 = vshrl.u32 %v137, 7
    %v139 = vsub.s32 %v136, %v138
    %v140 = vrot.slane %v132, %v139
    %141 = vrot.lane.b32.xlu0 %v140, 32
    %v142 = vpop.permute.xlu0 %141
    %vm144 = vcmask 254976
    %145 = vst.msk [vmem:[#allocation2] sm:$0x3] %vm144, %v142
    %v148 = vunpack.c.l.s4 1983009808
    %v149 = vunpack.c.0.s8 %v148
    %v150 = vlaneseq
    %v151 = vshrl.u32 %v150, 7
    %v152 = vsub.s32 %v149, %v151
    %v153 = vrot.slane %v126, %v152
    %154 = vrot.lane.b32.xlu0 %v153, 96
    %v155 = vpop.permute.xlu0 %154
    %157 = vst.msk [vmem:[#allocation3] sm:$0x3] %vm144, %v155
    %v159 = vunpack.c.l.s4 1966171168
    %v160 = vunpack.c.0.s8 %v159
    %v161 = vlaneseq
    %v162 = vshrl.u32 %v161, 7
    %v163 = vsub.s32 %v160, %v162
    %v164 = vrot.slane %v132, %v163
    %v165 = vcombine.high %v164, %v164
    %v168 = vpack.c.bf16 %v164, %v164
    %v169 = vpack.c.bf16 %v165, %v165
    %v172 = vunpack.c.l.b16 %v168
    %v173 = vunpack.c.l.b16 %v169
    %v174 = vpack.c.b16 %v172, %v172
    %v175 = vpack.c.b16 %v173, %v173
    %176 = vrot.lane.b32.xlu0 %v174, 32
    %v177 = vpop.permute.xlu0 %176
    %178 = vrot.lane.b32.xlu0 %v175, 32
    %v179 = vpop.permute.xlu0 %178
    %vm182 = vcmask 253952
    %vm183 = vsmask.f32 256
    %vm184 = vmand %vm182, %vm183
    %v185 = vld [vmem:[%s4] sm:$0x1]
    %v186 = vsel %vm184, %v177, %v185
    %187 = vst [vmem:[%s4] sm:$0x1] %v186
    %v188 = vld [vmem:[%s4 + $0x4] sm:$0x1]
    %v189 = vsel %vm184, %v179, %v188
    %190 = vst [vmem:[%s4 + $0x4] sm:$0x1] %v189
    %v191 = vld [vmem:[#allocation2] sm:$0x3]
    %v192 = vld [vmem:[#allocation3] sm:$0x3]
    %s193 = scalar_lea.vmem %s0, 1
    %v194 = vld [vmem:[%s193] sm:$0x1]
    %v195 = vunpack.c.l.bf16 %v194
    %v196 = vpack.c.bf16 %v191, %v191
    %v198 = vsel %vm53, %v196, 0
    %200 = vmatprep.subr.bf16.mxu0 0
    %201 = vmatpush1.bf16.msra.mxu0 0
    %202 = vmatprep.subr.bf16.mxu0 0
    %203 = vmatpush1.bf16.msra.mxu0 0
    %204 = vmatprep.subr.bf16.mxu0 0
    %205 = vmatpush1.bf16.msra.mxu0 0
    %206 = vmatprep.subr.bf16.mxu0 0
    %207 = vmatpush1.bf16.msra.mxu0 0
    %208 = vmatprep.subr.bf16.mxu0 0
    %209 = vmatpush1.bf16.msra.mxu0 0
    %210 = vmatprep.subr.bf16.mxu0 0
    %211 = vmatpush1.bf16.msra.mxu0 0
    %212 = vmatprep.subr.bf16.mxu0 0
    %213 = vmatpush1.bf16.msra.mxu0 %v50
    %214 = vmatprep.subr.bf16.mxu0 0
    %215 = vmatpush1.bf16.msra.mxu0 %v49
    %216 = vmatprep.subr.bf16.mxu0 0
    %217 = vmatpush2.bf16.msra.mxu0 0
    %218 = vmatprep.subr.bf16.mxu0 0
    %219 = vmatpush2.bf16.msra.mxu0 0
    %220 = vmatprep.subr.bf16.mxu0 0
    %221 = vmatpush2.bf16.msra.mxu0 0
    %222 = vmatprep.subr.bf16.mxu0 0
    %223 = vmatpush2.bf16.msra.mxu0 0
    %224 = vmatprep.subr.bf16.mxu0 0
    %225 = vmatpush2.bf16.msra.mxu0 0
    %226 = vmatprep.subr.bf16.mxu0 0
    %227 = vmatpush2.bf16.msra.mxu0 0
    %228 = vmatprep.subr.bf16.mxu0 0
    %229 = vmatpush2.bf16.msra.mxu0 0
    %230 = vmatprep.subr.bf16.mxu0 0
    %231 = vmatpush2.bf16.msra.mxu0 0
    %232 = vmatprep.mubr.bf16.mxu0 0
    %233 = vmatmul.mubr.bf16.gmra.mxu0 %v198
    %v234 = vpop.f32.mrf.mxu0
    %v235 = vadd.f32 0.0, %v234
    %v236 = vpop.f32.mrf.mxu0
    %v237 = vpop.f32.mrf.mxu0
    %v238 = vpop.f32.mrf.mxu0
    %239 = vdwg.mxu0
    %v240 = vadd.f32 %v195, %v235
    %v241 = vxor.u32 %v240, 2147483648
    %v242 = vmul.f32 %v241, 1.442695
    %v243 = vpow.pop %v242
    %v244 = vadd.f32 %v243, 1.0
    %v245 = vrcp.pop %v244
    %v246 = vmul.f32 1.0, %v245
    %v247 = vtanh.pop %v240
    %v250 = vunpack.c.l.s4 1983009808
    %v251 = vunpack.c.0.s8 %v250
    %v252 = vlaneseq
    %v253 = vshrl.u32 %v252, 7
    %v254 = vsub.s32 %v251, %v253
    %v255 = vrot.slane %v192, %v254
    %256 = vrot.lane.b32.xlu0 %v255, 32
    %v257 = vpop.permute.xlu0 %256
    %v259 = vmul.f32 %v246, %v257
    %261 = vrot.lane.b32.xlu0 %v247, 64
    %v262 = vpop.permute.xlu0 %261
    %v264 = vmul.f32 %v246, %v262
    %266 = vrot.lane.b32.xlu0 %v264, 32
    %v267 = vpop.permute.xlu0 %266
    %v269 = vadd.f32 %v259, %v267
    %v270 = vtanh.pop %v269
    %272 = vrot.lane.b32.xlu0 %v270, 64
    %v273 = vpop.permute.xlu0 %272
    %v275 = vmul.f32 %v246, %v273
    %v278 = vunpack.c.l.s4 1983009808
    %v279 = vunpack.c.0.s8 %v278
    %v280 = vlaneseq
    %v281 = vshrl.u32 %v280, 7
    %v282 = vsub.s32 %v279, %v281
    %v283 = vrot.slane %v275, %v282
    %284 = vrot.lane.b32.xlu0 %v283, 32
    %v285 = vpop.permute.xlu0 %284
    %287 = vst.msk [vmem:[#allocation2] sm:$0x3] %vm144, %v285
    %v290 = vunpack.c.l.s4 1983009808
    %v291 = vunpack.c.0.s8 %v290
    %v292 = vlaneseq
    %v293 = vshrl.u32 %v292, 7
    %v294 = vsub.s32 %v291, %v293
    %v295 = vrot.slane %v269, %v294
    %296 = vrot.lane.b32.xlu0 %v295, 96
    %v297 = vpop.permute.xlu0 %296
    %299 = vst.msk [vmem:[#allocation3] sm:$0x3] %vm144, %v297
    %v301 = vunpack.c.l.s4 1966171168
    %v302 = vunpack.c.0.s8 %v301
    %v303 = vlaneseq
    %v304 = vshrl.u32 %v303, 7
    %v305 = vsub.s32 %v302, %v304
    %v306 = vrot.slane %v275, %v305
    %v307 = vcombine.high %v306, %v306
    %v310 = vpack.c.bf16 %v306, %v306
    %v311 = vpack.c.bf16 %v307, %v307
    %v314 = vunpack.c.l.b16 %v310
    %v315 = vunpack.c.l.b16 %v311
    %v316 = vpack.c.b16 %v314, %v314
    %v317 = vpack.c.b16 %v315, %v315
    %v319 = vshll.u32 %v316, 16
    %v322 = vshll.u32 %v317, 16
    %324 = vrot.lane.b32.xlu0 %v319, 32
    %v325 = vpop.permute.xlu0 %324
    %326 = vrot.lane.b32.xlu0 %v322, 32
    %v327 = vpop.permute.xlu0 %326
    %vm330 = vsmask.f32 7938
    %vm331 = vmand %vm182, %vm330
    %v332 = vld [vmem:[%s4] sm:$0x1]
    %v333 = vsel %vm331, %v325, %v332
    %334 = vst [vmem:[%s4] sm:$0x1] %v333
    %v335 = vld [vmem:[%s4 + $0x4] sm:$0x1]
    %v336 = vsel %vm331, %v327, %v335
    %337 = vst [vmem:[%s4 + $0x4] sm:$0x1] %v336
    %v338 = vld [vmem:[#allocation2] sm:$0x3]
    %v339 = vld [vmem:[#allocation3] sm:$0x3]
    %s340 = scalar_lea.vmem %s0, 2
    %v341 = vld [vmem:[%s340] sm:$0x1]
    %v342 = vunpack.c.l.bf16 %v341
    %v343 = vpack.c.bf16 %v338, %v338
    %v345 = vsel %vm53, %v343, 0
    %347 = vmatprep.subr.bf16.mxu0 0
    %348 = vmatpush1.bf16.msra.mxu0 0
    %349 = vmatprep.subr.bf16.mxu0 0
    %350 = vmatpush1.bf16.msra.mxu0 0
    %351 = vmatprep.subr.bf16.mxu0 0
    %352 = vmatpush1.bf16.msra.mxu0 0
    %353 = vmatprep.subr.bf16.mxu0 0
    %354 = vmatpush1.bf16.msra.mxu0 0
    %355 = vmatprep.subr.bf16.mxu0 0
    %356 = vmatpush1.bf16.msra.mxu0 0
    %357 = vmatprep.subr.bf16.mxu0 0
    %358 = vmatpush1.bf16.msra.mxu0 0
    %359 = vmatprep.subr.bf16.mxu0 0
    %360 = vmatpush1.bf16.msra.mxu0 %v50
    %361 = vmatprep.subr.bf16.mxu0 0
    %362 = vmatpush1.bf16.msra.mxu0 %v49
    %363 = vmatprep.subr.bf16.mxu0 0
    %364 = vmatpush2.bf16.msra.mxu0 0
    %365 = vmatprep.subr.bf16.mxu0 0
    %366 = vmatpush2.bf16.msra.mxu0 0
    %367 = vmatprep.subr.bf16.mxu0 0
    %368 = vmatpush2.bf16.msra.mxu0 0
    %369 = vmatprep.subr.bf16.mxu0 0
    %370 = vmatpush2.bf16.msra.mxu0 0
    %371 = vmatprep.subr.bf16.mxu0 0
    %372 = vmatpush2.bf16.msra.mxu0 0
    %373 = vmatprep.subr.bf16.mxu0 0
    %374 = vmatpush2.bf16.msra.mxu0 0
    %375 = vmatprep.subr.bf16.mxu0 0
    %376 = vmatpush2.bf16.msra.mxu0 0
    %377 = vmatprep.subr.bf16.mxu0 0
    %378 = vmatpush2.bf16.msra.mxu0 0
    %379 = vmatprep.mubr.bf16.mxu0 0
    %380 = vmatmul.mubr.bf16.gmra.mxu0 %v345
    %v381 = vpop.f32.mrf.mxu0
    %v382 = vadd.f32 0.0, %v381
    %v383 = vpop.f32.mrf.mxu0
    %v384 = vpop.f32.mrf.mxu0
    %v385 = vpop.f32.mrf.mxu0
    %386 = vdwg.mxu0
    %v387 = vadd.f32 %v342, %v382
    %v388 = vxor.u32 %v387, 2147483648
    %v389 = vmul.f32 %v388, 1.442695
    %v390 = vpow.pop %v389
    %v391 = vadd.f32 %v390, 1.0
    %v392 = vrcp.pop %v391
    %v393 = vmul.f32 1.0, %v392
    %v394 = vtanh.pop %v387
    %v397 = vunpack.c.l.s4 1983009808
    %v398 = vunpack.c.0.s8 %v397
    %v399 = vlaneseq
    %v400 = vshrl.u32 %v399, 7
    %v401 = vsub.s32 %v398, %v400
    %v402 = vrot.slane %v339, %v401
    %403 = vrot.lane.b32.xlu0 %v402, 32
    %v404 = vpop.permute.xlu0 %403
    %v406 = vmul.f32 %v393, %v404
    %408 = vrot.lane.b32.xlu0 %v394, 64
    %v409 = vpop.permute.xlu0 %408
    %v411 = vmul.f32 %v393, %v409
    %413 = vrot.lane.b32.xlu0 %v411, 32
    %v414 = vpop.permute.xlu0 %413
    %v416 = vadd.f32 %v406, %v414
    %v417 = vtanh.pop %v416
    %419 = vrot.lane.b32.xlu0 %v417, 64
    %v420 = vpop.permute.xlu0 %419
    %v422 = vmul.f32 %v393, %v420
    %v425 = vunpack.c.l.s4 1983009808
    %v426 = vunpack.c.0.s8 %v425
    %v427 = vlaneseq
    %v428 = vshrl.u32 %v427, 7
    %v429 = vsub.s32 %v426, %v428
    %v430 = vrot.slane %v422, %v429
    %431 = vrot.lane.b32.xlu0 %v430, 32
    %v432 = vpop.permute.xlu0 %431
    %434 = vst.msk [vmem:[#allocation2] sm:$0x3] %vm144, %v432
    %v437 = vunpack.c.l.s4 1983009808
    %v438 = vunpack.c.0.s8 %v437
    %v439 = vlaneseq
    %v440 = vshrl.u32 %v439, 7
    %v441 = vsub.s32 %v438, %v440
    %v442 = vrot.slane %v416, %v441
    %443 = vrot.lane.b32.xlu0 %v442, 96
    %v444 = vpop.permute.xlu0 %443
    %446 = vst.msk [vmem:[#allocation3] sm:$0x3] %vm144, %v444
    %v448 = vunpack.c.l.s4 1966171168
    %v449 = vunpack.c.0.s8 %v448
    %v450 = vlaneseq
    %v451 = vshrl.u32 %v450, 7
    %v452 = vsub.s32 %v449, %v451
    %v453 = vrot.slane %v422, %v452
    %v454 = vcombine.high %v453, %v453
    %v457 = vpack.c.bf16 %v453, %v453
    %v458 = vpack.c.bf16 %v454, %v454
    %v461 = vunpack.c.l.b16 %v457
    %v462 = vunpack.c.l.b16 %v458
    %v463 = vpack.c.b16 %v461, %v461
    %v464 = vpack.c.b16 %v462, %v462
    %v465 = vrot.slane %v463, 7
    %v466 = vrot.slane %v464, 7
    %467 = vrot.lane.b32.xlu0 %v465, 32
    %v468 = vpop.permute.xlu0 %467
    %469 = vrot.lane.b32.xlu0 %v466, 32
    %v470 = vpop.permute.xlu0 %469
    %vm473 = vcmask 254977
    %vm474 = vsmask.f32 1280
    %vm475 = vmand %vm473, %vm474
    %v476 = vld [vmem:[%s4] sm:$0x2]
    %v477 = vsel %vm475, %v468, %v476
    %478 = vst [vmem:[%s4] sm:$0x2] %v477
    %v479 = vld [vmem:[%s4 + $0x4] sm:$0x2]
    %v480 = vsel %vm475, %v470, %v479
    %481 = vst [vmem:[%s4 + $0x4] sm:$0x2] %v480
    %v482 = vld [vmem:[#allocation2] sm:$0x3]
    %v483 = vld [vmem:[#allocation3] sm:$0x3]
    %s484 = scalar_lea.vmem %s0, 3
    %v485 = vld [vmem:[%s484] sm:$0x1]
    %v486 = vunpack.c.l.bf16 %v485
    %v487 = vpack.c.bf16 %v482, %v482
    %v489 = vsel %vm53, %v487, 0
    %491 = vmatprep.subr.bf16.mxu0 0
    %492 = vmatpush1.bf16.msra.mxu0 0
    %493 = vmatprep.subr.bf16.mxu0 0
    %494 = vmatpush1.bf16.msra.mxu0 0
    %495 = vmatprep.subr.bf16.mxu0 0
    %496 = vmatpush1.bf16.msra.mxu0 0
    %497 = vmatprep.subr.bf16.mxu0 0
    %498 = vmatpush1.bf16.msra.mxu0 0
    %499 = vmatprep.subr.bf16.mxu0 0
    %500 = vmatpush1.bf16.msra.mxu0 0
    %501 = vmatprep.subr.bf16.mxu0 0
    %502 = vmatpush1.bf16.msra.mxu0 0
    %503 = vmatprep.subr.bf16.mxu0 0
    %504 = vmatpush1.bf16.msra.mxu0 %v50
    %505 = vmatprep.subr.bf16.mxu0 0
    %506 = vmatpush1.bf16.msra.mxu0 %v49
    %507 = vmatprep.subr.bf16.mxu0 0
    %508 = vmatpush2.bf16.msra.mxu0 0
    %509 = vmatprep.subr.bf16.mxu0 0
    %510 = vmatpush2.bf16.msra.mxu0 0
    %511 = vmatprep.subr.bf16.mxu0 0
    %512 = vmatpush2.bf16.msra.mxu0 0
    %513 = vmatprep.subr.bf16.mxu0 0
    %514 = vmatpush2.bf16.msra.mxu0 0
    %515 = vmatprep.subr.bf16.mxu0 0
    %516 = vmatpush2.bf16.msra.mxu0 0
    %517 = vmatprep.subr.bf16.mxu0 0
    %518 = vmatpush2.bf16.msra.mxu0 0
    %519 = vmatprep.subr.bf16.mxu0 0
    %520 = vmatpush2.bf16.msra.mxu0 0
    %521 = vmatprep.subr.bf16.mxu0 0
    %522 = vmatpush2.bf16.msra.mxu0 0
    %523 = vmatprep.mubr.bf16.mxu0 0
    %524 = vmatmul.mubr.bf16.gmra.mxu0 %v489
    %v525 = vpop.f32.mrf.mxu0
    %v526 = vadd.f32 0.0, %v525
    %v527 = vpop.f32.mrf.mxu0
    %v528 = vpop.f32.mrf.mxu0
    %v529 = vpop.f32.mrf.mxu0
    %530 = vdwg.mxu0
    %v531 = vadd.f32 %v486, %v526
    %v532 = vxor.u32 %v531, 2147483648
    %v533 = vmul.f32 %v532, 1.442695
    %v534 = vpow.pop %v533
    %v535 = vadd.f32 %v534, 1.0
    %v536 = vrcp.pop %v535
    %v537 = vmul.f32 1.0, %v536
    %v538 = vtanh.pop %v531
    %v541 = vunpack.c.l.s4 1983009808
    %v542 = vunpack.c.0.s8 %v541
    %v543 = vlaneseq
    %v544 = vshrl.u32 %v543, 7
    %v545 = vsub.s32 %v542, %v544
    %v546 = vrot.slane %v483, %v545
    %547 = vrot.lane.b32.xlu0 %v546, 32
    %v548 = vpop.permute.xlu0 %547
    %v550 = vmul.f32 %v537, %v548
    %552 = vrot.lane.b32.xlu0 %v538, 64
    %v553 = vpop.permute.xlu0 %552
    %v555 = vmul.f32 %v537, %v553
    %557 = vrot.lane.b32.xlu0 %v555, 32
    %v558 = vpop.permute.xlu0 %557
    %v560 = vadd.f32 %v550, %v558
    %v561 = vtanh.pop %v560
    %563 = vrot.lane.b32.xlu0 %v561, 64
    %v564 = vpop.permute.xlu0 %563
    %v566 = vmul.f32 %v537, %v564
    %v569 = vunpack.c.l.s4 1983009808
    %v570 = vunpack.c.0.s8 %v569
    %v571 = vlaneseq
    %v572 = vshrl.u32 %v571, 7
    %v573 = vsub.s32 %v570, %v572
    %v574 = vrot.slane %v566, %v573
    %575 = vrot.lane.b32.xlu0 %v574, 32
    %v576 = vpop.permute.xlu0 %575
    %578 = vst.msk [vmem:[#allocation2] sm:$0x3] %vm144, %v576
    %v581 = vunpack.c.l.s4 1983009808
    %v582 = vunpack.c.0.s8 %v581
    %v583 = vlaneseq
    %v584 = vshrl.u32 %v583, 7
    %v585 = vsub.s32 %v582, %v584
    %v586 = vrot.slane %v560, %v585
    %587 = vrot.lane.b32.xlu0 %v586, 96
    %v588 = vpop.permute.xlu0 %587
    %590 = vst.msk [vmem:[#allocation3] sm:$0x3] %vm144, %v588
    %v592 = vunpack.c.l.s4 1966171168
    %v593 = vunpack.c.0.s8 %v592
    %v594 = vlaneseq
    %v595 = vshrl.u32 %v594, 7
    %v596 = vsub.s32 %v593, %v595
    %v597 = vrot.slane %v566, %v596
    %v598 = vcombine.high %v597, %v597
    %v601 = vpack.c.bf16 %v597, %v597
    %v602 = vpack.c.bf16 %v598, %v598
    %v605 = vunpack.c.l.b16 %v601
    %v606 = vunpack.c.l.b16 %v602
    %v607 = vpack.c.b16 %v605, %v605
    %v608 = vpack.c.b16 %v606, %v606
    %v610 = vshll.u32 %v607, 16
    %v612 = vrot.slane %v610, 7
    %v614 = vshll.u32 %v608, 16
    %v616 = vrot.slane %v614, 7
    %617 = vrot.lane.b32.xlu0 %v612, 32
    %v618 = vpop.permute.xlu0 %617
    %619 = vrot.lane.b32.xlu0 %v616, 32
    %v620 = vpop.permute.xlu0 %619
    %vm623 = vsmask.f32 7942
    %vm624 = vmand %vm473, %vm623
    %v625 = vld [vmem:[%s4] sm:$0x2]
    %v626 = vsel %vm624, %v618, %v625
    %627 = vst [vmem:[%s4] sm:$0x2] %v626
    %v628 = vld [vmem:[%s4 + $0x4] sm:$0x2]
    %v629 = vsel %vm624, %v620, %v628
    %630 = vst [vmem:[%s4 + $0x4] sm:$0x2] %v629
    %v631 = vld [vmem:[#allocation2] sm:$0x3]
    %v632 = vld [vmem:[#allocation3] sm:$0x3]
    %s633 = scalar_lea.vmem %s0, 4
    %v634 = vld [vmem:[%s633] sm:$0x1]
    %v635 = vunpack.c.l.bf16 %v634
    %v636 = vpack.c.bf16 %v631, %v631
    %v638 = vsel %vm53, %v636, 0
    %640 = vmatprep.subr.bf16.mxu0 0
    %641 = vmatpush1.bf16.msra.mxu0 0
    %642 = vmatprep.subr.bf16.mxu0 0
    %643 = vmatpush1.bf16.msra.mxu0 0
    %644 = vmatprep.subr.bf16.mxu0 0
    %645 = vmatpush1.bf16.msra.mxu0 0
    %646 = vmatprep.subr.bf16.mxu0 0
    %647 = vmatpush1.bf16.msra.mxu0 0
    %648 = vmatprep.subr.bf16.mxu0 0
    %649 = vmatpush1.bf16.msra.mxu0 0
    %650 = vmatprep.subr.bf16.mxu0 0
    %651 = vmatpush1.bf16.msra.mxu0 0
    %652 = vmatprep.subr.bf16.mxu0 0
    %653 = vmatpush1.bf16.msra.mxu0 %v50
    %654 = vmatprep.subr.bf16.mxu0 0
    %655 = vmatpush1.bf16.msra.mxu0 %v49
    %656 = vmatprep.subr.bf16.mxu0 0
    %657 = vmatpush2.bf16.msra.mxu0 0
    %658 = vmatprep.subr.bf16.mxu0 0
    %659 = vmatpush2.bf16.msra.mxu0 0
    %660 = vmatprep.subr.bf16.mxu0 0
    %661 = vmatpush2.bf16.msra.mxu0 0
    %662 = vmatprep.subr.bf16.mxu0 0
    %663 = vmatpush2.bf16.msra.mxu0 0
    %664 = vmatprep.subr.bf16.mxu0 0
    %665 = vmatpush2.bf16.msra.mxu0 0
    %666 = vmatprep.subr.bf16.mxu0 0
    %667 = vmatpush2.bf16.msra.mxu0 0
    %668 = vmatprep.subr.bf16.mxu0 0
    %669 = vmatpush2.bf16.msra.mxu0 0
    %670 = vmatprep.subr.bf16.mxu0 0
    %671 = vmatpush2.bf16.msra.mxu0 0
    %672 = vmatprep.mubr.bf16.mxu0 0
    %673 = vmatmul.mubr.bf16.gmra.mxu0 %v638
    %v674 = vpop.f32.mrf.mxu0
    %v675 = vadd.f32 0.0, %v674
    %v676 = vpop.f32.mrf.mxu0
    %v677 = vpop.f32.mrf.mxu0
    %v678 = vpop.f32.mrf.mxu0
    %679 = vdwg.mxu0
    %v680 = vadd.f32 %v635, %v675
    %v681 = vxor.u32 %v680, 2147483648
    %v682 = vmul.f32 %v681, 1.442695
    %v683 = vpow.pop %v682
    %v684 = vadd.f32 %v683, 1.0
    %v685 = vrcp.pop %v684
    %v686 = vmul.f32 1.0, %v685
    %v687 = vtanh.pop %v680
    %v690 = vunpack.c.l.s4 1983009808
    %v691 = vunpack.c.0.s8 %v690
    %v692 = vlaneseq
    %v693 = vshrl.u32 %v692, 7
    %v694 = vsub.s32 %v691, %v693
    %v695 = vrot.slane %v632, %v694
    %696 = vrot.lane.b32.xlu0 %v695, 32
    %v697 = vpop.permute.xlu0 %696
    %v699 = vmul.f32 %v686, %v697
    %701 = vrot.lane.b32.xlu0 %v687, 64
    %v702 = vpop.permute.xlu0 %701
    %v704 = vmul.f32 %v686, %v702
    %706 = vrot.lane.b32.xlu0 %v704, 32
    %v707 = vpop.permute.xlu0 %706
    %v709 = vadd.f32 %v699, %v707
    %v710 = vtanh.pop %v709
    %712 = vrot.lane.b32.xlu0 %v710, 64
    %v713 = vpop.permute.xlu0 %712
    %v715 = vmul.f32 %v686, %v713
    %v718 = vunpack.c.l.s4 1983009808
    %v719 = vunpack.c.0.s8 %v718
    %v720 = vlaneseq
    %v721 = vshrl.u32 %v720, 7
    %v722 = vsub.s32 %v719, %v721
    %v723 = vrot.slane %v715, %v722
    %724 = vrot.lane.b32.xlu0 %v723, 32
    %v725 = vpop.permute.xlu0 %724
    %727 = vst.msk [vmem:[#allocation2] sm:$0x3] %vm144, %v725
    %v730 = vunpack.c.l.s4 1983009808
    %v731 = vunpack.c.0.s8 %v730
    %v732 = vlaneseq
    %v733 = vshrl.u32 %v732, 7
    %v734 = vsub.s32 %v731, %v733
    %v735 = vrot.slane %v709, %v734
    %736 = vrot.lane.b32.xlu0 %v735, 96
    %v737 = vpop.permute.xlu0 %736
    %739 = vst.msk [vmem:[#allocation3] sm:$0x3] %vm144, %v737
    %v741 = vunpack.c.l.s4 1966171168
    %v742 = vunpack.c.0.s8 %v741
    %v743 = vlaneseq
    %v744 = vshrl.u32 %v743, 7
    %v745 = vsub.s32 %v742, %v744
    %v746 = vrot.slane %v715, %v745
    %v747 = vcombine.high %v746, %v746
    %v750 = vpack.c.bf16 %v746, %v746
    %v751 = vpack.c.bf16 %v747, %v747
    %v754 = vunpack.c.l.b16 %v750
    %v755 = vunpack.c.l.b16 %v751
    %v756 = vpack.c.b16 %v754, %v754
    %v757 = vpack.c.b16 %v755, %v755
    %v758 = vrot.slane %v756, 6
    %v759 = vrot.slane %v757, 6
    %760 = vrot.lane.b32.xlu0 %v758, 32
    %v761 = vpop.permute.xlu0 %760
    %762 = vrot.lane.b32.xlu0 %v759, 32
    %v763 = vpop.permute.xlu0 %762
    %vm766 = vcmask 256002
    %vm767 = vsmask.f32 2304
    %vm768 = vmand %vm766, %vm767
    %v769 = vld [vmem:[%s4] sm:$0x4]
    %v770 = vsel %vm768, %v761, %v769
    %771 = vst [vmem:[%s4] sm:$0x4] %v770
    %v772 = vld [vmem:[%s4 + $0x4] sm:$0x4]
    %v773 = vsel %vm768, %v763, %v772
    %774 = vst [vmem:[%s4 + $0x4] sm:$0x4] %v773
    %v775 = vld [vmem:[#allocation2] sm:$0x3]
    %v776 = vld [vmem:[#allocation3] sm:$0x3]
    %s777 = scalar_lea.vmem %s0, 5
    %v778 = vld [vmem:[%s777] sm:$0x1]
    %v779 = vunpack.c.l.bf16 %v778
    %v780 = vpack.c.bf16 %v775, %v775
    %v782 = vsel %vm53, %v780, 0
    %784 = vmatprep.subr.bf16.mxu0 0
    %785 = vmatpush1.bf16.msra.mxu0 0
    %786 = vmatprep.subr.bf16.mxu0 0
    %787 = vmatpush1.bf16.msra.mxu0 0
    %788 = vmatprep.subr.bf16.mxu0 0
    %789 = vmatpush1.bf16.msra.mxu0 0
    %790 = vmatprep.subr.bf16.mxu0 0
    %791 = vmatpush1.bf16.msra.mxu0 0
    %792 = vmatprep.subr.bf16.mxu0 0
    %793 = vmatpush1.bf16.msra.mxu0 0
    %794 = vmatprep.subr.bf16.mxu0 0
    %795 = vmatpush1.bf16.msra.mxu0 0
    %796 = vmatprep.subr.bf16.mxu0 0
    %797 = vmatpush1.bf16.msra.mxu0 %v50
    %798 = vmatprep.subr.bf16.mxu0 0
    %799 = vmatpush1.bf16.msra.mxu0 %v49
    %800 = vmatprep.subr.bf16.mxu0 0
    %801 = vmatpush2.bf16.msra.mxu0 0
    %802 = vmatprep.subr.bf16.mxu0 0
    %803 = vmatpush2.bf16.msra.mxu0 0
    %804 = vmatprep.subr.bf16.mxu0 0
    %805 = vmatpush2.bf16.msra.mxu0 0
    %806 = vmatprep.subr.bf16.mxu0 0
    %807 = vmatpush2.bf16.msra.mxu0 0
    %808 = vmatprep.subr.bf16.mxu0 0
    %809 = vmatpush2.bf16.msra.mxu0 0
    %810 = vmatprep.subr.bf16.mxu0 0
    %811 = vmatpush2.bf16.msra.mxu0 0
    %812 = vmatprep.subr.bf16.mxu0 0
    %813 = vmatpush2.bf16.msra.mxu0 0
    %814 = vmatprep.subr.bf16.mxu0 0
    %815 = vmatpush2.bf16.msra.mxu0 0
    %816 = vmatprep.mubr.bf16.mxu0 0
    %817 = vmatmul.mubr.bf16.gmra.mxu0 %v782
    %v818 = vpop.f32.mrf.mxu0
    %v819 = vadd.f32 0.0, %v818
    %v820 = vpop.f32.mrf.mxu0
    %v821 = vpop.f32.mrf.mxu0
    %v822 = vpop.f32.mrf.mxu0
    %823 = vdwg.mxu0
    %v824 = vadd.f32 %v779, %v819
    %v825 = vxor.u32 %v824, 2147483648
    %v826 = vmul.f32 %v825, 1.442695
    %v827 = vpow.pop %v826
    %v828 = vadd.f32 %v827, 1.0
    %v829 = vrcp.pop %v828
    %v830 = vmul.f32 1.0, %v829
    %v831 = vtanh.pop %v824
    %v834 = vunpack.c.l.s4 1983009808
    %v835 = vunpack.c.0.s8 %v834
    %v836 = vlaneseq
    %v837 = vshrl.u32 %v836, 7
    %v838 = vsub.s32 %v835, %v837
    %v839 = vrot.slane %v776, %v838
    %840 = vrot.lane.b32.xlu0 %v839, 32
    %v841 = vpop.permute.xlu0 %840
    %v843 = vmul.f32 %v830, %v841
    %845 = vrot.lane.b32.xlu0 %v831, 64
    %v846 = vpop.permute.xlu0 %845
    %v848 = vmul.f32 %v830, %v846
    %850 = vrot.lane.b32.xlu0 %v848, 32
    %v851 = vpop.permute.xlu0 %850
    %v853 = vadd.f32 %v843, %v851
    %v854 = vtanh.pop %v853
    %856 = vrot.lane.b32.xlu0 %v854, 64
    %v857 = vpop.permute.xlu0 %856
    %v859 = vmul.f32 %v830, %v857
    %v862 = vunpack.c.l.s4 1983009808
    %v863 = vunpack.c.0.s8 %v862
    %v864 = vlaneseq
    %v865 = vshrl.u32 %v864, 7
    %v866 = vsub.s32 %v863, %v865
    %v867 = vrot.slane %v859, %v866
    %868 = vrot.lane.b32.xlu0 %v867, 32
    %v869 = vpop.permute.xlu0 %868
    %871 = vst.msk [vmem:[#allocation2] sm:$0x3] %vm144, %v869
    %v874 = vunpack.c.l.s4 1983009808
    %v875 = vunpack.c.0.s8 %v874
    %v876 = vlaneseq
    %v877 = vshrl.u32 %v876, 7
    %v878 = vsub.s32 %v875, %v877
    %v879 = vrot.slane %v853, %v878
    %880 = vrot.lane.b32.xlu0 %v879, 96
    %v881 = vpop.permute.xlu0 %880
    %883 = vst.msk [vmem:[#allocation3] sm:$0x3] %vm144, %v881
    %v885 = vunpack.c.l.s4 1966171168
    %v886 = vunpack.c.0.s8 %v885
    %v887 = vlaneseq
    %v888 = vshrl.u32 %v887, 7
    %v889 = vsub.s32 %v886, %v888
    %v890 = vrot.slane %v859, %v889
    %v891 = vcombine.high %v890, %v890
    %v894 = vpack.c.bf16 %v890, %v890
    %v895 = vpack.c.bf16 %v891, %v891
    %v898 = vunpack.c.l.b16 %v894
    %v899 = vunpack.c.l.b16 %v895
    %v900 = vpack.c.b16 %v898, %v898
    %v901 = vpack.c.b16 %v899, %v899
    %v903 = vshll.u32 %v900, 16
    %v905 = vrot.slane %v903, 6
    %v907 = vshll.u32 %v901, 16
    %v909 = vrot.slane %v907, 6
    %910 = vrot.lane.b32.xlu0 %v905, 32
    %v911 = vpop.permute.xlu0 %910
    %912 = vrot.lane.b32.xlu0 %v909, 32
    %v913 = vpop.permute.xlu0 %912
    %vm916 = vsmask.f32 7946
    %vm917 = vmand %vm766, %vm916
    %v918 = vld [vmem:[%s4] sm:$0x4]
    %v919 = vsel %vm917, %v911, %v918
    %920 = vst [vmem:[%s4] sm:$0x4] %v919
    %v921 = vld [vmem:[%s4 + $0x4] sm:$0x4]
    %v922 = vsel %vm917, %v913, %v921
    %923 = vst [vmem:[%s4 + $0x4] sm:$0x4] %v922
    %v924 = vld [vmem:[#allocation2] sm:$0x3]
    %v925 = vld [vmem:[#allocation3] sm:$0x3]
    %s926 = scalar_lea.vmem %s0, 6
    %v927 = vld [vmem:[%s926] sm:$0x1]
    %v928 = vunpack.c.l.bf16 %v927
    %v929 = vpack.c.bf16 %v924, %v924
    %v931 = vsel %vm53, %v929, 0
    %933 = vmatprep.subr.bf16.mxu0 0
    %934 = vmatpush1.bf16.msra.mxu0 0
    %935 = vmatprep.subr.bf16.mxu0 0
    %936 = vmatpush1.bf16.msra.mxu0 0
    %937 = vmatprep.subr.bf16.mxu0 0
    %938 = vmatpush1.bf16.msra.mxu0 0
    %939 = vmatprep.subr.bf16.mxu0 0
    %940 = vmatpush1.bf16.msra.mxu0 0
    %941 = vmatprep.subr.bf16.mxu0 0
    %942 = vmatpush1.bf16.msra.mxu0 0
    %943 = vmatprep.subr.bf16.mxu0 0
    %944 = vmatpush1.bf16.msra.mxu0 0
    %945 = vmatprep.subr.bf16.mxu0 0
    %946 = vmatpush1.bf16.msra.mxu0 %v50
    %947 = vmatprep.subr.bf16.mxu0 0
    %948 = vmatpush1.bf16.msra.mxu0 %v49
    %949 = vmatprep.subr.bf16.mxu0 0
    %950 = vmatpush2.bf16.msra.mxu0 0
    %951 = vmatprep.subr.bf16.mxu0 0
    %952 = vmatpush2.bf16.msra.mxu0 0
    %953 = vmatprep.subr.bf16.mxu0 0
    %954 = vmatpush2.bf16.msra.mxu0 0
    %955 = vmatprep.subr.bf16.mxu0 0
    %956 = vmatpush2.bf16.msra.mxu0 0
    %957 = vmatprep.subr.bf16.mxu0 0
    %958 = vmatpush2.bf16.msra.mxu0 0
    %959 = vmatprep.subr.bf16.mxu0 0
    %960 = vmatpush2.bf16.msra.mxu0 0
    %961 = vmatprep.subr.bf16.mxu0 0
    %962 = vmatpush2.bf16.msra.mxu0 0
    %963 = vmatprep.subr.bf16.mxu0 0
    %964 = vmatpush2.bf16.msra.mxu0 0
    %965 = vmatprep.mubr.bf16.mxu0 0
    %966 = vmatmul.mubr.bf16.gmra.mxu0 %v931
    %v967 = vpop.f32.mrf.mxu0
    %v968 = vadd.f32 0.0, %v967
    %v969 = vpop.f32.mrf.mxu0
    %v970 = vpop.f32.mrf.mxu0
    %v971 = vpop.f32.mrf.mxu0
    %972 = vdwg.mxu0
    %v973 = vadd.f32 %v928, %v968
    %v974 = vxor.u32 %v973, 2147483648
    %v975 = vmul.f32 %v974, 1.442695
    %v976 = vpow.pop %v975
    %v977 = vadd.f32 %v976, 1.0
    %v978 = vrcp.pop %v977
    %v979 = vmul.f32 1.0, %v978
    %v980 = vtanh.pop %v973
    %v983 = vunpack.c.l.s4 1983009808
    %v984 = vunpack.c.0.s8 %v983
    %v985 = vlaneseq
    %v986 = vshrl.u32 %v985, 7
    %v987 = vsub.s32 %v984, %v986
    %v988 = vrot.slane %v925, %v987
    %989 = vrot.lane.b32.xlu0 %v988, 32
    %v990 = vpop.permute.xlu0 %989
    %v992 = vmul.f32 %v979, %v990
    %994 = vrot.lane.b32.xlu0 %v980, 64
    %v995 = vpop.permute.xlu0 %994
    %v997 = vmul.f32 %v979, %v995
    %999 = vrot.lane.b32.xlu0 %v997, 32
    %v1000 = vpop.permute.xlu0 %999
    %v1002 = vadd.f32 %v992, %v1000
    %v1003 = vtanh.pop %v1002
    %1005 = vrot.lane.b32.xlu0 %v1003, 64
    %v1006 = vpop.permute.xlu0 %1005
    %v1008 = vmul.f32 %v979, %v1006
    %v1011 = vunpack.c.l.s4 1983009808
    %v1012 = vunpack.c.0.s8 %v1011
    %v1013 = vlaneseq
    %v1014 = vshrl.u32 %v1013, 7
    %v1015 = vsub.s32 %v1012, %v1014
    %v1016 = vrot.slane %v1008, %v1015
    %1017 = vrot.lane.b32.xlu0 %v1016, 32
    %v1018 = vpop.permute.xlu0 %1017
    %1020 = vst.msk [vmem:[#allocation2] sm:$0x3] %vm144, %v1018
    %v1023 = vunpack.c.l.s4 1983009808
    %v1024 = vunpack.c.0.s8 %v1023
    %v1025 = vlaneseq
    %v1026 = vshrl.u32 %v1025, 7
    %v1027 = vsub.s32 %v1024, %v1026
    %v1028 = vrot.slane %v1002, %v1027
    %1029 = vrot.lane.b32.xlu0 %v1028, 96
    %v1030 = vpop.permute.xlu0 %1029
    %1032 = vst.msk [vmem:[#allocation3] sm:$0x3] %vm144, %v1030
    %v1034 = vunpack.c.l.s4 1966171168
    %v1035 = vunpack.c.0.s8 %v1034
    %v1036 = vlaneseq
    %v1037 = vshrl.u32 %v1036, 7
    %v1038 = vsub.s32 %v1035, %v1037
    %v1039 = vrot.slane %v1008, %v1038
    %v1040 = vcombine.high %v1039, %v1039
    %v1043 = vpack.c.bf16 %v1039, %v1039
    %v1044 = vpack.c.bf16 %v1040, %v1040
    %v1047 = vunpack.c.l.b16 %v1043
    %v1048 = vunpack.c.l.b16 %v1044
    %v1049 = vpack.c.b16 %v1047, %v1047
    %v1050 = vpack.c.b16 %v1048, %v1048
    %v1051 = vrot.slane %v1049, 5
    %v1052 = vrot.slane %v1050, 5
    %1053 = vrot.lane.b32.xlu0 %v1051, 32
    %v1054 = vpop.permute.xlu0 %1053
    %1055 = vrot.lane.b32.xlu0 %v1052, 32
    %v1056 = vpop.permute.xlu0 %1055
    %vm1059 = vcmask 257027
    %vm1060 = vsmask.f32 3328
    %vm1061 = vmand %vm1059, %vm1060
    %v1062 = vld [vmem:[%s4] sm:$0x8]
    %v1063 = vsel %vm1061, %v1054, %v1062
    %1064 = vst [vmem:[%s4] sm:$0x8] %v1063
    %v1065 = vld [vmem:[%s4 + $0x4] sm:$0x8]
    %v1066 = vsel %vm1061, %v1056, %v1065
    %1067 = vst [vmem:[%s4 + $0x4] sm:$0x8] %v1066
    %v1068 = vld [vmem:[#allocation2] sm:$0x3]
    %1069 = vst.msk [vmem:[#allocation4] sm:$0x3] %vm144, %v1068
    %v1070 = vld [vmem:[#allocation3] sm:$0x3]
    %1071 = vst.msk [vmem:[#allocation6] sm:$0x3] %vm144, %v1070
    // Predicated region
    $region22: #{baseline_seq2seq_forward.8} parent=1 // pred_check
      _
    $region23: #{baseline_seq2seq_forward.8} parent=1 // pred_check_branch
      %1073 = sbr.rel (0) target = $region25
    $region24: #{baseline_seq2seq_forward.8} parent=1 // pred_region
      _
    $region25: #{baseline_seq2seq_forward.8} parent=1 // pred_fallthru
      _
    // Predicated region
    $region26: #{baseline_seq2seq_forward.8} parent=1 // pred_check
      _
    $region27: #{baseline_seq2seq_forward.8} parent=1 // pred_check_branch
      %1075 = sbr.rel (0) target = $region29
    $region28: #{baseline_seq2seq_forward.8} parent=1 // pred_region
      %s1077 = ssub.s32 32, 32
      %1078 = vsyncadd [#allocation5], %s1077
      %s1080 = sshll.u32 [#allocation4], 4
      %s1081 = int_to_ptr.vmem [resolvable:$true] %s1080
      %1083 = dma.vmem_to_hbm [thread:$0]  %s1081, 32, %s5, [#allocation5]
    $region29: #{baseline_seq2seq_forward.8} parent=1 // pred_fallthru
      _
    // Predicated region
    $region30: #{baseline_seq2seq_forward.8} parent=1 // pred_check
      _
    $region31: #{baseline_seq2seq_forward.8} parent=1 // pred_check_branch
      %1085 = sbr.rel (0) target = $region33
    $region32: #{baseline_seq2seq_forward.8} parent=1 // pred_region
      %s1087 = ssub.s32 32, 32
      %1088 = vsyncadd [#allocation7], %s1087
      %s1090 = sshll.u32 [#allocation6], 4
      %s1091 = int_to_ptr.vmem [resolvable:$true] %s1090
      %1093 = dma.vmem_to_hbm [thread:$0]  %s1091, 32, %s6, [#allocation7]
    $region33: #{baseline_seq2seq_forward.8} parent=1 // pred_fallthru
      _
    // Predicated region
    $region34: #{baseline_seq2seq_forward.8} parent=1 // pred_check
      _
    $region35: #{baseline_seq2seq_forward.8} parent=1 // pred_check_branch
      %1095 = sbr.rel (0) target = $region37
    $region36: #{baseline_seq2seq_forward.8} parent=1 // pred_region
      _
    $region37: #{baseline_seq2seq_forward.8} parent=1 // pred_fallthru
      _
    // Predicated region
    $region38: #{baseline_seq2seq_forward.8} parent=1 // pred_check
      _
    $region39: #{baseline_seq2seq_forward.8} parent=1 // pred_check_branch
      %1097 = sbr.rel (0) target = $region41
    $region40: #{baseline_seq2seq_forward.8} parent=1 // pred_region
      %1098 = dma.done [#allocation5], 32
    $region41: #{baseline_seq2seq_forward.8} parent=1 // pred_fallthru
      _
    // Predicated region
    $region42: #{baseline_seq2seq_forward.8} parent=1 // pred_check
      _
    $region43: #{baseline_seq2seq_forward.8} parent=1 // pred_check_branch
      %1100 = sbr.rel (0) target = $region45
    $region44: #{baseline_seq2seq_forward.8} parent=1 // pred_region
      %1101 = dma.done [#allocation7], 32
    $region45: #{baseline_seq2seq_forward.8} parent=1 // pred_fallthru
      _
    %1102 = vsyncpa [#allocation5], 1
    %1103 = vsyncpa [#allocation7], 1

</llo_original>
